<compile_context>
chip_gen: v6e
topology: v6e:2x2x1
jax: 0.10.0
libtpu: 0.0.40
codegen_flags: <defaults>
</compile_context>

<pallas_src>
import jax
import jax.numpy as jnp
from jax.experimental import pallas as pl
from jax.experimental.pallas import tpu as pltpu

# ---------------------------------------------------------------------------
# Problem sizes (from the module: Linear(16*16*16, 1024) -> Linear(1024, 128)
# -> three Linear(128, k) heads).  Batch kept small for the demo.
# ---------------------------------------------------------------------------
B = 2
K_MIX = 8                 # "k" mixture components in mapping_model_gmm
D_IN = 16 * 16 * 16       # 4096 flattened latent-local-map features
D_H1 = 1024
D_H2 = 128
N_HEADS = 3               # mu, cov, log-mixture-prob
N_SPLIT = 2               # D_H1 split -> one half per TensorCore on v7x
D_H1_HALF = D_H1 // N_SPLIT


def _gmm_mlp_kernel(x_ref, w1_ref, s1_ref, b1_ref, w2_ref, out_ref):
    """One D_H1 half per grid program:
       (B,4096)bf16 @ (4096,512)[int8->bf16] -> *scale + b1 -> ReLU
       -> (B,512)bf16 @ (512,128)bf16  partial pre-activation h2 contribution.
    """
    # Hot path: int8 weights upcast to bf16 on the VPU, MXU matmul, f32 acc.
    acc = jnp.dot(x_ref[...], w1_ref[...].astype(jnp.bfloat16),
                  preferred_element_type=jnp.float32)
    # Per-output-channel dequant scale folded in after the dot (cheap: B x 512).
    h1 = jnp.maximum(acc * s1_ref[...] + b1_ref[...], 0.0)
    # Rows of W2 matching this D_H1 half -> partial (B, 128) contribution.
    part = jnp.dot(h1.astype(jnp.bfloat16), w2_ref[...],
                   preferred_element_type=jnp.float32)
    out_ref[...] = part.reshape(out_ref.shape)


@jax.jit
def mapping_model_gmm_pallas(latent, params):
    """Pallas implementation of SlamNet.mapping_model_gmm."""
    b = latent.shape[0]
    x_bf16 = latent.astype(jnp.bfloat16)

    grid_spec = pltpu.PrefetchScalarGridSpec(
        num_scalar_prefetch=0,
        grid=(N_SPLIT,),                                       # "parallel" -> one half per TC on v7x
        in_specs=[
            pl.BlockSpec((b, D_IN), lambda c: (0, 0)),         # x, VMEM-resident (16 KiB)
            pl.BlockSpec((D_IN, D_H1_HALF), lambda c: (0, c)),  # W1 half, int8 (2 MiB)
            pl.BlockSpec((1, D_H1_HALF), lambda c: (0, c)),     # per-channel scale
            pl.BlockSpec((1, D_H1_HALF), lambda c: (0, c)),     # b1 half
            pl.BlockSpec((D_H1_HALF, D_H2), lambda c: (c, 0)),  # W2 row-half, bf16
        ],
        out_specs=pl.BlockSpec((1, b, D_H2), lambda c: (c, 0, 0)),
    )

    flops = 2 * b * (D_IN * D_H1 + D_H1 * D_H2)
    bytes_accessed = (x_bf16.size * 2 + params["w1_i8"].size
                      + params["w1_scale"].size * 4 + params["b1"].size * 4
                      + params["w2"].size * 2 + N_SPLIT * b * D_H2 * 4)

    partial_h2 = pl.pallas_call(
        _gmm_mlp_kernel,
        grid_spec=grid_spec,
        out_shape=jax.ShapeDtypeStruct((N_SPLIT, b, D_H2), jnp.float32),
        compiler_params=pltpu.CompilerParams(
            dimension_semantics=("parallel",),
            vmem_limit_bytes=32 * 1024 * 1024),
        cost_estimate=pl.CostEstimate(flops=flops, transcendentals=0,
                                      bytes_accessed=bytes_accessed),
    )(x_bf16, params["w1_i8"], params["w1_scale"], params["b1"], params["w2"])

    # Tiny tail (fuses into one small XLA op under jit): cross-half reduce,
    # bias, ReLU, fused (128, 3k) GMM head.  No activation on the heads,
    # matching the reference.
    h2 = jnp.maximum(jnp.sum(partial_h2, axis=0) + params["b2"], 0.0)
    out = h2 @ params["w3"] + params["b3"]
    mu = out[:, :K_MIX]
    cov = out[:, K_MIX:2 * K_MIX]
    logp = out[:, 2 * K_MIX:]
    return mu, cov, logp


def mapping_model_gmm_ref(latent, params):
    """Matched-precision JAX reference (same int8 W1 / bf16 x & W2, f32 acc)."""
    acc = jnp.dot(latent.astype(jnp.bfloat16),
                  params["w1_i8"].astype(jnp.bfloat16),
                  preferred_element_type=jnp.float32)
    h1 = jnp.maximum(acc * params["w1_scale"] + params["b1"], 0.0)
    h2 = jnp.dot(h1.astype(jnp.bfloat16), params["w2"],
                 preferred_element_type=jnp.float32)
    h2 = jnp.maximum(h2 + params["b2"], 0.0)
    out = h2 @ params["w3"] + params["b3"]
    return out[:, :K_MIX], out[:, K_MIX:2 * K_MIX], out[:, 2 * K_MIX:]


def mapping_model_gmm_ref_f32(latent, params_f32):
    """Full-f32 reference matching the original PyTorch semantics."""
    h1 = jnp.maximum(latent @ params_f32["w1"] + params_f32["b1"], 0.0)
    h2 = jnp.maximum(h1 @ params_f32["w2"] + params_f32["b2"], 0.0)
    out = h2 @ params_f32["w3"] + params_f32["b3"]
    return out[:, :K_MIX], out[:, K_MIX:2 * K_MIX], out[:, 2 * K_MIX:]


def init_params(key):
    """torch.nn.Linear-style init U(-1/sqrt(fan_in), 1/sqrt(fan_in)); returns
    (kernel params with int8 W1 / bf16 W2, full-f32 params for accuracy check)."""
    def linear(k, fan_in, fan_out):
        kw, kb = jax.random.split(k)
        bound = fan_in ** -0.5
        w = jax.random.uniform(kw, (fan_in, fan_out), jnp.float32, -bound, bound)
        bb = jax.random.uniform(kb, (1, fan_out), jnp.float32, -bound, bound)
        return w, bb

    keys = jax.random.split(key, 5)
    w1, b1 = linear(keys[0], D_IN, D_H1)
    w2, b2 = linear(keys[1], D_H1, D_H2)
    w3a, b3a = linear(keys[2], D_H2, K_MIX)
    w3b, b3b = linear(keys[3], D_H2, K_MIX)
    w3c, b3c = linear(keys[4], D_H2, K_MIX)
    # Fuse the three heads into a single (128, 3k) matmul.
    w3 = jnp.concatenate([w3a, w3b, w3c], axis=1)
    b3 = jnp.concatenate([b3a, b3b, b3c], axis=1)

    # Per-output-channel symmetric int8 quantization of the streamed W1.
    w1_scale = jnp.maximum(jnp.max(jnp.abs(w1), axis=0, keepdims=True), 1e-8) / 127.0
    w1_i8 = jnp.clip(jnp.round(w1 / w1_scale), -127, 127).astype(jnp.int8)

    params = {
        "w1_i8": w1_i8, "w1_scale": w1_scale, "b1": b1,
        "w2": w2.astype(jnp.bfloat16), "b2": b2,
        "w3": w3, "b3": b3,
    }
    params_f32 = {"w1": w1, "b1": b1, "w2": w2, "b2": b2, "w3": w3, "b3": b3}
    return params, params_f32


class SlamNet:
    """JAX/Pallas port of the (mostly empty) PyTorch SlamNet."""

    def __init__(self, params):
        self.params = params

    def forward(self, latent_local_map):
        # The PyTorch forward() is `pass`; expose the only well-defined
        # sub-model (the GMM mapping head) as the forward hot path.
        return self.mapping_model_gmm(latent_local_map, K_MIX)

    def mapping_model_gmm(self, latent_local_map, k):
        assert k == K_MIX
        return mapping_model_gmm_pallas(latent_local_map, self.params)

    # TODO(synk): mapping_model_latent_local / mapping_model / observation_model
    # are not translatable as written (undefined CoordConv, inconsistent shapes).


if __name__ == "__main__":
    key = jax.random.PRNGKey(0)
    k_in, k_params = jax.random.split(key)

    # Flattened latent local map, as consumed by mapping_model_gmm
    # (16*16*16 = 4096 features per sample).
    latent = jax.random.normal(k_in, (B, D_IN), jnp.float32)
    params, params_f32 = init_params(k_params)

    net = SlamNet(params)
    mu, cov, logp = net.forward(latent)
    jax.block_until_ready((mu, cov, logp))

    # 1) Tight check vs the matched-precision (int8 W1 / bf16) JAX reference:
    #    validates the Pallas kernel itself.
    mu_r, cov_r, logp_r = mapping_model_gmm_ref(latent, params)
    for got, want in ((mu, mu_r), (cov, cov_r), (logp, logp_r)):
        assert got.shape == (B, K_MIX)
        assert jnp.allclose(got, want, atol=1e-2, rtol=1e-2), "mismatch vs matched reference"

    # 2) Loose check vs the full-f32 reference: validates that the int8/bf16
    #    weight-storage trade-off stays close to the original f32 semantics.
    out_pallas = jnp.concatenate([mu, cov, logp], axis=1)
    mu_f, cov_f, logp_f = mapping_model_gmm_ref_f32(latent, params_f32)
    out_f32 = jnp.concatenate([mu_f, cov_f, logp_f], axis=1)
    rel_err = jnp.linalg.norm(out_pallas - out_f32) / (jnp.linalg.norm(out_f32) + 1e-6)
    assert rel_err < 0.1, f"quantized output drifted too far from f32 reference: {rel_err}"

    print("KERNEL_OK")
</pallas_src>

<mosaic_0001>
module attributes {stable_mosaic.version = 11 : i64} {
  func.func @_gmm_mlp_kernel(%arg0: i32, %arg1: memref<2x4096xbf16, #tpu.memory_space<vmem>>, %arg2: memref<4096x512xi8, #tpu.memory_space<vmem>>, %arg3: memref<1x512xf32, #tpu.memory_space<vmem>>, %arg4: memref<1x512xf32, #tpu.memory_space<vmem>>, %arg5: memref<512x128xbf16, #tpu.memory_space<vmem>>, %arg6: memref<1x2x128xf32, #tpu.memory_space<vmem>>) attributes {dimension_semantics = [#tpu.dimension_semantics<parallel>], iteration_bounds = array<i64: 2>, scalar_prefetch = 0 : i64, scratch_operands = 0 : i64, tpu.core_type = #tpu.core_type<tc>, window_params = [{pipeline_mode = #tpu.pipeline_mode<synchronous>, transform_indices = @transform_0, window_bounds = array<i64: 2, 4096>}, {transform_indices = @transform_1, window_bounds = array<i64: 4096, 512>}, {transform_indices = @transform_2, window_bounds = array<i64: 1, 512>}, {transform_indices = @transform_3, window_bounds = array<i64: 1, 512>}, {transform_indices = @transform_4, window_bounds = array<i64: 512, 128>}, {transform_indices = @transform_5, window_bounds = array<i64: 1, 2, 128>}]} {
    %c0 = arith.constant 0 : index
    %c0_0 = arith.constant 0 : index
    %0 = vector.load %arg1[%c0, %c0_0] : memref<2x4096xbf16, #tpu.memory_space<vmem>>, vector<2x4096xbf16>
    %c0_1 = arith.constant 0 : index
    %c0_2 = arith.constant 0 : index
    %1 = vector.load %arg2[%c0_1, %c0_2] : memref<4096x512xi8, #tpu.memory_space<vmem>>, vector<4096x512xi8>
    %2 = arith.sitofp %1 : vector<4096x512xi8> to vector<4096x512xbf16>
    %cst = arith.constant dense<0.000000e+00> : vector<2x512xf32>
    %3 = tpu.matmul %0, %2, %cst {dimension_numbers = #tpu.dot_dimension_numbers<[1], [0], [0], [1], [0, 0, 1, 1], [], []>} : vector<2x4096xbf16>, vector<4096x512xbf16>, vector<2x512xf32> -> vector<2x512xf32>
    %c0_3 = arith.constant 0 : index
    %c0_4 = arith.constant 0 : index
    %4 = vector.load %arg3[%c0_3, %c0_4] : memref<1x512xf32, #tpu.memory_space<vmem>>, vector<1x512xf32>
    %5 = vector.broadcast %4 : vector<1x512xf32> to vector<2x512xf32>
    %6 = arith.mulf %3, %5 : vector<2x512xf32>
    %c0_5 = arith.constant 0 : index
    %c0_6 = arith.constant 0 : index
    %7 = vector.load %arg4[%c0_5, %c0_6] : memref<1x512xf32, #tpu.memory_space<vmem>>, vector<1x512xf32>
    %8 = vector.broadcast %7 : vector<1x512xf32> to vector<2x512xf32>
    %9 = arith.addf %6, %8 : vector<2x512xf32>
    %cst_7 = arith.constant 0.000000e+00 : f32
    %10 = vector.broadcast %cst_7 : f32 to vector<2x512xf32>
    %11 = arith.maximumf %9, %10 : vector<2x512xf32>
    %12 = arith.truncf %11 : vector<2x512xf32> to vector<2x512xbf16>
    %c0_8 = arith.constant 0 : index
    %c0_9 = arith.constant 0 : index
    %13 = vector.load %arg5[%c0_8, %c0_9] : memref<512x128xbf16, #tpu.memory_space<vmem>>, vector<512x128xbf16>
    %cst_10 = arith.constant dense<0.000000e+00> : vector<2x128xf32>
    %14 = tpu.matmul %12, %13, %cst_10 {dimension_numbers = #tpu.dot_dimension_numbers<[1], [0], [0], [1], [0, 0, 1, 1], [], []>} : vector<2x512xbf16>, vector<512x128xbf16>, vector<2x128xf32> -> vector<2x128xf32>
    %15 = vector.shape_cast %14 : vector<2x128xf32> to vector<1x2x128xf32>
    %c0_11 = arith.constant 0 : index
    %c0_12 = arith.constant 0 : index
    %c0_13 = arith.constant 0 : index
    %16 = vector.load %arg6[%c0_11, %c0_12, %c0_13] : memref<1x2x128xf32, #tpu.memory_space<vmem>>, vector<1x2x128xf32>
    tpu.vector_store %arg6[%c0_11, %c0_12, %c0_13], %15 {strides = array<i32>} : memref<1x2x128xf32, #tpu.memory_space<vmem>>, vector<1x2x128xf32>,
    return
  }
  func.func @transform_0(%arg0: i32) -> (i32, i32) {
    %c0_i32 = arith.constant 0 : i32
    %c0_i32_0 = arith.constant 0 : i32
    %c0_i32_1 = arith.constant 0 : i32
    return %c0_i32, %c0_i32_0 : i32, i32
  }
  func.func @transform_1(%arg0: i32) -> (i32, i32) {
    %c0_i32 = arith.constant 0 : i32
    %c0_i32_0 = arith.constant 0 : i32
    return %c0_i32, %arg0 : i32, i32
  }
  func.func @transform_2(%arg0: i32) -> (i32, i32) {
    %c0_i32 = arith.constant 0 : i32
    %c0_i32_0 = arith.constant 0 : i32
    return %c0_i32, %arg0 : i32, i32
  }
  func.func @transform_3(%arg0: i32) -> (i32, i32) {
    %c0_i32 = arith.constant 0 : i32
    %c0_i32_0 = arith.constant 0 : i32
    return %c0_i32, %arg0 : i32, i32
  }
  func.func @transform_4(%arg0: i32) -> (i32, i32) {
    %c0_i32 = arith.constant 0 : i32
    %c0_i32_0 = arith.constant 0 : i32
    return %arg0, %c0_i32 : i32, i32
  }
  func.func @transform_5(%arg0: i32) -> (i32, i32, i32) {
    %c0_i32 = arith.constant 0 : i32
    %c0_i32_0 = arith.constant 0 : i32
    %c0_i32_1 = arith.constant 0 : i32
    return %arg0, %c0_i32, %c0_i32_0 : i32, i32, i32
  }
}

</mosaic_0001>

<llo_original>
// kernel: mapping_model_gmm_pallas.1
$region0: #{mapping_model_gmm_pallas.1}
  #allocation0 [shape = 'u32[]', space=smem, size = 0x4, offset = 0x4, fixed_abs, tag = 'smem constant byte address 0x4 - core index']
  #allocation1 [shape = 'u32[144,128]{1,0:T(1,128)}', space=vmem, size = 0x12000, scoped, tag = 'internal scratch']
  %s0 = inlined_call_operand.vmem [shape: bf16[2,4096], index: 0, kind: input, shape index: {}]
  %s1 = inlined_call_operand.hbm [shape: s8[4096,1024], index: 1, kind: input, shape index: {}]
  %s2 = inlined_call_operand.hbm [shape: f32[1,1024], index: 2, kind: input, shape index: {}]
  %s3 = inlined_call_operand.hbm [shape: f32[1,1024], index: 3, kind: input, shape index: {}]
  %s4 = inlined_call_operand.hbm [shape: bf16[1024,128], index: 4, kind: input, shape index: {}]
  %s5 = inlined_call_operand.vmem [shape: f32[2,2,128], index: 5, kind: output, shape index: {}]
  %s6 = sld [smem:[#allocation0]]
  $region69: #{mapping_model_gmm_pallas.1} parent=0
    _
  %s8 = ssub.s32 1, %s6
  %s9 = scalar_select 0, %s8, %s6
  $region1: #{mapping_model_gmm_pallas.1} parent=0
    #allocation2 [shape = 'u8[4194304]{0}', space=vmem, size = 0x400000, scoped, tag = 'input window, operand 1']
    #allocation3 [shape = 's32[2]{0}', space=sflag, size = 0x8, scoped, tag = 'scoped memory for mapping_model_gmm_pallas.1']
    #allocation4 [shape = 'u8[4096]{0}', space=vmem, size = 0x1000, scoped, tag = 'input window, operand 2']
    #allocation5 [shape = 's32[2]{0}', space=sflag, size = 0x8, scoped, tag = 'scoped memory for mapping_model_gmm_pallas.1']
    #allocation6 [shape = 'u8[4096]{0}', space=vmem, size = 0x1000, scoped, tag = 'input window, operand 3']
    #allocation7 [shape = 'u8[262144]{0}', space=vmem, size = 0x40000, scoped, tag = 'input window, operand 4']
    #allocation8 [shape = 's32[2]{0}', space=sflag, size = 0x8, scoped, tag = 'scoped memory for mapping_model_gmm_pallas.1']
    %10 = vsyncpa [#allocation3], 0
    %s11 = scalar_lea.sflag [#allocation3], 1
    %12 = vsyncpa %s11, 0
    %13 = vsyncpa [#allocation5], 0
    %s14 = scalar_lea.sflag [#allocation5], 1
    %15 = vsyncpa %s14, 0
    %16 = vsyncpa [#allocation8], 0
    %s17 = scalar_lea.sflag [#allocation8], 1
    %18 = vsyncpa %s17, 0
    loop: start=0, step=1, limit=4
    $region2: #{mapping_model_gmm_pallas.1} parent=1 // loop_pre_header
      _
    $region3: #{mapping_model_gmm_pallas.1} parent=1 // loop_header
      %s20 = sphi 0, %s24
      %p21 = scmp.ge.s32.totalorder %s20, 4
      %s28 = sphi 0, %s28
      %s30 = sphi 0, %s28
      %s31 = sphi 0, %s30
      %s45 = sphi 0, %s31
      %s51 = sphi 0, %s53
      %s54 = sphi 0, %s51
      %s55 = sphi 0, %s54
      %s71 = sphi 0, %s55
      %s77 = sphi 0, %s79
      %s80 = sphi 0, %s77
      %s81 = sphi 0, %s80
      %s97 = sphi 0, %s81
      %s103 = sphi 0, %s105
      %s106 = sphi 0, %s103
      %s107 = sphi 0, %s106
      %s123 = sphi 0, %s107
      %s129 = sphi 0, %s131
      %s132 = sphi 0, %s129
      %s133 = sphi 0, %s132
      %s149 = sphi 0, %s133
      %s155 = sphi 0, %s157
      %s158 = sphi 0, %s155
      %s159 = sphi 0, %s158
      %s175 = sphi 0, %s159
    $region4: #{mapping_model_gmm_pallas.1} parent=1 // loop_header_branch
      %23 = sbr.rel (%p21) target = $region8
    $region5: #{mapping_model_gmm_pallas.1} parent=1 // loop_body
      %s25 = ssub.s32 %s20, 1
      %s26 = ssub.s32 %s20, 2
      %s27 = sadd.s32 %s20, 1
      %s29 = sadd.s32 %s28, 1
      %p32 = scmp.eq.s32.totalorder %s20, 1
      %p33 = scmp.ne.s32.totalorder %s28, %s30
      %p34 = scmp.eq.s32.totalorder %s20, 0
      %p35 = por %p33, %p34
      %p36 = scmp.ne.s32.totalorder %s28, %s30
      %p37 = scmp.eq.s32.totalorder %s25, 1
      %p38 = por %p36, %p37
      %p39 = scmp.ne.s32.totalorder %s30, %s31
      %p40 = scmp.eq.s32.totalorder %s25, 0
      %p41 = por %p39, %p40
      %p42 = scmp.ne.s32.totalorder %s30, %s31
      %p43 = scmp.eq.s32.totalorder %s26, 1
      %p44 = por %p42, %p43
      %p46 = scmp.ne.s32.totalorder %s31, %s45
      %p47 = scmp.eq.s32.totalorder %s26, 0
      %p48 = por %p46, %p47
      %s49 = ssub.s32 %s20, %s27
      %p50 = scmp.eq.s32.totalorder %s49, 0
      %s52 = sadd.s32 %s51, 1
      %s53 = scalar_select %p50, %s51, %s52
      %p56 = pneg %p50
      %p57 = scmp.eq.s32.totalorder %s20, 1
      %p58 = por %p56, %p57
      %p59 = scmp.ne.s32.totalorder %s51, %s54
      %p60 = scmp.eq.s32.totalorder %s20, 0
      %p61 = por %p59, %p60
      %p62 = scmp.ne.s32.totalorder %s51, %s54
      %p63 = scmp.eq.s32.totalorder %s25, 1
      %p64 = por %p62, %p63
      %p65 = scmp.ne.s32.totalorder %s54, %s55
      %p66 = scmp.eq.s32.totalorder %s25, 0
      %p67 = por %p65, %p66
      %p68 = scmp.ne.s32.totalorder %s54, %s55
      %p69 = scmp.eq.s32.totalorder %s26, 1
      %p70 = por %p68, %p69
      %p72 = scmp.ne.s32.totalorder %s55, %s71
      %p73 = scmp.eq.s32.totalorder %s26, 0
      %p74 = por %p72, %p73
      %s75 = ssub.s32 %s20, %s27
      %p76 = scmp.eq.s32.totalorder %s75, 0
      %s78 = sadd.s32 %s77, 1
      %s79 = scalar_select %p76, %s77, %s78
      %p82 = pneg %p76
      %p83 = scmp.eq.s32.totalorder %s20, 1
      %p84 = por %p82, %p83
      %p85 = scmp.ne.s32.totalorder %s77, %s80
      %p86 = scmp.eq.s32.totalorder %s20, 0
      %p87 = por %p85, %p86
      %p88 = scmp.ne.s32.totalorder %s77, %s80
      %p89 = scmp.eq.s32.totalorder %s25, 1
      %p90 = por %p88, %p89
      %p91 = scmp.ne.s32.totalorder %s80, %s81
      %p92 = scmp.eq.s32.totalorder %s25, 0
      %p93 = por %p91, %p92
      %p94 = scmp.ne.s32.totalorder %s80, %s81
      %p95 = scmp.eq.s32.totalorder %s26, 1
      %p96 = por %p94, %p95
      %p98 = scmp.ne.s32.totalorder %s81, %s97
      %p99 = scmp.eq.s32.totalorder %s26, 0
      %p100 = por %p98, %p99
      %s101 = ssub.s32 %s20, %s27
      %p102 = scmp.eq.s32.totalorder %s101, 0
      %s104 = sadd.s32 %s103, 1
      %s105 = scalar_select %p102, %s103, %s104
      %p108 = pneg %p102
      %p109 = scmp.eq.s32.totalorder %s20, 1
      %p110 = por %p108, %p109
      %p111 = scmp.ne.s32.totalorder %s103, %s106
      %p112 = scmp.eq.s32.totalorder %s20, 0
      %p113 = por %p111, %p112
      %p114 = scmp.ne.s32.totalorder %s103, %s106
      %p115 = scmp.eq.s32.totalorder %s25, 1
      %p116 = por %p114, %p115
      %p117 = scmp.ne.s32.totalorder %s106, %s107
      %p118 = scmp.eq.s32.totalorder %s25, 0
      %p119 = por %p117, %p118
      %p120 = scmp.ne.s32.totalorder %s106, %s107
      %p121 = scmp.eq.s32.totalorder %s26, 1
      %p122 = por %p120, %p121
      %p124 = scmp.ne.s32.totalorder %s107, %s123
      %p125 = scmp.eq.s32.totalorder %s26, 0
      %p126 = por %p124, %p125
      %s127 = ssub.s32 %s20, %s27
      %p128 = scmp.eq.s32.totalorder %s127, 0
      %s130 = sadd.s32 %s129, 1
      %s131 = scalar_select %p128, %s129, %s130
      %p134 = pneg %p128
      %p135 = scmp.eq.s32.totalorder %s20, 1
      %p136 = por %p134, %p135
      %p137 = scmp.ne.s32.totalorder %s129, %s132
      %p138 = scmp.eq.s32.totalorder %s20, 0
      %p139 = por %p137, %p138
      %p140 = scmp.ne.s32.totalorder %s129, %s132
      %p141 = scmp.eq.s32.totalorder %s25, 1
      %p142 = por %p140, %p141
      %p143 = scmp.ne.s32.totalorder %s132, %s133
      %p144 = scmp.eq.s32.totalorder %s25, 0
      %p145 = por %p143, %p144
      %p146 = scmp.ne.s32.totalorder %s132, %s133
      %p147 = scmp.eq.s32.totalorder %s26, 1
      %p148 = por %p146, %p147
      %p150 = scmp.ne.s32.totalorder %s133, %s149
      %p151 = scmp.eq.s32.totalorder %s26, 0
      %p152 = por %p150, %p151
      %s153 = ssub.s32 %s20, %s27
      %p154 = scmp.eq.s32.totalorder %s153, 0
      %s156 = sadd.s32 %s155, 1
      %s157 = scalar_select %p154, %s155, %s156
      %p160 = pneg %p154
      %p161 = scmp.eq.s32.totalorder %s20, 1
      %p162 = por %p160, %p161
      %p163 = scmp.ne.s32.totalorder %s155, %s158
      %p164 = scmp.eq.s32.totalorder %s20, 0
      %p165 = por %p163, %p164
      %p166 = scmp.ne.s32.totalorder %s155, %s158
      %p167 = scmp.eq.s32.totalorder %s25, 1
      %p168 = por %p166, %p167
      %p169 = scmp.ne.s32.totalorder %s158, %s159
      %p170 = scmp.eq.s32.totalorder %s25, 0
      %p171 = por %p169, %p170
      %p172 = scmp.ne.s32.totalorder %s158, %s159
      %p173 = scmp.eq.s32.totalorder %s26, 1
      %p174 = por %p172, %p173
      %p176 = scmp.ne.s32.totalorder %s159, %s175
      %p177 = scmp.eq.s32.totalorder %s26, 0
      %p178 = por %p176, %p177
      %p179 = scmp.le.s32.totalorder 1, %s20
      %p180 = scmp.lt.s32.totalorder %s20, 3
      %p181 = pnand %p179, %p180
      %p182 = pneg %p181
      // Predicated region
      $region9: #{mapping_model_gmm_pallas.1} parent=5 // pred_check
        _
      $region10: #{mapping_model_gmm_pallas.1} parent=5 // pred_check_branch
        %184 = sbr.rel (%p181) target = $region12
      $region11: #{mapping_model_gmm_pallas.1} parent=5 // pred_region
        %s185 = ssub.s32 %s20, 1
        // Predicated region
        $region13: #{mapping_model_gmm_pallas.1} parent=11 // pred_check
          %p186 = pneg %p41
        $region14: #{mapping_model_gmm_pallas.1} parent=11 // pred_check_branch
          %188 = sbr.rel (%p186) target = $region16
        $region15: #{mapping_model_gmm_pallas.1} parent=11 // pred_region
          _
        $region16: #{mapping_model_gmm_pallas.1} parent=11 // pred_fallthru
          _
      $region12: #{mapping_model_gmm_pallas.1} parent=5 // pred_fallthru
        _
      %p189 = scmp.lt.s32.totalorder %s20, 2
      // Predicated region
      $region17: #{mapping_model_gmm_pallas.1} parent=5 // pred_check
        %p190 = pneg %p189
      $region18: #{mapping_model_gmm_pallas.1} parent=5 // pred_check_branch
        %192 = sbr.rel (%p190) target = $region20
      $region19: #{mapping_model_gmm_pallas.1} parent=5 // pred_region
        // Predicated region
        $region21: #{mapping_model_gmm_pallas.1} parent=19 // pred_check
          %p193 = pneg %p61
        $region22: #{mapping_model_gmm_pallas.1} parent=19 // pred_check_branch
          %195 = sbr.rel (%p193) target = $region24
        $region23: #{mapping_model_gmm_pallas.1} parent=19 // pred_region
          %s196 = sand.u32 %s51, 1
          %s197 = scalar_lea.sflag [#allocation3], %s196
          %s198 = sand.u32 %s51, 1
          %s199 = smul.addr %s198, 4096
          %s200 = scalar_lea.vmem [#allocation2], %s199
          %s201 = smul.u32 4, %s20
          %s203 = ssub.s32 65536, 65536
          %204 = vsyncadd %s197, %s203
          %s205 = smul.addr %s201, 128
          %s206 = scalar_lea.hbm %s1, %s205
          %s207 = sshll.u32 %s200, 4
          %s208 = int_to_ptr.vmem [resolvable:$true] %s207
          %213 = dma.hbm_to_vmem [thread:$0]  %s206, 65536, %s208, %s197, 1024, 512, 32
        $region24: #{mapping_model_gmm_pallas.1} parent=19 // pred_fallthru
          _
        // Predicated region
        $region25: #{mapping_model_gmm_pallas.1} parent=19 // pred_check
          %p214 = pneg %p87
        $region26: #{mapping_model_gmm_pallas.1} parent=19 // pred_check_branch
          %216 = sbr.rel (%p214) target = $region28
        $region27: #{mapping_model_gmm_pallas.1} parent=19 // pred_region
          %s217 = sand.u32 %s20, 1
          %s218 = scalar_lea.sflag [#allocation5], %s217
          %s219 = sand.u32 %s77, 1
          %s220 = smul.addr %s219, 4
          %s221 = scalar_lea.vmem [#allocation4], %s220
          %s222 = smul.u32 4, %s20
          %s224 = ssub.s32 64, 64
          %225 = vsyncadd %s218, %s224
          %s226 = smul.addr %s222, 16
          %s227 = scalar_lea.hbm %s2, %s226
          %s229 = sshll.u32 %s221, 4
          %s230 = int_to_ptr.vmem [resolvable:$true] %s229
          %232 = dma.hbm_to_vmem [thread:$0]  %s227, 64, %s230, %s218
        $region28: #{mapping_model_gmm_pallas.1} parent=19 // pred_fallthru
          _
        // Predicated region
        $region29: #{mapping_model_gmm_pallas.1} parent=19 // pred_check
          %p233 = pneg %p113
        $region30: #{mapping_model_gmm_pallas.1} parent=19 // pred_check_branch
          %235 = sbr.rel (%p233) target = $region32
        $region31: #{mapping_model_gmm_pallas.1} parent=19 // pred_region
          %s236 = sand.u32 %s20, 1
          %s237 = scalar_lea.sflag [#allocation5], %s236
          %s238 = sand.u32 %s103, 1
          %s239 = smul.addr %s238, 4
          %s240 = scalar_lea.vmem [#allocation6], %s239
          %s241 = smul.u32 4, %s20
          %s243 = ssub.s32 64, 64
          %244 = vsyncadd %s237, %s243
          %s245 = smul.addr %s241, 16
          %s246 = scalar_lea.hbm %s3, %s245
          %s248 = sshll.u32 %s240, 4
          %s249 = int_to_ptr.vmem [resolvable:$true] %s248
          %251 = dma.hbm_to_vmem [thread:$0]  %s246, 64, %s249, %s237
        $region32: #{mapping_model_gmm_pallas.1} parent=19 // pred_fallthru
          _
        // Predicated region
        $region33: #{mapping_model_gmm_pallas.1} parent=19 // pred_check
          %p252 = pneg %p139
        $region34: #{mapping_model_gmm_pallas.1} parent=19 // pred_check_branch
          %254 = sbr.rel (%p252) target = $region36
        $region35: #{mapping_model_gmm_pallas.1} parent=19 // pred_region
          %s255 = sand.u32 %s129, 1
          %s256 = scalar_lea.sflag [#allocation8], %s255
          %s257 = sand.u32 %s129, 1
          %s258 = smul.addr %s257, 256
          %s259 = scalar_lea.vmem [#allocation7], %s258
          %s260 = smul.u32 64, %s20
          %s262 = ssub.s32 4096, 4096
          %263 = vsyncadd %s256, %s262
          %s264 = smul.addr %s260, 64
          %s265 = scalar_lea.hbm %s4, %s264
          %s266 = sshll.u32 %s259, 4
          %s267 = int_to_ptr.vmem [resolvable:$true] %s266
          %272 = dma.hbm_to_vmem [thread:$0]  %s265, 4096, %s267, %s256, 64, 64, 4
        $region36: #{mapping_model_gmm_pallas.1} parent=19 // pred_fallthru
          _
      $region20: #{mapping_model_gmm_pallas.1} parent=5 // pred_fallthru
        _
      %p273 = scmp.le.s32.totalorder 1, %s20
      %p274 = scmp.lt.s32.totalorder %s20, 3
      %p275 = pnand %p273, %p274
      %p276 = pneg %p275
      // Predicated region
      $region37: #{mapping_model_gmm_pallas.1} parent=5 // pred_check
        _
      $region38: #{mapping_model_gmm_pallas.1} parent=5 // pred_check_branch
        %278 = sbr.rel (%p275) target = $region40
      $region39: #{mapping_model_gmm_pallas.1} parent=5 // pred_region
        %s279 = ssub.s32 %s20, 1
        %s280 = sand.u32 %s54, 1
        %s281 = scalar_lea.sflag [#allocation3], %s280
        %s282 = sand.u32 %s54, 1
        %s283 = smul.addr %s282, 4096
        %s284 = scalar_lea.vmem [#allocation2], %s283
        // Predicated region
        $region41: #{mapping_model_gmm_pallas.1} parent=39 // pred_check
          %p285 = pneg %p67
        $region42: #{mapping_model_gmm_pallas.1} parent=39 // pred_check_branch
          %287 = sbr.rel (%p285) target = $region44
        $region43: #{mapping_model_gmm_pallas.1} parent=39 // pred_region
          %288 = dma.done %s281, 65536
        $region44: #{mapping_model_gmm_pallas.1} parent=39 // pred_fallthru
          _
        %s289 = sand.u32 %s25, 1
        %s290 = scalar_lea.sflag [#allocation5], %s289
        %s291 = sand.u32 %s80, 1
        %s292 = smul.addr %s291, 4
        %s293 = scalar_lea.vmem [#allocation4], %s292
        // Predicated region
        $region45: #{mapping_model_gmm_pallas.1} parent=39 // pred_check
          %p294 = pneg %p93
        $region46: #{mapping_model_gmm_pallas.1} parent=39 // pred_check_branch
          %296 = sbr.rel (%p294) target = $region48
        $region47: #{mapping_model_gmm_pallas.1} parent=39 // pred_region
          %297 = dma.done %s290, 64
        $region48: #{mapping_model_gmm_pallas.1} parent=39 // pred_fallthru
          _
        %s298 = sand.u32 %s25, 1
        %s299 = scalar_lea.sflag [#allocation5], %s298
        %s300 = sand.u32 %s106, 1
        %s301 = smul.addr %s300, 4
        %s302 = scalar_lea.vmem [#allocation6], %s301
        // Predicated region
        $region49: #{mapping_model_gmm_pallas.1} parent=39 // pred_check
          %p303 = pneg %p119
        $region50: #{mapping_model_gmm_pallas.1} parent=39 // pred_check_branch
          %305 = sbr.rel (%p303) target = $region52
        $region51: #{mapping_model_gmm_pallas.1} parent=39 // pred_region
          %306 = dma.done %s299, 64
        $region52: #{mapping_model_gmm_pallas.1} parent=39 // pred_fallthru
          _
        %s307 = sand.u32 %s132, 1
        %s308 = scalar_lea.sflag [#allocation8], %s307
        %s309 = sand.u32 %s132, 1
        %s310 = smul.addr %s309, 256
        %s311 = scalar_lea.vmem [#allocation7], %s310
        // Predicated region
        $region53: #{mapping_model_gmm_pallas.1} parent=39 // pred_check
          %p312 = pneg %p145
        $region54: #{mapping_model_gmm_pallas.1} parent=39 // pred_check_branch
          %314 = sbr.rel (%p312) target = $region56
        $region55: #{mapping_model_gmm_pallas.1} parent=39 // pred_region
          %315 = dma.done %s308, 4096
        $region56: #{mapping_model_gmm_pallas.1} parent=39 // pred_fallthru
          _
        %p316 = pneg %p41
        %p317 = pneg %p38
        %s318 = sand.u32 %s54, 1
        %s319 = scalar_lea.sflag [#allocation3], %s318
        %s320 = sand.u32 %s54, 1
        %s321 = smul.addr %s320, 4096
        %s322 = scalar_lea.vmem [#allocation2], %s321
        %p323 = pneg %p67
        %p324 = pneg %p64
        %s325 = sand.u32 %s25, 1
        %s326 = scalar_lea.sflag [#allocation5], %s325
        %s327 = sand.u32 %s80, 1
        %s328 = smul.addr %s327, 4
        %s329 = scalar_lea.vmem [#allocation4], %s328
        %p330 = pneg %p93
        %p331 = pneg %p90
        %s332 = sand.u32 %s25, 1
        %s333 = scalar_lea.sflag [#allocation5], %s332
        %s334 = sand.u32 %s106, 1
        %s335 = smul.addr %s334, 4
        %s336 = scalar_lea.vmem [#allocation6], %s335
        %p337 = pneg %p119
        %p338 = pneg %p116
        %s339 = sand.u32 %s132, 1
        %s340 = scalar_lea.sflag [#allocation8], %s339
        %s341 = sand.u32 %s132, 1
        %s342 = smul.addr %s341, 256
        %s343 = scalar_lea.vmem [#allocation7], %s342
        %p344 = pneg %p145
        %p345 = pneg %p142
        %p346 = pneg %p171
        %p347 = pneg %p168
        %p348 = scmp.lt.s32.totalorder %s25, 1
        %s349 = scalar_select %p348, %s25, 1
        %s350 = smul.addr %s349, 2
        %s351 = scalar_lea.vmem %s5, %s350
        %s352 = smul.u32 4, %s25
        %s353 = smul.u32 4, %s25
        %s354 = smul.u32 4, %s25
        %s355 = smul.u32 64, %s25
        %p356 = scmp.lt.s32.totalorder %s25, 1
        %s357 = scalar_select %p356, %s25, 1
        %s358 = smul.addr %s357, 2
        %s359 = scalar_lea.vmem %s5, %s358
        %v361 = vld [vmem:[%s0] sm:$0xff]
        %v362 = vld [vmem:[%s0 + $0x8] sm:$0xff]
        %v363 = vld [vmem:[%s0 + $0x10] sm:$0xff]
        %v364 = vld [vmem:[%s0 + $0x18] sm:$0xff]
        %v365 = vld [vmem:[%s284] sm:$0xff]
        %v366 = vld [vmem:[%s284 + $0x8] sm:$0xff]
        %v367 = vld [vmem:[%s284 + $0x10] sm:$0xff]
        %v368 = vld [vmem:[%s284 + $0x18] sm:$0xff]
        %v369 = vld [vmem:[%s284 + $0x20] sm:$0xff]
        %v370 = vld [vmem:[%s284 + $0x28] sm:$0xff]
        %v371 = vld [vmem:[%s284 + $0x30] sm:$0xff]
        %v372 = vld [vmem:[%s284 + $0x38] sm:$0xff]
        %v373 = vld [vmem:[%s284 + $0x40] sm:$0xff]
        %v374 = vld [vmem:[%s284 + $0x48] sm:$0xff]
        %v375 = vld [vmem:[%s284 + $0x50] sm:$0xff]
        %v376 = vld [vmem:[%s284 + $0x58] sm:$0xff]
        %v377 = vld [vmem:[%s284 + $0x60] sm:$0xff]
        %v378 = vld [vmem:[%s284 + $0x68] sm:$0xff]
        %v379 = vld [vmem:[%s284 + $0x70] sm:$0xff]
        %v380 = vld [vmem:[%s284 + $0x78] sm:$0xff]
        %v381 = vld [vmem:[%s284 + $0x80] sm:$0xff]
        %v382 = vld [vmem:[%s284 + $0x88] sm:$0xff]
        %v383 = vld [vmem:[%s284 + $0x90] sm:$0xff]
        %v384 = vld [vmem:[%s284 + $0x98] sm:$0xff]
        %v385 = vld [vmem:[%s284 + $0xa0] sm:$0xff]
        %v386 = vld [vmem:[%s284 + $0xa8] sm:$0xff]
        %v387 = vld [vmem:[%s284 + $0xb0] sm:$0xff]
        %v388 = vld [vmem:[%s284 + $0xb8] sm:$0xff]
        %v389 = vld [vmem:[%s284 + $0xc0] sm:$0xff]
        %v390 = vld [vmem:[%s284 + $0xc8] sm:$0xff]
        %v391 = vld [vmem:[%s284 + $0xd0] sm:$0xff]
        %v392 = vld [vmem:[%s284 + $0xd8] sm:$0xff]
        %v393 = vld [vmem:[%s284 + $0xe0] sm:$0xff]
        %v394 = vld [vmem:[%s284 + $0xe8] sm:$0xff]
        %v395 = vld [vmem:[%s284 + $0xf0] sm:$0xff]
        %v396 = vld [vmem:[%s284 + $0xf8] sm:$0xff]
        %v397 = vld [vmem:[%s284 + $0x100] sm:$0xff]
        %v398 = vld [vmem:[%s284 + $0x108] sm:$0xff]
        %v399 = vld [vmem:[%s284 + $0x110] sm:$0xff]
        %v400 = vld [vmem:[%s284 + $0x118] sm:$0xff]
        %v401 = vld [vmem:[%s284 + $0x120] sm:$0xff]
        %v402 = vld [vmem:[%s284 + $0x128] sm:$0xff]
        %v403 = vld [vmem:[%s284 + $0x130] sm:$0xff]
        %v404 = vld [vmem:[%s284 + $0x138] sm:$0xff]
        %v405 = vld [vmem:[%s284 + $0x140] sm:$0xff]
        %v406 = vld [vmem:[%s284 + $0x148] sm:$0xff]
        %v407 = vld [vmem:[%s284 + $0x150] sm:$0xff]
        %v408 = vld [vmem:[%s284 + $0x158] sm:$0xff]
        %v409 = vld [vmem:[%s284 + $0x160] sm:$0xff]
        %v410 = vld [vmem:[%s284 + $0x168] sm:$0xff]
        %v411 = vld [vmem:[%s284 + $0x170] sm:$0xff]
        %v412 = vld [vmem:[%s284 + $0x178] sm:$0xff]
        %v413 = vld [vmem:[%s284 + $0x180] sm:$0xff]
        %v414 = vld [vmem:[%s284 + $0x188] sm:$0xff]
        %v415 = vld [vmem:[%s284 + $0x190] sm:$0xff]
        %v416 = vld [vmem:[%s284 + $0x198] sm:$0xff]
        %v417 = vld [vmem:[%s284 + $0x1a0] sm:$0xff]
        %v418 = vld [vmem:[%s284 + $0x1a8] sm:$0xff]
        %v419 = vld [vmem:[%s284 + $0x1b0] sm:$0xff]
        %v420 = vld [vmem:[%s284 + $0x1b8] sm:$0xff]
        %v421 = vld [vmem:[%s284 + $0x1c0] sm:$0xff]
        %v422 = vld [vmem:[%s284 + $0x1c8] sm:$0xff]
        %v423 = vld [vmem:[%s284 + $0x1d0] sm:$0xff]
        %v424 = vld [vmem:[%s284 + $0x1d8] sm:$0xff]
        %v425 = vld [vmem:[%s284 + $0x1e0] sm:$0xff]
        %v426 = vld [vmem:[%s284 + $0x1e8] sm:$0xff]
        %v427 = vld [vmem:[%s284 + $0x1f0] sm:$0xff]
        %v428 = vld [vmem:[%s284 + $0x1f8] sm:$0xff]
        %v429 = vld [vmem:[%s284 + $0x200] sm:$0xff]
        %v430 = vld [vmem:[%s284 + $0x208] sm:$0xff]
        %v431 = vld [vmem:[%s284 + $0x210] sm:$0xff]
        %v432 = vld [vmem:[%s284 + $0x218] sm:$0xff]
        %v433 = vld [vmem:[%s284 + $0x220] sm:$0xff]
        %v434 = vld [vmem:[%s284 + $0x228] sm:$0xff]
        %v435 = vld [vmem:[%s284 + $0x230] sm:$0xff]
        %v436 = vld [vmem:[%s284 + $0x238] sm:$0xff]
        %v437 = vld [vmem:[%s284 + $0x240] sm:$0xff]
        %v438 = vld [vmem:[%s284 + $0x248] sm:$0xff]
        %v439 = vld [vmem:[%s284 + $0x250] sm:$0xff]
        %v440 = vld [vmem:[%s284 + $0x258] sm:$0xff]
        %v441 = vld [vmem:[%s284 + $0x260] sm:$0xff]
        %v442 = vld [vmem:[%s284 + $0x268] sm:$0xff]
        %v443 = vld [vmem:[%s284 + $0x270] sm:$0xff]
        %v444 = vld [vmem:[%s284 + $0x278] sm:$0xff]
        %v445 = vld [vmem:[%s284 + $0x280] sm:$0xff]
        %v446 = vld [vmem:[%s284 + $0x288] sm:$0xff]
        %v447 = vld [vmem:[%s284 + $0x290] sm:$0xff]
        %v448 = vld [vmem:[%s284 + $0x298] sm:$0xff]
        %v449 = vld [vmem:[%s284 + $0x2a0] sm:$0xff]
        %v450 = vld [vmem:[%s284 + $0x2a8] sm:$0xff]
        %v451 = vld [vmem:[%s284 + $0x2b0] sm:$0xff]
        %v452 = vld [vmem:[%s284 + $0x2b8] sm:$0xff]
        %v453 = vld [vmem:[%s284 + $0x2c0] sm:$0xff]
        %v454 = vld [vmem:[%s284 + $0x2c8] sm:$0xff]
        %v455 = vld [vmem:[%s284 + $0x2d0] sm:$0xff]
        %v456 = vld [vmem:[%s284 + $0x2d8] sm:$0xff]
        %v457 = vld [vmem:[%s284 + $0x2e0] sm:$0xff]
        %v458 = vld [vmem:[%s284 + $0x2e8] sm:$0xff]
        %v459 = vld [vmem:[%s284 + $0x2f0] sm:$0xff]
        %v460 = vld [vmem:[%s284 + $0x2f8] sm:$0xff]
        %v461 = vld [vmem:[%s284 + $0x300] sm:$0xff]
        %v462 = vld [vmem:[%s284 + $0x308] sm:$0xff]
        %v463 = vld [vmem:[%s284 + $0x310] sm:$0xff]
        %v464 = vld [vmem:[%s284 + $0x318] sm:$0xff]
        %v465 = vld [vmem:[%s284 + $0x320] sm:$0xff]
        %v466 = vld [vmem:[%s284 + $0x328] sm:$0xff]
        %v467 = vld [vmem:[%s284 + $0x330] sm:$0xff]
        %v468 = vld [vmem:[%s284 + $0x338] sm:$0xff]
        %v469 = vld [vmem:[%s284 + $0x340] sm:$0xff]
        %v470 = vld [vmem:[%s284 + $0x348] sm:$0xff]
        %v471 = vld [vmem:[%s284 + $0x350] sm:$0xff]
        %v472 = vld [vmem:[%s284 + $0x358] sm:$0xff]
        %v473 = vld [vmem:[%s284 + $0x360] sm:$0xff]
        %v474 = vld [vmem:[%s284 + $0x368] sm:$0xff]
        %v475 = vld [vmem:[%s284 + $0x370] sm:$0xff]
        %v476 = vld [vmem:[%s284 + $0x378] sm:$0xff]
        %v477 = vld [vmem:[%s284 + $0x380] sm:$0xff]
        %v478 = vld [vmem:[%s284 + $0x388] sm:$0xff]
        %v479 = vld [vmem:[%s284 + $0x390] sm:$0xff]
        %v480 = vld [vmem:[%s284 + $0x398] sm:$0xff]
        %v481 = vld [vmem:[%s284 + $0x3a0] sm:$0xff]
        %v482 = vld [vmem:[%s284 + $0x3a8] sm:$0xff]
        %v483 = vld [vmem:[%s284 + $0x3b0] sm:$0xff]
        %v484 = vld [vmem:[%s284 + $0x3b8] sm:$0xff]
        %v485 = vld [vmem:[%s284 + $0x3c0] sm:$0xff]
        %v486 = vld [vmem:[%s284 + $0x3c8] sm:$0xff]
        %v487 = vld [vmem:[%s284 + $0x3d0] sm:$0xff]
        %v488 = vld [vmem:[%s284 + $0x3d8] sm:$0xff]
        %v489 = vld [vmem:[%s284 + $0x3e0] sm:$0xff]
        %v490 = vld [vmem:[%s284 + $0x3e8] sm:$0xff]
        %v491 = vld [vmem:[%s284 + $0x3f0] sm:$0xff]
        %v492 = vld [vmem:[%s284 + $0x3f8] sm:$0xff]
        %v493 = vld [vmem:[%s284 + $0x400] sm:$0xff]
        %v494 = vld [vmem:[%s284 + $0x408] sm:$0xff]
        %v495 = vld [vmem:[%s284 + $0x410] sm:$0xff]
        %v496 = vld [vmem:[%s284 + $0x418] sm:$0xff]
        %v497 = vld [vmem:[%s284 + $0x420] sm:$0xff]
        %v498 = vld [vmem:[%s284 + $0x428] sm:$0xff]
        %v499 = vld [vmem:[%s284 + $0x430] sm:$0xff]
        %v500 = vld [vmem:[%s284 + $0x438] sm:$0xff]
        %v501 = vld [vmem:[%s284 + $0x440] sm:$0xff]
        %v502 = vld [vmem:[%s284 + $0x448] sm:$0xff]
        %v503 = vld [vmem:[%s284 + $0x450] sm:$0xff]
        %v504 = vld [vmem:[%s284 + $0x458] sm:$0xff]
        %v505 = vld [vmem:[%s284 + $0x460] sm:$0xff]
        %v506 = vld [vmem:[%s284 + $0x468] sm:$0xff]
        %v507 = vld [vmem:[%s284 + $0x470] sm:$0xff]
        %v508 = vld [vmem:[%s284 + $0x478] sm:$0xff]
        %v509 = vld [vmem:[%s284 + $0x480] sm:$0xff]
        %v510 = vld [vmem:[%s284 + $0x488] sm:$0xff]
        %v511 = vld [vmem:[%s284 + $0x490] sm:$0xff]
        %v512 = vld [vmem:[%s284 + $0x498] sm:$0xff]
        %v513 = vld [vmem:[%s284 + $0x4a0] sm:$0xff]
        %v514 = vld [vmem:[%s284 + $0x4a8] sm:$0xff]
        %v515 = vld [vmem:[%s284 + $0x4b0] sm:$0xff]
        %v516 = vld [vmem:[%s284 + $0x4b8] sm:$0xff]
        %v517 = vld [vmem:[%s284 + $0x4c0] sm:$0xff]
        %v518 = vld [vmem:[%s284 + $0x4c8] sm:$0xff]
        %v519 = vld [vmem:[%s284 + $0x4d0] sm:$0xff]
        %v520 = vld [vmem:[%s284 + $0x4d8] sm:$0xff]
        %v521 = vld [vmem:[%s284 + $0x4e0] sm:$0xff]
        %v522 = vld [vmem:[%s284 + $0x4e8] sm:$0xff]
        %v523 = vld [vmem:[%s284 + $0x4f0] sm:$0xff]
        %v524 = vld [vmem:[%s284 + $0x4f8] sm:$0xff]
        %v525 = vld [vmem:[%s284 + $0x500] sm:$0xff]
        %v526 = vld [vmem:[%s284 + $0x508] sm:$0xff]
        %v527 = vld [vmem:[%s284 + $0x510] sm:$0xff]
        %v528 = vld [vmem:[%s284 + $0x518] sm:$0xff]
        %v529 = vld [vmem:[%s284 + $0x520] sm:$0xff]
        %v530 = vld [vmem:[%s284 + $0x528] sm:$0xff]
        %v531 = vld [vmem:[%s284 + $0x530] sm:$0xff]
        %v532 = vld [vmem:[%s284 + $0x538] sm:$0xff]
        %v533 = vld [vmem:[%s284 + $0x540] sm:$0xff]
        %v534 = vld [vmem:[%s284 + $0x548] sm:$0xff]
        %v535 = vld [vmem:[%s284 + $0x550] sm:$0xff]
        %v536 = vld [vmem:[%s284 + $0x558] sm:$0xff]
        %v537 = vld [vmem:[%s284 + $0x560] sm:$0xff]
        %v538 = vld [vmem:[%s284 + $0x568] sm:$0xff]
        %v539 = vld [vmem:[%s284 + $0x570] sm:$0xff]
        %v540 = vld [vmem:[%s284 + $0x578] sm:$0xff]
        %v541 = vld [vmem:[%s284 + $0x580] sm:$0xff]
        %v542 = vld [vmem:[%s284 + $0x588] sm:$0xff]
        %v543 = vld [vmem:[%s284 + $0x590] sm:$0xff]
        %v544 = vld [vmem:[%s284 + $0x598] sm:$0xff]
        %v545 = vld [vmem:[%s284 + $0x5a0] sm:$0xff]
        %v546 = vld [vmem:[%s284 + $0x5a8] sm:$0xff]
        %v547 = vld [vmem:[%s284 + $0x5b0] sm:$0xff]
        %v548 = vld [vmem:[%s284 + $0x5b8] sm:$0xff]
        %v549 = vld [vmem:[%s284 + $0x5c0] sm:$0xff]
        %v550 = vld [vmem:[%s284 + $0x5c8] sm:$0xff]
        %v551 = vld [vmem:[%s284 + $0x5d0] sm:$0xff]
        %v552 = vld [vmem:[%s284 + $0x5d8] sm:$0xff]
        %v553 = vld [vmem:[%s284 + $0x5e0] sm:$0xff]
        %v554 = vld [vmem:[%s284 + $0x5e8] sm:$0xff]
        %v555 = vld [vmem:[%s284 + $0x5f0] sm:$0xff]
        %v556 = vld [vmem:[%s284 + $0x5f8] sm:$0xff]
        %v557 = vld [vmem:[%s284 + $0x600] sm:$0xff]
        %v558 = vld [vmem:[%s284 + $0x608] sm:$0xff]
        %v559 = vld [vmem:[%s284 + $0x610] sm:$0xff]
        %v560 = vld [vmem:[%s284 + $0x618] sm:$0xff]
        %v561 = vld [vmem:[%s284 + $0x620] sm:$0xff]
        %v562 = vld [vmem:[%s284 + $0x628] sm:$0xff]
        %v563 = vld [vmem:[%s284 + $0x630] sm:$0xff]
        %v564 = vld [vmem:[%s284 + $0x638] sm:$0xff]
        %v565 = vld [vmem:[%s284 + $0x640] sm:$0xff]
        %v566 = vld [vmem:[%s284 + $0x648] sm:$0xff]
        %v567 = vld [vmem:[%s284 + $0x650] sm:$0xff]
        %v568 = vld [vmem:[%s284 + $0x658] sm:$0xff]
        %v569 = vld [vmem:[%s284 + $0x660] sm:$0xff]
        %v570 = vld [vmem:[%s284 + $0x668] sm:$0xff]
        %v571 = vld [vmem:[%s284 + $0x670] sm:$0xff]
        %v572 = vld [vmem:[%s284 + $0x678] sm:$0xff]
        %v573 = vld [vmem:[%s284 + $0x680] sm:$0xff]
        %v574 = vld [vmem:[%s284 + $0x688] sm:$0xff]
        %v575 = vld [vmem:[%s284 + $0x690] sm:$0xff]
        %v576 = vld [vmem:[%s284 + $0x698] sm:$0xff]
        %v577 = vld [vmem:[%s284 + $0x6a0] sm:$0xff]
        %v578 = vld [vmem:[%s284 + $0x6a8] sm:$0xff]
        %v579 = vld [vmem:[%s284 + $0x6b0] sm:$0xff]
        %v580 = vld [vmem:[%s284 + $0x6b8] sm:$0xff]
        %v581 = vld [vmem:[%s284 + $0x6c0] sm:$0xff]
        %v582 = vld [vmem:[%s284 + $0x6c8] sm:$0xff]
        %v583 = vld [vmem:[%s284 + $0x6d0] sm:$0xff]
        %v584 = vld [vmem:[%s284 + $0x6d8] sm:$0xff]
        %v585 = vld [vmem:[%s284 + $0x6e0] sm:$0xff]
        %v586 = vld [vmem:[%s284 + $0x6e8] sm:$0xff]
        %v587 = vld [vmem:[%s284 + $0x6f0] sm:$0xff]
        %v588 = vld [vmem:[%s284 + $0x6f8] sm:$0xff]
        %v589 = vld [vmem:[%s284 + $0x700] sm:$0xff]
        %v590 = vld [vmem:[%s284 + $0x708] sm:$0xff]
        %v591 = vld [vmem:[%s284 + $0x710] sm:$0xff]
        %v592 = vld [vmem:[%s284 + $0x718] sm:$0xff]
        %v593 = vld [vmem:[%s284 + $0x720] sm:$0xff]
        %v594 = vld [vmem:[%s284 + $0x728] sm:$0xff]
        %v595 = vld [vmem:[%s284 + $0x730] sm:$0xff]
        %v596 = vld [vmem:[%s284 + $0x738] sm:$0xff]
        %v597 = vld [vmem:[%s284 + $0x740] sm:$0xff]
        %v598 = vld [vmem:[%s284 + $0x748] sm:$0xff]
        %v599 = vld [vmem:[%s284 + $0x750] sm:$0xff]
        %v600 = vld [vmem:[%s284 + $0x758] sm:$0xff]
        %v601 = vld [vmem:[%s284 + $0x760] sm:$0xff]
        %v602 = vld [vmem:[%s284 + $0x768] sm:$0xff]
        %v603 = vld [vmem:[%s284 + $0x770] sm:$0xff]
        %v604 = vld [vmem:[%s284 + $0x778] sm:$0xff]
        %v605 = vld [vmem:[%s284 + $0x780] sm:$0xff]
        %v606 = vld [vmem:[%s284 + $0x788] sm:$0xff]
        %v607 = vld [vmem:[%s284 + $0x790] sm:$0xff]
        %v608 = vld [vmem:[%s284 + $0x798] sm:$0xff]
        %v609 = vld [vmem:[%s284 + $0x7a0] sm:$0xff]
        %v610 = vld [vmem:[%s284 + $0x7a8] sm:$0xff]
        %v611 = vld [vmem:[%s284 + $0x7b0] sm:$0xff]
        %v612 = vld [vmem:[%s284 + $0x7b8] sm:$0xff]
        %v613 = vld [vmem:[%s284 + $0x7c0] sm:$0xff]
        %v614 = vld [vmem:[%s284 + $0x7c8] sm:$0xff]
        %v615 = vld [vmem:[%s284 + $0x7d0] sm:$0xff]
        %v616 = vld [vmem:[%s284 + $0x7d8] sm:$0xff]
        %v617 = vld [vmem:[%s284 + $0x7e0] sm:$0xff]
        %v618 = vld [vmem:[%s284 + $0x7e8] sm:$0xff]
        %v619 = vld [vmem:[%s284 + $0x7f0] sm:$0xff]
        %v620 = vld [vmem:[%s284 + $0x7f8] sm:$0xff]
        %v621 = vld [vmem:[%s284 + $0x800] sm:$0xff]
        %v622 = vld [vmem:[%s284 + $0x808] sm:$0xff]
        %v623 = vld [vmem:[%s284 + $0x810] sm:$0xff]
        %v624 = vld [vmem:[%s284 + $0x818] sm:$0xff]
        %v625 = vld [vmem:[%s284 + $0x820] sm:$0xff]
        %v626 = vld [vmem:[%s284 + $0x828] sm:$0xff]
        %v627 = vld [vmem:[%s284 + $0x830] sm:$0xff]
        %v628 = vld [vmem:[%s284 + $0x838] sm:$0xff]
        %v629 = vld [vmem:[%s284 + $0x840] sm:$0xff]
        %v630 = vld [vmem:[%s284 + $0x848] sm:$0xff]
        %v631 = vld [vmem:[%s284 + $0x850] sm:$0xff]
        %v632 = vld [vmem:[%s284 + $0x858] sm:$0xff]
        %v633 = vld [vmem:[%s284 + $0x860] sm:$0xff]
        %v634 = vld [vmem:[%s284 + $0x868] sm:$0xff]
        %v635 = vld [vmem:[%s284 + $0x870] sm:$0xff]
        %v636 = vld [vmem:[%s284 + $0x878] sm:$0xff]
        %v637 = vld [vmem:[%s284 + $0x880] sm:$0xff]
        %v638 = vld [vmem:[%s284 + $0x888] sm:$0xff]
        %v639 = vld [vmem:[%s284 + $0x890] sm:$0xff]
        %v640 = vld [vmem:[%s284 + $0x898] sm:$0xff]
        %v641 = vld [vmem:[%s284 + $0x8a0] sm:$0xff]
        %v642 = vld [vmem:[%s284 + $0x8a8] sm:$0xff]
        %v643 = vld [vmem:[%s284 + $0x8b0] sm:$0xff]
        %v644 = vld [vmem:[%s284 + $0x8b8] sm:$0xff]
        %v645 = vld [vmem:[%s284 + $0x8c0] sm:$0xff]
        %v646 = vld [vmem:[%s284 + $0x8c8] sm:$0xff]
        %v647 = vld [vmem:[%s284 + $0x8d0] sm:$0xff]
        %v648 = vld [vmem:[%s284 + $0x8d8] sm:$0xff]
        %v649 = vld [vmem:[%s284 + $0x8e0] sm:$0xff]
        %v650 = vld [vmem:[%s284 + $0x8e8] sm:$0xff]
        %v651 = vld [vmem:[%s284 + $0x8f0] sm:$0xff]
        %v652 = vld [vmem:[%s284 + $0x8f8] sm:$0xff]
        %v653 = vld [vmem:[%s284 + $0x900] sm:$0xff]
        %v654 = vld [vmem:[%s284 + $0x908] sm:$0xff]
        %v655 = vld [vmem:[%s284 + $0x910] sm:$0xff]
        %v656 = vld [vmem:[%s284 + $0x918] sm:$0xff]
        %v657 = vld [vmem:[%s284 + $0x920] sm:$0xff]
        %v658 = vld [vmem:[%s284 + $0x928] sm:$0xff]
        %v659 = vld [vmem:[%s284 + $0x930] sm:$0xff]
        %v660 = vld [vmem:[%s284 + $0x938] sm:$0xff]
        %v661 = vld [vmem:[%s284 + $0x940] sm:$0xff]
        %v662 = vld [vmem:[%s284 + $0x948] sm:$0xff]
        %v663 = vld [vmem:[%s284 + $0x950] sm:$0xff]
        %v664 = vld [vmem:[%s284 + $0x958] sm:$0xff]
        %v665 = vld [vmem:[%s284 + $0x960] sm:$0xff]
        %v666 = vld [vmem:[%s284 + $0x968] sm:$0xff]
        %v667 = vld [vmem:[%s284 + $0x970] sm:$0xff]
        %v668 = vld [vmem:[%s284 + $0x978] sm:$0xff]
        %v669 = vld [vmem:[%s284 + $0x980] sm:$0xff]
        %v670 = vld [vmem:[%s284 + $0x988] sm:$0xff]
        %v671 = vld [vmem:[%s284 + $0x990] sm:$0xff]
        %v672 = vld [vmem:[%s284 + $0x998] sm:$0xff]
        %v673 = vld [vmem:[%s284 + $0x9a0] sm:$0xff]
        %v674 = vld [vmem:[%s284 + $0x9a8] sm:$0xff]
        %v675 = vld [vmem:[%s284 + $0x9b0] sm:$0xff]
        %v676 = vld [vmem:[%s284 + $0x9b8] sm:$0xff]
        %v677 = vld [vmem:[%s284 + $0x9c0] sm:$0xff]
        %v678 = vld [vmem:[%s284 + $0x9c8] sm:$0xff]
        %v679 = vld [vmem:[%s284 + $0x9d0] sm:$0xff]
        %v680 = vld [vmem:[%s284 + $0x9d8] sm:$0xff]
        %v681 = vld [vmem:[%s284 + $0x9e0] sm:$0xff]
        %v682 = vld [vmem:[%s284 + $0x9e8] sm:$0xff]
        %v683 = vld [vmem:[%s284 + $0x9f0] sm:$0xff]
        %v684 = vld [vmem:[%s284 + $0x9f8] sm:$0xff]
        %v685 = vld [vmem:[%s284 + $0xa00] sm:$0xff]
        %v686 = vld [vmem:[%s284 + $0xa08] sm:$0xff]
        %v687 = vld [vmem:[%s284 + $0xa10] sm:$0xff]
        %v688 = vld [vmem:[%s284 + $0xa18] sm:$0xff]
        %v689 = vld [vmem:[%s284 + $0xa20] sm:$0xff]
        %v690 = vld [vmem:[%s284 + $0xa28] sm:$0xff]
        %v691 = vld [vmem:[%s284 + $0xa30] sm:$0xff]
        %v692 = vld [vmem:[%s284 + $0xa38] sm:$0xff]
        %v693 = vld [vmem:[%s284 + $0xa40] sm:$0xff]
        %v694 = vld [vmem:[%s284 + $0xa48] sm:$0xff]
        %v695 = vld [vmem:[%s284 + $0xa50] sm:$0xff]
        %v696 = vld [vmem:[%s284 + $0xa58] sm:$0xff]
        %v697 = vld [vmem:[%s284 + $0xa60] sm:$0xff]
        %v698 = vld [vmem:[%s284 + $0xa68] sm:$0xff]
        %v699 = vld [vmem:[%s284 + $0xa70] sm:$0xff]
        %v700 = vld [vmem:[%s284 + $0xa78] sm:$0xff]
        %v701 = vld [vmem:[%s284 + $0xa80] sm:$0xff]
        %v702 = vld [vmem:[%s284 + $0xa88] sm:$0xff]
        %v703 = vld [vmem:[%s284 + $0xa90] sm:$0xff]
        %v704 = vld [vmem:[%s284 + $0xa98] sm:$0xff]
        %v705 = vld [vmem:[%s284 + $0xaa0] sm:$0xff]
        %v706 = vld [vmem:[%s284 + $0xaa8] sm:$0xff]
        %v707 = vld [vmem:[%s284 + $0xab0] sm:$0xff]
        %v708 = vld [vmem:[%s284 + $0xab8] sm:$0xff]
        %v709 = vld [vmem:[%s284 + $0xac0] sm:$0xff]
        %v710 = vld [vmem:[%s284 + $0xac8] sm:$0xff]
        %v711 = vld [vmem:[%s284 + $0xad0] sm:$0xff]
        %v712 = vld [vmem:[%s284 + $0xad8] sm:$0xff]
        %v713 = vld [vmem:[%s284 + $0xae0] sm:$0xff]
        %v714 = vld [vmem:[%s284 + $0xae8] sm:$0xff]
        %v715 = vld [vmem:[%s284 + $0xaf0] sm:$0xff]
        %v716 = vld [vmem:[%s284 + $0xaf8] sm:$0xff]
        %v717 = vld [vmem:[%s284 + $0xb00] sm:$0xff]
        %v718 = vld [vmem:[%s284 + $0xb08] sm:$0xff]
        %v719 = vld [vmem:[%s284 + $0xb10] sm:$0xff]
        %v720 = vld [vmem:[%s284 + $0xb18] sm:$0xff]
        %v721 = vld [vmem:[%s284 + $0xb20] sm:$0xff]
        %v722 = vld [vmem:[%s284 + $0xb28] sm:$0xff]
        %v723 = vld [vmem:[%s284 + $0xb30] sm:$0xff]
        %v724 = vld [vmem:[%s284 + $0xb38] sm:$0xff]
        %v725 = vld [vmem:[%s284 + $0xb40] sm:$0xff]
        %v726 = vld [vmem:[%s284 + $0xb48] sm:$0xff]
        %v727 = vld [vmem:[%s284 + $0xb50] sm:$0xff]
        %v728 = vld [vmem:[%s284 + $0xb58] sm:$0xff]
        %v729 = vld [vmem:[%s284 + $0xb60] sm:$0xff]
        %v730 = vld [vmem:[%s284 + $0xb68] sm:$0xff]
        %v731 = vld [vmem:[%s284 + $0xb70] sm:$0xff]
        %v732 = vld [vmem:[%s284 + $0xb78] sm:$0xff]
        %v733 = vld [vmem:[%s284 + $0xb80] sm:$0xff]
        %v734 = vld [vmem:[%s284 + $0xb88] sm:$0xff]
        %v735 = vld [vmem:[%s284 + $0xb90] sm:$0xff]
        %v736 = vld [vmem:[%s284 + $0xb98] sm:$0xff]
        %v737 = vld [vmem:[%s284 + $0xba0] sm:$0xff]
        %v738 = vld [vmem:[%s284 + $0xba8] sm:$0xff]
        %v739 = vld [vmem:[%s284 + $0xbb0] sm:$0xff]
        %v740 = vld [vmem:[%s284 + $0xbb8] sm:$0xff]
        %v741 = vld [vmem:[%s284 + $0xbc0] sm:$0xff]
        %v742 = vld [vmem:[%s284 + $0xbc8] sm:$0xff]
        %v743 = vld [vmem:[%s284 + $0xbd0] sm:$0xff]
        %v744 = vld [vmem:[%s284 + $0xbd8] sm:$0xff]
        %v745 = vld [vmem:[%s284 + $0xbe0] sm:$0xff]
        %v746 = vld [vmem:[%s284 + $0xbe8] sm:$0xff]
        %v747 = vld [vmem:[%s284 + $0xbf0] sm:$0xff]
        %v748 = vld [vmem:[%s284 + $0xbf8] sm:$0xff]
        %v749 = vld [vmem:[%s284 + $0xc00] sm:$0xff]
        %v750 = vld [vmem:[%s284 + $0xc08] sm:$0xff]
        %v751 = vld [vmem:[%s284 + $0xc10] sm:$0xff]
        %v752 = vld [vmem:[%s284 + $0xc18] sm:$0xff]
        %v753 = vld [vmem:[%s284 + $0xc20] sm:$0xff]
        %v754 = vld [vmem:[%s284 + $0xc28] sm:$0xff]
        %v755 = vld [vmem:[%s284 + $0xc30] sm:$0xff]
        %v756 = vld [vmem:[%s284 + $0xc38] sm:$0xff]
        %v757 = vld [vmem:[%s284 + $0xc40] sm:$0xff]
        %v758 = vld [vmem:[%s284 + $0xc48] sm:$0xff]
        %v759 = vld [vmem:[%s284 + $0xc50] sm:$0xff]
        %v760 = vld [vmem:[%s284 + $0xc58] sm:$0xff]
        %v761 = vld [vmem:[%s284 + $0xc60] sm:$0xff]
        %v762 = vld [vmem:[%s284 + $0xc68] sm:$0xff]
        %v763 = vld [vmem:[%s284 + $0xc70] sm:$0xff]
        %v764 = vld [vmem:[%s284 + $0xc78] sm:$0xff]
        %v765 = vld [vmem:[%s284 + $0xc80] sm:$0xff]
        %v766 = vld [vmem:[%s284 + $0xc88] sm:$0xff]
        %v767 = vld [vmem:[%s284 + $0xc90] sm:$0xff]
        %v768 = vld [vmem:[%s284 + $0xc98] sm:$0xff]
        %v769 = vld [vmem:[%s284 + $0xca0] sm:$0xff]
        %v770 = vld [vmem:[%s284 + $0xca8] sm:$0xff]
        %v771 = vld [vmem:[%s284 + $0xcb0] sm:$0xff]
        %v772 = vld [vmem:[%s284 + $0xcb8] sm:$0xff]
        %v773 = vld [vmem:[%s284 + $0xcc0] sm:$0xff]
        %v774 = vld [vmem:[%s284 + $0xcc8] sm:$0xff]
        %v775 = vld [vmem:[%s284 + $0xcd0] sm:$0xff]
        %v776 = vld [vmem:[%s284 + $0xcd8] sm:$0xff]
        %v777 = vld [vmem:[%s284 + $0xce0] sm:$0xff]
        %v778 = vld [vmem:[%s284 + $0xce8] sm:$0xff]
        %v779 = vld [vmem:[%s284 + $0xcf0] sm:$0xff]
        %v780 = vld [vmem:[%s284 + $0xcf8] sm:$0xff]
        %v781 = vld [vmem:[%s284 + $0xd00] sm:$0xff]
        %v782 = vld [vmem:[%s284 + $0xd08] sm:$0xff]
        %v783 = vld [vmem:[%s284 + $0xd10] sm:$0xff]
        %v784 = vld [vmem:[%s284 + $0xd18] sm:$0xff]
        %v785 = vld [vmem:[%s284 + $0xd20] sm:$0xff]
        %v786 = vld [vmem:[%s284 + $0xd28] sm:$0xff]
        %v787 = vld [vmem:[%s284 + $0xd30] sm:$0xff]
        %v788 = vld [vmem:[%s284 + $0xd38] sm:$0xff]
        %v789 = vld [vmem:[%s284 + $0xd40] sm:$0xff]
        %v790 = vld [vmem:[%s284 + $0xd48] sm:$0xff]
        %v791 = vld [vmem:[%s284 + $0xd50] sm:$0xff]
        %v792 = vld [vmem:[%s284 + $0xd58] sm:$0xff]
        %v793 = vld [vmem:[%s284 + $0xd60] sm:$0xff]
        %v794 = vld [vmem:[%s284 + $0xd68] sm:$0xff]
        %v795 = vld [vmem:[%s284 + $0xd70] sm:$0xff]
        %v796 = vld [vmem:[%s284 + $0xd78] sm:$0xff]
        %v797 = vld [vmem:[%s284 + $0xd80] sm:$0xff]
        %v798 = vld [vmem:[%s284 + $0xd88] sm:$0xff]
        %v799 = vld [vmem:[%s284 + $0xd90] sm:$0xff]
        %v800 = vld [vmem:[%s284 + $0xd98] sm:$0xff]
        %v801 = vld [vmem:[%s284 + $0xda0] sm:$0xff]
        %v802 = vld [vmem:[%s284 + $0xda8] sm:$0xff]
        %v803 = vld [vmem:[%s284 + $0xdb0] sm:$0xff]
        %v804 = vld [vmem:[%s284 + $0xdb8] sm:$0xff]
        %v805 = vld [vmem:[%s284 + $0xdc0] sm:$0xff]
        %v806 = vld [vmem:[%s284 + $0xdc8] sm:$0xff]
        %v807 = vld [vmem:[%s284 + $0xdd0] sm:$0xff]
        %v808 = vld [vmem:[%s284 + $0xdd8] sm:$0xff]
        %v809 = vld [vmem:[%s284 + $0xde0] sm:$0xff]
        %v810 = vld [vmem:[%s284 + $0xde8] sm:$0xff]
        %v811 = vld [vmem:[%s284 + $0xdf0] sm:$0xff]
        %v812 = vld [vmem:[%s284 + $0xdf8] sm:$0xff]
        %v813 = vld [vmem:[%s284 + $0xe00] sm:$0xff]
        %v814 = vld [vmem:[%s284 + $0xe08] sm:$0xff]
        %v815 = vld [vmem:[%s284 + $0xe10] sm:$0xff]
        %v816 = vld [vmem:[%s284 + $0xe18] sm:$0xff]
        %v817 = vld [vmem:[%s284 + $0xe20] sm:$0xff]
        %v818 = vld [vmem:[%s284 + $0xe28] sm:$0xff]
        %v819 = vld [vmem:[%s284 + $0xe30] sm:$0xff]
        %v820 = vld [vmem:[%s284 + $0xe38] sm:$0xff]
        %v821 = vld [vmem:[%s284 + $0xe40] sm:$0xff]
        %v822 = vld [vmem:[%s284 + $0xe48] sm:$0xff]
        %v823 = vld [vmem:[%s284 + $0xe50] sm:$0xff]
        %v824 = vld [vmem:[%s284 + $0xe58] sm:$0xff]
        %v825 = vld [vmem:[%s284 + $0xe60] sm:$0xff]
        %v826 = vld [vmem:[%s284 + $0xe68] sm:$0xff]
        %v827 = vld [vmem:[%s284 + $0xe70] sm:$0xff]
        %v828 = vld [vmem:[%s284 + $0xe78] sm:$0xff]
        %v829 = vld [vmem:[%s284 + $0xe80] sm:$0xff]
        %v830 = vld [vmem:[%s284 + $0xe88] sm:$0xff]
        %v831 = vld [vmem:[%s284 + $0xe90] sm:$0xff]
        %v832 = vld [vmem:[%s284 + $0xe98] sm:$0xff]
        %v833 = vld [vmem:[%s284 + $0xea0] sm:$0xff]
        %v834 = vld [vmem:[%s284 + $0xea8] sm:$0xff]
        %v835 = vld [vmem:[%s284 + $0xeb0] sm:$0xff]
        %v836 = vld [vmem:[%s284 + $0xeb8] sm:$0xff]
        %v837 = vld [vmem:[%s284 + $0xec0] sm:$0xff]
        %v838 = vld [vmem:[%s284 + $0xec8] sm:$0xff]
        %v839 = vld [vmem:[%s284 + $0xed0] sm:$0xff]
        %v840 = vld [vmem:[%s284 + $0xed8] sm:$0xff]
        %v841 = vld [vmem:[%s284 + $0xee0] sm:$0xff]
        %v842 = vld [vmem:[%s284 + $0xee8] sm:$0xff]
        %v843 = vld [vmem:[%s284 + $0xef0] sm:$0xff]
        %v844 = vld [vmem:[%s284 + $0xef8] sm:$0xff]
        %v845 = vld [vmem:[%s284 + $0xf00] sm:$0xff]
        %v846 = vld [vmem:[%s284 + $0xf08] sm:$0xff]
        %v847 = vld [vmem:[%s284 + $0xf10] sm:$0xff]
        %v848 = vld [vmem:[%s284 + $0xf18] sm:$0xff]
        %v849 = vld [vmem:[%s284 + $0xf20] sm:$0xff]
        %v850 = vld [vmem:[%s284 + $0xf28] sm:$0xff]
        %v851 = vld [vmem:[%s284 + $0xf30] sm:$0xff]
        %v852 = vld [vmem:[%s284 + $0xf38] sm:$0xff]
        %v853 = vld [vmem:[%s284 + $0xf40] sm:$0xff]
        %v854 = vld [vmem:[%s284 + $0xf48] sm:$0xff]
        %v855 = vld [vmem:[%s284 + $0xf50] sm:$0xff]
        %v856 = vld [vmem:[%s284 + $0xf58] sm:$0xff]
        %v857 = vld [vmem:[%s284 + $0xf60] sm:$0xff]
        %v858 = vld [vmem:[%s284 + $0xf68] sm:$0xff]
        %v859 = vld [vmem:[%s284 + $0xf70] sm:$0xff]
        %v860 = vld [vmem:[%s284 + $0xf78] sm:$0xff]
        %v861 = vld [vmem:[%s284 + $0xf80] sm:$0xff]
        %v862 = vld [vmem:[%s284 + $0xf88] sm:$0xff]
        %v863 = vld [vmem:[%s284 + $0xf90] sm:$0xff]
        %v864 = vld [vmem:[%s284 + $0xf98] sm:$0xff]
        %v865 = vld [vmem:[%s284 + $0xfa0] sm:$0xff]
        %v866 = vld [vmem:[%s284 + $0xfa8] sm:$0xff]
        %v867 = vld [vmem:[%s284 + $0xfb0] sm:$0xff]
        %v868 = vld [vmem:[%s284 + $0xfb8] sm:$0xff]
        %v869 = vld [vmem:[%s284 + $0xfc0] sm:$0xff]
        %v870 = vld [vmem:[%s284 + $0xfc8] sm:$0xff]
        %v871 = vld [vmem:[%s284 + $0xfd0] sm:$0xff]
        %v872 = vld [vmem:[%s284 + $0xfd8] sm:$0xff]
        %v873 = vld [vmem:[%s284 + $0xfe0] sm:$0xff]
        %v874 = vld [vmem:[%s284 + $0xfe8] sm:$0xff]
        %v875 = vld [vmem:[%s284 + $0xff0] sm:$0xff]
        %v876 = vld [vmem:[%s284 + $0xff8] sm:$0xff]
        %v877 = vunpack.c.l.s8.bf16 %v365
        %v878 = vunpack.c.l.s8.bf16 %v366
        %v879 = vunpack.c.l.s8.bf16 %v367
        %v880 = vunpack.c.l.s8.bf16 %v368
        %v881 = vunpack.c.h.s8.bf16 %v365
        %v882 = vunpack.c.h.s8.bf16 %v366
        %v883 = vunpack.c.h.s8.bf16 %v367
        %v884 = vunpack.c.h.s8.bf16 %v368
        %v885 = vunpack.c.l.s8.bf16 %v369
        %v886 = vunpack.c.l.s8.bf16 %v370
        %v887 = vunpack.c.l.s8.bf16 %v371
        %v888 = vunpack.c.l.s8.bf16 %v372
        %v889 = vunpack.c.h.s8.bf16 %v369
        %v890 = vunpack.c.h.s8.bf16 %v370
        %v891 = vunpack.c.h.s8.bf16 %v371
        %v892 = vunpack.c.h.s8.bf16 %v372
        %v893 = vunpack.c.l.s8.bf16 %v373
        %v894 = vunpack.c.l.s8.bf16 %v374
        %v895 = vunpack.c.l.s8.bf16 %v375
        %v896 = vunpack.c.l.s8.bf16 %v376
        %v897 = vunpack.c.h.s8.bf16 %v373
        %v898 = vunpack.c.h.s8.bf16 %v374
        %v899 = vunpack.c.h.s8.bf16 %v375
        %v900 = vunpack.c.h.s8.bf16 %v376
        %v901 = vunpack.c.l.s8.bf16 %v377
        %v902 = vunpack.c.l.s8.bf16 %v378
        %v903 = vunpack.c.l.s8.bf16 %v379
        %v904 = vunpack.c.l.s8.bf16 %v380
        %v905 = vunpack.c.h.s8.bf16 %v377
        %v906 = vunpack.c.h.s8.bf16 %v378
        %v907 = vunpack.c.h.s8.bf16 %v379
        %v908 = vunpack.c.h.s8.bf16 %v380
        %v909 = vunpack.c.l.s8.bf16 %v381
        %v910 = vunpack.c.l.s8.bf16 %v382
        %v911 = vunpack.c.l.s8.bf16 %v383
        %v912 = vunpack.c.l.s8.bf16 %v384
        %v913 = vunpack.c.h.s8.bf16 %v381
        %v914 = vunpack.c.h.s8.bf16 %v382
        %v915 = vunpack.c.h.s8.bf16 %v383
        %v916 = vunpack.c.h.s8.bf16 %v384
        %v917 = vunpack.c.l.s8.bf16 %v385
        %v918 = vunpack.c.l.s8.bf16 %v386
        %v919 = vunpack.c.l.s8.bf16 %v387
        %v920 = vunpack.c.l.s8.bf16 %v388
        %v921 = vunpack.c.h.s8.bf16 %v385
        %v922 = vunpack.c.h.s8.bf16 %v386
        %v923 = vunpack.c.h.s8.bf16 %v387
        %v924 = vunpack.c.h.s8.bf16 %v388
        %v925 = vunpack.c.l.s8.bf16 %v389
        %v926 = vunpack.c.l.s8.bf16 %v390
        %v927 = vunpack.c.l.s8.bf16 %v391
        %v928 = vunpack.c.l.s8.bf16 %v392
        %v929 = vunpack.c.h.s8.bf16 %v389
        %v930 = vunpack.c.h.s8.bf16 %v390
        %v931 = vunpack.c.h.s8.bf16 %v391
        %v932 = vunpack.c.h.s8.bf16 %v392
        %v933 = vunpack.c.l.s8.bf16 %v393
        %v934 = vunpack.c.l.s8.bf16 %v394
        %v935 = vunpack.c.l.s8.bf16 %v395
        %v936 = vunpack.c.l.s8.bf16 %v396
        %v937 = vunpack.c.h.s8.bf16 %v393
        %v938 = vunpack.c.h.s8.bf16 %v394
        %v939 = vunpack.c.h.s8.bf16 %v395
        %v940 = vunpack.c.h.s8.bf16 %v396
        %v941 = vunpack.c.l.s8.bf16 %v397
        %v942 = vunpack.c.l.s8.bf16 %v398
        %v943 = vunpack.c.l.s8.bf16 %v399
        %v944 = vunpack.c.l.s8.bf16 %v400
        %v945 = vunpack.c.h.s8.bf16 %v397
        %v946 = vunpack.c.h.s8.bf16 %v398
        %v947 = vunpack.c.h.s8.bf16 %v399
        %v948 = vunpack.c.h.s8.bf16 %v400
        %v949 = vunpack.c.l.s8.bf16 %v401
        %v950 = vunpack.c.l.s8.bf16 %v402
        %v951 = vunpack.c.l.s8.bf16 %v403
        %v952 = vunpack.c.l.s8.bf16 %v404
        %v953 = vunpack.c.h.s8.bf16 %v401
        %v954 = vunpack.c.h.s8.bf16 %v402
        %v955 = vunpack.c.h.s8.bf16 %v403
        %v956 = vunpack.c.h.s8.bf16 %v404
        %v957 = vunpack.c.l.s8.bf16 %v405
        %v958 = vunpack.c.l.s8.bf16 %v406
        %v959 = vunpack.c.l.s8.bf16 %v407
        %v960 = vunpack.c.l.s8.bf16 %v408
        %v961 = vunpack.c.h.s8.bf16 %v405
        %v962 = vunpack.c.h.s8.bf16 %v406
        %v963 = vunpack.c.h.s8.bf16 %v407
        %v964 = vunpack.c.h.s8.bf16 %v408
        %v965 = vunpack.c.l.s8.bf16 %v409
        %v966 = vunpack.c.l.s8.bf16 %v410
        %v967 = vunpack.c.l.s8.bf16 %v411
        %v968 = vunpack.c.l.s8.bf16 %v412
        %v969 = vunpack.c.h.s8.bf16 %v409
        %v970 = vunpack.c.h.s8.bf16 %v410
        %v971 = vunpack.c.h.s8.bf16 %v411
        %v972 = vunpack.c.h.s8.bf16 %v412
        %v973 = vunpack.c.l.s8.bf16 %v413
        %v974 = vunpack.c.l.s8.bf16 %v414
        %v975 = vunpack.c.l.s8.bf16 %v415
        %v976 = vunpack.c.l.s8.bf16 %v416
        %v977 = vunpack.c.h.s8.bf16 %v413
        %v978 = vunpack.c.h.s8.bf16 %v414
        %v979 = vunpack.c.h.s8.bf16 %v415
        %v980 = vunpack.c.h.s8.bf16 %v416
        %v981 = vunpack.c.l.s8.bf16 %v417
        %v982 = vunpack.c.l.s8.bf16 %v418
        %v983 = vunpack.c.l.s8.bf16 %v419
        %v984 = vunpack.c.l.s8.bf16 %v420
        %v985 = vunpack.c.h.s8.bf16 %v417
        %v986 = vunpack.c.h.s8.bf16 %v418
        %v987 = vunpack.c.h.s8.bf16 %v419
        %v988 = vunpack.c.h.s8.bf16 %v420
        %v989 = vunpack.c.l.s8.bf16 %v421
        %v990 = vunpack.c.l.s8.bf16 %v422
        %v991 = vunpack.c.l.s8.bf16 %v423
        %v992 = vunpack.c.l.s8.bf16 %v424
        %v993 = vunpack.c.h.s8.bf16 %v421
        %v994 = vunpack.c.h.s8.bf16 %v422
        %v995 = vunpack.c.h.s8.bf16 %v423
        %v996 = vunpack.c.h.s8.bf16 %v424
        %v997 = vunpack.c.l.s8.bf16 %v425
        %v998 = vunpack.c.l.s8.bf16 %v426
        %v999 = vunpack.c.l.s8.bf16 %v427
        %v1000 = vunpack.c.l.s8.bf16 %v428
        %v1001 = vunpack.c.h.s8.bf16 %v425
        %v1002 = vunpack.c.h.s8.bf16 %v426
        %v1003 = vunpack.c.h.s8.bf16 %v427
        %v1004 = vunpack.c.h.s8.bf16 %v428
        %v1005 = vunpack.c.l.s8.bf16 %v429
        %v1006 = vunpack.c.l.s8.bf16 %v430
        %v1007 = vunpack.c.l.s8.bf16 %v431
        %v1008 = vunpack.c.l.s8.bf16 %v432
        %v1009 = vunpack.c.h.s8.bf16 %v429
        %v1010 = vunpack.c.h.s8.bf16 %v430
        %v1011 = vunpack.c.h.s8.bf16 %v431
        %v1012 = vunpack.c.h.s8.bf16 %v432
        %v1013 = vunpack.c.l.s8.bf16 %v433
        %v1014 = vunpack.c.l.s8.bf16 %v434
        %v1015 = vunpack.c.l.s8.bf16 %v435
        %v1016 = vunpack.c.l.s8.bf16 %v436
        %v1017 = vunpack.c.h.s8.bf16 %v433
        %v1018 = vunpack.c.h.s8.bf16 %v434
        %v1019 = vunpack.c.h.s8.bf16 %v435
        %v1020 = vunpack.c.h.s8.bf16 %v436
        %v1021 = vunpack.c.l.s8.bf16 %v437
        %v1022 = vunpack.c.l.s8.bf16 %v438
        %v1023 = vunpack.c.l.s8.bf16 %v439
        %v1024 = vunpack.c.l.s8.bf16 %v440
        %v1025 = vunpack.c.h.s8.bf16 %v437
        %v1026 = vunpack.c.h.s8.bf16 %v438
        %v1027 = vunpack.c.h.s8.bf16 %v439
        %v1028 = vunpack.c.h.s8.bf16 %v440
        %v1029 = vunpack.c.l.s8.bf16 %v441
        %v1030 = vunpack.c.l.s8.bf16 %v442
        %v1031 = vunpack.c.l.s8.bf16 %v443
        %v1032 = vunpack.c.l.s8.bf16 %v444
        %v1033 = vunpack.c.h.s8.bf16 %v441
        %v1034 = vunpack.c.h.s8.bf16 %v442
        %v1035 = vunpack.c.h.s8.bf16 %v443
        %v1036 = vunpack.c.h.s8.bf16 %v444
        %v1037 = vunpack.c.l.s8.bf16 %v445
        %v1038 = vunpack.c.l.s8.bf16 %v446
        %v1039 = vunpack.c.l.s8.bf16 %v447
        %v1040 = vunpack.c.l.s8.bf16 %v448
        %v1041 = vunpack.c.h.s8.bf16 %v445
        %v1042 = vunpack.c.h.s8.bf16 %v446
        %v1043 = vunpack.c.h.s8.bf16 %v447
        %v1044 = vunpack.c.h.s8.bf16 %v448
        %v1045 = vunpack.c.l.s8.bf16 %v449
        %v1046 = vunpack.c.l.s8.bf16 %v450
        %v1047 = vunpack.c.l.s8.bf16 %v451
        %v1048 = vunpack.c.l.s8.bf16 %v452
        %v1049 = vunpack.c.h.s8.bf16 %v449
        %v1050 = vunpack.c.h.s8.bf16 %v450
        %v1051 = vunpack.c.h.s8.bf16 %v451
        %v1052 = vunpack.c.h.s8.bf16 %v452
        %v1053 = vunpack.c.l.s8.bf16 %v453
        %v1054 = vunpack.c.l.s8.bf16 %v454
        %v1055 = vunpack.c.l.s8.bf16 %v455
        %v1056 = vunpack.c.l.s8.bf16 %v456
        %v1057 = vunpack.c.h.s8.bf16 %v453
        %v1058 = vunpack.c.h.s8.bf16 %v454
        %v1059 = vunpack.c.h.s8.bf16 %v455
        %v1060 = vunpack.c.h.s8.bf16 %v456
        %v1061 = vunpack.c.l.s8.bf16 %v457
        %v1062 = vunpack.c.l.s8.bf16 %v458
        %v1063 = vunpack.c.l.s8.bf16 %v459
        %v1064 = vunpack.c.l.s8.bf16 %v460
        %v1065 = vunpack.c.h.s8.bf16 %v457
        %v1066 = vunpack.c.h.s8.bf16 %v458
        %v1067 = vunpack.c.h.s8.bf16 %v459
        %v1068 = vunpack.c.h.s8.bf16 %v460
        %v1069 = vunpack.c.l.s8.bf16 %v461
        %v1070 = vunpack.c.l.s8.bf16 %v462
        %v1071 = vunpack.c.l.s8.bf16 %v463
        %v1072 = vunpack.c.l.s8.bf16 %v464
        %v1073 = vunpack.c.h.s8.bf16 %v461
        %v1074 = vunpack.c.h.s8.bf16 %v462
        %v1075 = vunpack.c.h.s8.bf16 %v463
        %v1076 = vunpack.c.h.s8.bf16 %v464
        %v1077 = vunpack.c.l.s8.bf16 %v465
        %v1078 = vunpack.c.l.s8.bf16 %v466
        %v1079 = vunpack.c.l.s8.bf16 %v467
        %v1080 = vunpack.c.l.s8.bf16 %v468
        %v1081 = vunpack.c.h.s8.bf16 %v465
        %v1082 = vunpack.c.h.s8.bf16 %v466
        %v1083 = vunpack.c.h.s8.bf16 %v467
        %v1084 = vunpack.c.h.s8.bf16 %v468
        %v1085 = vunpack.c.l.s8.bf16 %v469
        %v1086 = vunpack.c.l.s8.bf16 %v470
        %v1087 = vunpack.c.l.s8.bf16 %v471
        %v1088 = vunpack.c.l.s8.bf16 %v472
        %v1089 = vunpack.c.h.s8.bf16 %v469
        %v1090 = vunpack.c.h.s8.bf16 %v470
        %v1091 = vunpack.c.h.s8.bf16 %v471
        %v1092 = vunpack.c.h.s8.bf16 %v472
        %v1093 = vunpack.c.l.s8.bf16 %v473
        %v1094 = vunpack.c.l.s8.bf16 %v474
        %v1095 = vunpack.c.l.s8.bf16 %v475
        %v1096 = vunpack.c.l.s8.bf16 %v476
        %v1097 = vunpack.c.h.s8.bf16 %v473
        %v1098 = vunpack.c.h.s8.bf16 %v474
        %v1099 = vunpack.c.h.s8.bf16 %v475
        %v1100 = vunpack.c.h.s8.bf16 %v476
        %v1101 = vunpack.c.l.s8.bf16 %v477
        %v1102 = vunpack.c.l.s8.bf16 %v478
        %v1103 = vunpack.c.l.s8.bf16 %v479
        %v1104 = vunpack.c.l.s8.bf16 %v480
        %v1105 = vunpack.c.h.s8.bf16 %v477
        %v1106 = vunpack.c.h.s8.bf16 %v478
        %v1107 = vunpack.c.h.s8.bf16 %v479
        %v1108 = vunpack.c.h.s8.bf16 %v480
        %v1109 = vunpack.c.l.s8.bf16 %v481
        %v1110 = vunpack.c.l.s8.bf16 %v482
        %v1111 = vunpack.c.l.s8.bf16 %v483
        %v1112 = vunpack.c.l.s8.bf16 %v484
        %v1113 = vunpack.c.h.s8.bf16 %v481
        %v1114 = vunpack.c.h.s8.bf16 %v482
        %v1115 = vunpack.c.h.s8.bf16 %v483
        %v1116 = vunpack.c.h.s8.bf16 %v484
        %v1117 = vunpack.c.l.s8.bf16 %v485
        %v1118 = vunpack.c.l.s8.bf16 %v486
        %v1119 = vunpack.c.l.s8.bf16 %v487
        %v1120 = vunpack.c.l.s8.bf16 %v488
        %v1121 = vunpack.c.h.s8.bf16 %v485
        %v1122 = vunpack.c.h.s8.bf16 %v486
        %v1123 = vunpack.c.h.s8.bf16 %v487
        %v1124 = vunpack.c.h.s8.bf16 %v488
        %v1125 = vunpack.c.l.s8.bf16 %v489
        %v1126 = vunpack.c.l.s8.bf16 %v490
        %v1127 = vunpack.c.l.s8.bf16 %v491
        %v1128 = vunpack.c.l.s8.bf16 %v492
        %v1129 = vunpack.c.h.s8.bf16 %v489
        %v1130 = vunpack.c.h.s8.bf16 %v490
        %v1131 = vunpack.c.h.s8.bf16 %v491
        %v1132 = vunpack.c.h.s8.bf16 %v492
        %v1133 = vunpack.c.l.s8.bf16 %v493
        %v1134 = vunpack.c.l.s8.bf16 %v494
        %v1135 = vunpack.c.l.s8.bf16 %v495
        %v1136 = vunpack.c.l.s8.bf16 %v496
        %v1137 = vunpack.c.h.s8.bf16 %v493
        %v1138 = vunpack.c.h.s8.bf16 %v494
        %v1139 = vunpack.c.h.s8.bf16 %v495
        %v1140 = vunpack.c.h.s8.bf16 %v496
        %v1141 = vunpack.c.l.s8.bf16 %v497
        %v1142 = vunpack.c.l.s8.bf16 %v498
        %v1143 = vunpack.c.l.s8.bf16 %v499
        %v1144 = vunpack.c.l.s8.bf16 %v500
        %v1145 = vunpack.c.h.s8.bf16 %v497
        %v1146 = vunpack.c.h.s8.bf16 %v498
        %v1147 = vunpack.c.h.s8.bf16 %v499
        %v1148 = vunpack.c.h.s8.bf16 %v500
        %v1149 = vunpack.c.l.s8.bf16 %v501
        %v1150 = vunpack.c.l.s8.bf16 %v502
        %v1151 = vunpack.c.l.s8.bf16 %v503
        %v1152 = vunpack.c.l.s8.bf16 %v504
        %v1153 = vunpack.c.h.s8.bf16 %v501
        %v1154 = vunpack.c.h.s8.bf16 %v502
        %v1155 = vunpack.c.h.s8.bf16 %v503
        %v1156 = vunpack.c.h.s8.bf16 %v504
        %v1157 = vunpack.c.l.s8.bf16 %v505
        %v1158 = vunpack.c.l.s8.bf16 %v506
        %v1159 = vunpack.c.l.s8.bf16 %v507
        %v1160 = vunpack.c.l.s8.bf16 %v508
        %v1161 = vunpack.c.h.s8.bf16 %v505
        %v1162 = vunpack.c.h.s8.bf16 %v506
        %v1163 = vunpack.c.h.s8.bf16 %v507
        %v1164 = vunpack.c.h.s8.bf16 %v508
        %v1165 = vunpack.c.l.s8.bf16 %v509
        %v1166 = vunpack.c.l.s8.bf16 %v510
        %v1167 = vunpack.c.l.s8.bf16 %v511
        %v1168 = vunpack.c.l.s8.bf16 %v512
        %v1169 = vunpack.c.h.s8.bf16 %v509
        %v1170 = vunpack.c.h.s8.bf16 %v510
        %v1171 = vunpack.c.h.s8.bf16 %v511
        %v1172 = vunpack.c.h.s8.bf16 %v512
        %v1173 = vunpack.c.l.s8.bf16 %v513
        %v1174 = vunpack.c.l.s8.bf16 %v514
        %v1175 = vunpack.c.l.s8.bf16 %v515
        %v1176 = vunpack.c.l.s8.bf16 %v516
        %v1177 = vunpack.c.h.s8.bf16 %v513
        %v1178 = vunpack.c.h.s8.bf16 %v514
        %v1179 = vunpack.c.h.s8.bf16 %v515
        %v1180 = vunpack.c.h.s8.bf16 %v516
        %v1181 = vunpack.c.l.s8.bf16 %v517
        %v1182 = vunpack.c.l.s8.bf16 %v518
        %v1183 = vunpack.c.l.s8.bf16 %v519
        %v1184 = vunpack.c.l.s8.bf16 %v520
        %v1185 = vunpack.c.h.s8.bf16 %v517
        %v1186 = vunpack.c.h.s8.bf16 %v518
        %v1187 = vunpack.c.h.s8.bf16 %v519
        %v1188 = vunpack.c.h.s8.bf16 %v520
        %v1189 = vunpack.c.l.s8.bf16 %v521
        %v1190 = vunpack.c.l.s8.bf16 %v522
        %v1191 = vunpack.c.l.s8.bf16 %v523
        %v1192 = vunpack.c.l.s8.bf16 %v524
        %v1193 = vunpack.c.h.s8.bf16 %v521
        %v1194 = vunpack.c.h.s8.bf16 %v522
        %v1195 = vunpack.c.h.s8.bf16 %v523
        %v1196 = vunpack.c.h.s8.bf16 %v524
        %v1197 = vunpack.c.l.s8.bf16 %v525
        %v1198 = vunpack.c.l.s8.bf16 %v526
        %v1199 = vunpack.c.l.s8.bf16 %v527
        %v1200 = vunpack.c.l.s8.bf16 %v528
        %v1201 = vunpack.c.h.s8.bf16 %v525
        %v1202 = vunpack.c.h.s8.bf16 %v526
        %v1203 = vunpack.c.h.s8.bf16 %v527
        %v1204 = vunpack.c.h.s8.bf16 %v528
        %v1205 = vunpack.c.l.s8.bf16 %v529
        %v1206 = vunpack.c.l.s8.bf16 %v530
        %v1207 = vunpack.c.l.s8.bf16 %v531
        %v1208 = vunpack.c.l.s8.bf16 %v532
        %v1209 = vunpack.c.h.s8.bf16 %v529
        %v1210 = vunpack.c.h.s8.bf16 %v530
        %v1211 = vunpack.c.h.s8.bf16 %v531
        %v1212 = vunpack.c.h.s8.bf16 %v532
        %v1213 = vunpack.c.l.s8.bf16 %v533
        %v1214 = vunpack.c.l.s8.bf16 %v534
        %v1215 = vunpack.c.l.s8.bf16 %v535
        %v1216 = vunpack.c.l.s8.bf16 %v536
        %v1217 = vunpack.c.h.s8.bf16 %v533
        %v1218 = vunpack.c.h.s8.bf16 %v534
        %v1219 = vunpack.c.h.s8.bf16 %v535
        %v1220 = vunpack.c.h.s8.bf16 %v536
        %v1221 = vunpack.c.l.s8.bf16 %v537
        %v1222 = vunpack.c.l.s8.bf16 %v538
        %v1223 = vunpack.c.l.s8.bf16 %v539
        %v1224 = vunpack.c.l.s8.bf16 %v540
        %v1225 = vunpack.c.h.s8.bf16 %v537
        %v1226 = vunpack.c.h.s8.bf16 %v538
        %v1227 = vunpack.c.h.s8.bf16 %v539
        %v1228 = vunpack.c.h.s8.bf16 %v540
        %v1229 = vunpack.c.l.s8.bf16 %v541
        %v1230 = vunpack.c.l.s8.bf16 %v542
        %v1231 = vunpack.c.l.s8.bf16 %v543
        %v1232 = vunpack.c.l.s8.bf16 %v544
        %v1233 = vunpack.c.h.s8.bf16 %v541
        %v1234 = vunpack.c.h.s8.bf16 %v542
        %v1235 = vunpack.c.h.s8.bf16 %v543
        %v1236 = vunpack.c.h.s8.bf16 %v544
        %v1237 = vunpack.c.l.s8.bf16 %v545
        %v1238 = vunpack.c.l.s8.bf16 %v546
        %v1239 = vunpack.c.l.s8.bf16 %v547
        %v1240 = vunpack.c.l.s8.bf16 %v548
        %v1241 = vunpack.c.h.s8.bf16 %v545
        %v1242 = vunpack.c.h.s8.bf16 %v546
        %v1243 = vunpack.c.h.s8.bf16 %v547
        %v1244 = vunpack.c.h.s8.bf16 %v548
        %v1245 = vunpack.c.l.s8.bf16 %v549
        %v1246 = vunpack.c.l.s8.bf16 %v550
        %v1247 = vunpack.c.l.s8.bf16 %v551
        %v1248 = vunpack.c.l.s8.bf16 %v552
        %v1249 = vunpack.c.h.s8.bf16 %v549
        %v1250 = vunpack.c.h.s8.bf16 %v550
        %v1251 = vunpack.c.h.s8.bf16 %v551
        %v1252 = vunpack.c.h.s8.bf16 %v552
        %v1253 = vunpack.c.l.s8.bf16 %v553
        %v1254 = vunpack.c.l.s8.bf16 %v554
        %v1255 = vunpack.c.l.s8.bf16 %v555
        %v1256 = vunpack.c.l.s8.bf16 %v556
        %v1257 = vunpack.c.h.s8.bf16 %v553
        %v1258 = vunpack.c.h.s8.bf16 %v554
        %v1259 = vunpack.c.h.s8.bf16 %v555
        %v1260 = vunpack.c.h.s8.bf16 %v556
        %v1261 = vunpack.c.l.s8.bf16 %v557
        %v1262 = vunpack.c.l.s8.bf16 %v558
        %v1263 = vunpack.c.l.s8.bf16 %v559
        %v1264 = vunpack.c.l.s8.bf16 %v560
        %v1265 = vunpack.c.h.s8.bf16 %v557
        %v1266 = vunpack.c.h.s8.bf16 %v558
        %v1267 = vunpack.c.h.s8.bf16 %v559
        %v1268 = vunpack.c.h.s8.bf16 %v560
        %v1269 = vunpack.c.l.s8.bf16 %v561
        %v1270 = vunpack.c.l.s8.bf16 %v562
        %v1271 = vunpack.c.l.s8.bf16 %v563
        %v1272 = vunpack.c.l.s8.bf16 %v564
        %v1273 = vunpack.c.h.s8.bf16 %v561
        %v1274 = vunpack.c.h.s8.bf16 %v562
        %v1275 = vunpack.c.h.s8.bf16 %v563
        %v1276 = vunpack.c.h.s8.bf16 %v564
        %v1277 = vunpack.c.l.s8.bf16 %v565
        %v1278 = vunpack.c.l.s8.bf16 %v566
        %v1279 = vunpack.c.l.s8.bf16 %v567
        %v1280 = vunpack.c.l.s8.bf16 %v568
        %v1281 = vunpack.c.h.s8.bf16 %v565
        %v1282 = vunpack.c.h.s8.bf16 %v566
        %v1283 = vunpack.c.h.s8.bf16 %v567
        %v1284 = vunpack.c.h.s8.bf16 %v568
        %v1285 = vunpack.c.l.s8.bf16 %v569
        %v1286 = vunpack.c.l.s8.bf16 %v570
        %v1287 = vunpack.c.l.s8.bf16 %v571
        %v1288 = vunpack.c.l.s8.bf16 %v572
        %v1289 = vunpack.c.h.s8.bf16 %v569
        %v1290 = vunpack.c.h.s8.bf16 %v570
        %v1291 = vunpack.c.h.s8.bf16 %v571
        %v1292 = vunpack.c.h.s8.bf16 %v572
        %v1293 = vunpack.c.l.s8.bf16 %v573
        %v1294 = vunpack.c.l.s8.bf16 %v574
        %v1295 = vunpack.c.l.s8.bf16 %v575
        %v1296 = vunpack.c.l.s8.bf16 %v576
        %v1297 = vunpack.c.h.s8.bf16 %v573
        %v1298 = vunpack.c.h.s8.bf16 %v574
        %v1299 = vunpack.c.h.s8.bf16 %v575
        %v1300 = vunpack.c.h.s8.bf16 %v576
        %v1301 = vunpack.c.l.s8.bf16 %v577
        %v1302 = vunpack.c.l.s8.bf16 %v578
        %v1303 = vunpack.c.l.s8.bf16 %v579
        %v1304 = vunpack.c.l.s8.bf16 %v580
        %v1305 = vunpack.c.h.s8.bf16 %v577
        %v1306 = vunpack.c.h.s8.bf16 %v578
        %v1307 = vunpack.c.h.s8.bf16 %v579
        %v1308 = vunpack.c.h.s8.bf16 %v580
        %v1309 = vunpack.c.l.s8.bf16 %v581
        %v1310 = vunpack.c.l.s8.bf16 %v582
        %v1311 = vunpack.c.l.s8.bf16 %v583
        %v1312 = vunpack.c.l.s8.bf16 %v584
        %v1313 = vunpack.c.h.s8.bf16 %v581
        %v1314 = vunpack.c.h.s8.bf16 %v582
        %v1315 = vunpack.c.h.s8.bf16 %v583
        %v1316 = vunpack.c.h.s8.bf16 %v584
        %v1317 = vunpack.c.l.s8.bf16 %v585
        %v1318 = vunpack.c.l.s8.bf16 %v586
        %v1319 = vunpack.c.l.s8.bf16 %v587
        %v1320 = vunpack.c.l.s8.bf16 %v588
        %v1321 = vunpack.c.h.s8.bf16 %v585
        %v1322 = vunpack.c.h.s8.bf16 %v586
        %v1323 = vunpack.c.h.s8.bf16 %v587
        %v1324 = vunpack.c.h.s8.bf16 %v588
        %v1325 = vunpack.c.l.s8.bf16 %v589
        %v1326 = vunpack.c.l.s8.bf16 %v590
        %v1327 = vunpack.c.l.s8.bf16 %v591
        %v1328 = vunpack.c.l.s8.bf16 %v592
        %v1329 = vunpack.c.h.s8.bf16 %v589
        %v1330 = vunpack.c.h.s8.bf16 %v590
        %v1331 = vunpack.c.h.s8.bf16 %v591
        %v1332 = vunpack.c.h.s8.bf16 %v592
        %v1333 = vunpack.c.l.s8.bf16 %v593
        %v1334 = vunpack.c.l.s8.bf16 %v594
        %v1335 = vunpack.c.l.s8.bf16 %v595
        %v1336 = vunpack.c.l.s8.bf16 %v596
        %v1337 = vunpack.c.h.s8.bf16 %v593
        %v1338 = vunpack.c.h.s8.bf16 %v594
        %v1339 = vunpack.c.h.s8.bf16 %v595
        %v1340 = vunpack.c.h.s8.bf16 %v596
        %v1341 = vunpack.c.l.s8.bf16 %v597
        %v1342 = vunpack.c.l.s8.bf16 %v598
        %v1343 = vunpack.c.l.s8.bf16 %v599
        %v1344 = vunpack.c.l.s8.bf16 %v600
        %v1345 = vunpack.c.h.s8.bf16 %v597
        %v1346 = vunpack.c.h.s8.bf16 %v598
        %v1347 = vunpack.c.h.s8.bf16 %v599
        %v1348 = vunpack.c.h.s8.bf16 %v600
        %v1349 = vunpack.c.l.s8.bf16 %v601
        %v1350 = vunpack.c.l.s8.bf16 %v602
        %v1351 = vunpack.c.l.s8.bf16 %v603
        %v1352 = vunpack.c.l.s8.bf16 %v604
        %v1353 = vunpack.c.h.s8.bf16 %v601
        %v1354 = vunpack.c.h.s8.bf16 %v602
        %v1355 = vunpack.c.h.s8.bf16 %v603
        %v1356 = vunpack.c.h.s8.bf16 %v604
        %v1357 = vunpack.c.l.s8.bf16 %v605
        %v1358 = vunpack.c.l.s8.bf16 %v606
        %v1359 = vunpack.c.l.s8.bf16 %v607
        %v1360 = vunpack.c.l.s8.bf16 %v608
        %v1361 = vunpack.c.h.s8.bf16 %v605
        %v1362 = vunpack.c.h.s8.bf16 %v606
        %v1363 = vunpack.c.h.s8.bf16 %v607
        %v1364 = vunpack.c.h.s8.bf16 %v608
        %v1365 = vunpack.c.l.s8.bf16 %v609
        %v1366 = vunpack.c.l.s8.bf16 %v610
        %v1367 = vunpack.c.l.s8.bf16 %v611
        %v1368 = vunpack.c.l.s8.bf16 %v612
        %v1369 = vunpack.c.h.s8.bf16 %v609
        %v1370 = vunpack.c.h.s8.bf16 %v610
        %v1371 = vunpack.c.h.s8.bf16 %v611
        %v1372 = vunpack.c.h.s8.bf16 %v612
        %v1373 = vunpack.c.l.s8.bf16 %v613
        %v1374 = vunpack.c.l.s8.bf16 %v614
        %v1375 = vunpack.c.l.s8.bf16 %v615
        %v1376 = vunpack.c.l.s8.bf16 %v616
        %v1377 = vunpack.c.h.s8.bf16 %v613
        %v1378 = vunpack.c.h.s8.bf16 %v614
        %v1379 = vunpack.c.h.s8.bf16 %v615
        %v1380 = vunpack.c.h.s8.bf16 %v616
        %v1381 = vunpack.c.l.s8.bf16 %v617
        %v1382 = vunpack.c.l.s8.bf16 %v618
        %v1383 = vunpack.c.l.s8.bf16 %v619
        %v1384 = vunpack.c.l.s8.bf16 %v620
        %v1385 = vunpack.c.h.s8.bf16 %v617
        %v1386 = vunpack.c.h.s8.bf16 %v618
        %v1387 = vunpack.c.h.s8.bf16 %v619
        %v1388 = vunpack.c.h.s8.bf16 %v620
        %v1389 = vunpack.c.l.s8.bf16 %v621
        %v1390 = vunpack.c.l.s8.bf16 %v622
        %v1391 = vunpack.c.l.s8.bf16 %v623
        %v1392 = vunpack.c.l.s8.bf16 %v624
        %v1393 = vunpack.c.h.s8.bf16 %v621
        %v1394 = vunpack.c.h.s8.bf16 %v622
        %v1395 = vunpack.c.h.s8.bf16 %v623
        %v1396 = vunpack.c.h.s8.bf16 %v624
        %v1397 = vunpack.c.l.s8.bf16 %v625
        %v1398 = vunpack.c.l.s8.bf16 %v626
        %v1399 = vunpack.c.l.s8.bf16 %v627
        %v1400 = vunpack.c.l.s8.bf16 %v628
        %v1401 = vunpack.c.h.s8.bf16 %v625
        %v1402 = vunpack.c.h.s8.bf16 %v626
        %v1403 = vunpack.c.h.s8.bf16 %v627
        %v1404 = vunpack.c.h.s8.bf16 %v628
        %v1405 = vunpack.c.l.s8.bf16 %v629
        %v1406 = vunpack.c.l.s8.bf16 %v630
        %v1407 = vunpack.c.l.s8.bf16 %v631
        %v1408 = vunpack.c.l.s8.bf16 %v632
        %v1409 = vunpack.c.h.s8.bf16 %v629
        %v1410 = vunpack.c.h.s8.bf16 %v630
        %v1411 = vunpack.c.h.s8.bf16 %v631
        %v1412 = vunpack.c.h.s8.bf16 %v632
        %v1413 = vunpack.c.l.s8.bf16 %v633
        %v1414 = vunpack.c.l.s8.bf16 %v634
        %v1415 = vunpack.c.l.s8.bf16 %v635
        %v1416 = vunpack.c.l.s8.bf16 %v636
        %v1417 = vunpack.c.h.s8.bf16 %v633
        %v1418 = vunpack.c.h.s8.bf16 %v634
        %v1419 = vunpack.c.h.s8.bf16 %v635
        %v1420 = vunpack.c.h.s8.bf16 %v636
        %v1421 = vunpack.c.l.s8.bf16 %v637
        %v1422 = vunpack.c.l.s8.bf16 %v638
        %v1423 = vunpack.c.l.s8.bf16 %v639
        %v1424 = vunpack.c.l.s8.bf16 %v640
        %v1425 = vunpack.c.h.s8.bf16 %v637
        %v1426 = vunpack.c.h.s8.bf16 %v638
        %v1427 = vunpack.c.h.s8.bf16 %v639
        %v1428 = vunpack.c.h.s8.bf16 %v640
        %v1429 = vunpack.c.l.s8.bf16 %v641
        %v1430 = vunpack.c.l.s8.bf16 %v642
        %v1431 = vunpack.c.l.s8.bf16 %v643
        %v1432 = vunpack.c.l.s8.bf16 %v644
        %v1433 = vunpack.c.h.s8.bf16 %v641
        %v1434 = vunpack.c.h.s8.bf16 %v642
        %v1435 = vunpack.c.h.s8.bf16 %v643
        %v1436 = vunpack.c.h.s8.bf16 %v644
        %v1437 = vunpack.c.l.s8.bf16 %v645
        %v1438 = vunpack.c.l.s8.bf16 %v646
        %v1439 = vunpack.c.l.s8.bf16 %v647
        %v1440 = vunpack.c.l.s8.bf16 %v648
        %v1441 = vunpack.c.h.s8.bf16 %v645
        %v1442 = vunpack.c.h.s8.bf16 %v646
        %v1443 = vunpack.c.h.s8.bf16 %v647
        %v1444 = vunpack.c.h.s8.bf16 %v648
        %v1445 = vunpack.c.l.s8.bf16 %v649
        %v1446 = vunpack.c.l.s8.bf16 %v650
        %v1447 = vunpack.c.l.s8.bf16 %v651
        %v1448 = vunpack.c.l.s8.bf16 %v652
        %v1449 = vunpack.c.h.s8.bf16 %v649
        %v1450 = vunpack.c.h.s8.bf16 %v650
        %v1451 = vunpack.c.h.s8.bf16 %v651
        %v1452 = vunpack.c.h.s8.bf16 %v652
        %v1453 = vunpack.c.l.s8.bf16 %v653
        %v1454 = vunpack.c.l.s8.bf16 %v654
        %v1455 = vunpack.c.l.s8.bf16 %v655
        %v1456 = vunpack.c.l.s8.bf16 %v656
        %v1457 = vunpack.c.h.s8.bf16 %v653
        %v1458 = vunpack.c.h.s8.bf16 %v654
        %v1459 = vunpack.c.h.s8.bf16 %v655
        %v1460 = vunpack.c.h.s8.bf16 %v656
        %v1461 = vunpack.c.l.s8.bf16 %v657
        %v1462 = vunpack.c.l.s8.bf16 %v658
        %v1463 = vunpack.c.l.s8.bf16 %v659
        %v1464 = vunpack.c.l.s8.bf16 %v660
        %v1465 = vunpack.c.h.s8.bf16 %v657
        %v1466 = vunpack.c.h.s8.bf16 %v658
        %v1467 = vunpack.c.h.s8.bf16 %v659
        %v1468 = vunpack.c.h.s8.bf16 %v660
        %v1469 = vunpack.c.l.s8.bf16 %v661
        %v1470 = vunpack.c.l.s8.bf16 %v662
        %v1471 = vunpack.c.l.s8.bf16 %v663
        %v1472 = vunpack.c.l.s8.bf16 %v664
        %v1473 = vunpack.c.h.s8.bf16 %v661
        %v1474 = vunpack.c.h.s8.bf16 %v662
        %v1475 = vunpack.c.h.s8.bf16 %v663
        %v1476 = vunpack.c.h.s8.bf16 %v664
        %v1477 = vunpack.c.l.s8.bf16 %v665
        %v1478 = vunpack.c.l.s8.bf16 %v666
        %v1479 = vunpack.c.l.s8.bf16 %v667
        %v1480 = vunpack.c.l.s8.bf16 %v668
        %v1481 = vunpack.c.h.s8.bf16 %v665
        %v1482 = vunpack.c.h.s8.bf16 %v666
        %v1483 = vunpack.c.h.s8.bf16 %v667
        %v1484 = vunpack.c.h.s8.bf16 %v668
        %v1485 = vunpack.c.l.s8.bf16 %v669
        %v1486 = vunpack.c.l.s8.bf16 %v670
        %v1487 = vunpack.c.l.s8.bf16 %v671
        %v1488 = vunpack.c.l.s8.bf16 %v672
        %v1489 = vunpack.c.h.s8.bf16 %v669
        %v1490 = vunpack.c.h.s8.bf16 %v670
        %v1491 = vunpack.c.h.s8.bf16 %v671
        %v1492 = vunpack.c.h.s8.bf16 %v672
        %v1493 = vunpack.c.l.s8.bf16 %v673
        %v1494 = vunpack.c.l.s8.bf16 %v674
        %v1495 = vunpack.c.l.s8.bf16 %v675
        %v1496 = vunpack.c.l.s8.bf16 %v676
        %v1497 = vunpack.c.h.s8.bf16 %v673
        %v1498 = vunpack.c.h.s8.bf16 %v674
        %v1499 = vunpack.c.h.s8.bf16 %v675
        %v1500 = vunpack.c.h.s8.bf16 %v676
        %v1501 = vunpack.c.l.s8.bf16 %v677
        %v1502 = vunpack.c.l.s8.bf16 %v678
        %v1503 = vunpack.c.l.s8.bf16 %v679
        %v1504 = vunpack.c.l.s8.bf16 %v680
        %v1505 = vunpack.c.h.s8.bf16 %v677
        %v1506 = vunpack.c.h.s8.bf16 %v678
        %v1507 = vunpack.c.h.s8.bf16 %v679
        %v1508 = vunpack.c.h.s8.bf16 %v680
        %v1509 = vunpack.c.l.s8.bf16 %v681
        %v1510 = vunpack.c.l.s8.bf16 %v682
        %v1511 = vunpack.c.l.s8.bf16 %v683
        %v1512 = vunpack.c.l.s8.bf16 %v684
        %v1513 = vunpack.c.h.s8.bf16 %v681
        %v1514 = vunpack.c.h.s8.bf16 %v682
        %v1515 = vunpack.c.h.s8.bf16 %v683
        %v1516 = vunpack.c.h.s8.bf16 %v684
        %v1517 = vunpack.c.l.s8.bf16 %v685
        %v1518 = vunpack.c.l.s8.bf16 %v686
        %v1519 = vunpack.c.l.s8.bf16 %v687
        %v1520 = vunpack.c.l.s8.bf16 %v688
        %v1521 = vunpack.c.h.s8.bf16 %v685
        %v1522 = vunpack.c.h.s8.bf16 %v686
        %v1523 = vunpack.c.h.s8.bf16 %v687
        %v1524 = vunpack.c.h.s8.bf16 %v688
        %v1525 = vunpack.c.l.s8.bf16 %v689
        %v1526 = vunpack.c.l.s8.bf16 %v690
        %v1527 = vunpack.c.l.s8.bf16 %v691
        %v1528 = vunpack.c.l.s8.bf16 %v692
        %v1529 = vunpack.c.h.s8.bf16 %v689
        %v1530 = vunpack.c.h.s8.bf16 %v690
        %v1531 = vunpack.c.h.s8.bf16 %v691
        %v1532 = vunpack.c.h.s8.bf16 %v692
        %v1533 = vunpack.c.l.s8.bf16 %v693
        %v1534 = vunpack.c.l.s8.bf16 %v694
        %v1535 = vunpack.c.l.s8.bf16 %v695
        %v1536 = vunpack.c.l.s8.bf16 %v696
        %v1537 = vunpack.c.h.s8.bf16 %v693
        %v1538 = vunpack.c.h.s8.bf16 %v694
        %v1539 = vunpack.c.h.s8.bf16 %v695
        %v1540 = vunpack.c.h.s8.bf16 %v696
        %v1541 = vunpack.c.l.s8.bf16 %v697
        %v1542 = vunpack.c.l.s8.bf16 %v698
        %v1543 = vunpack.c.l.s8.bf16 %v699
        %v1544 = vunpack.c.l.s8.bf16 %v700
        %v1545 = vunpack.c.h.s8.bf16 %v697
        %v1546 = vunpack.c.h.s8.bf16 %v698
        %v1547 = vunpack.c.h.s8.bf16 %v699
        %v1548 = vunpack.c.h.s8.bf16 %v700
        %v1549 = vunpack.c.l.s8.bf16 %v701
        %v1550 = vunpack.c.l.s8.bf16 %v702
        %v1551 = vunpack.c.l.s8.bf16 %v703
        %v1552 = vunpack.c.l.s8.bf16 %v704
        %v1553 = vunpack.c.h.s8.bf16 %v701
        %v1554 = vunpack.c.h.s8.bf16 %v702
        %v1555 = vunpack.c.h.s8.bf16 %v703
        %v1556 = vunpack.c.h.s8.bf16 %v704
        %v1557 = vunpack.c.l.s8.bf16 %v705
        %v1558 = vunpack.c.l.s8.bf16 %v706
        %v1559 = vunpack.c.l.s8.bf16 %v707
        %v1560 = vunpack.c.l.s8.bf16 %v708
        %v1561 = vunpack.c.h.s8.bf16 %v705
        %v1562 = vunpack.c.h.s8.bf16 %v706
        %v1563 = vunpack.c.h.s8.bf16 %v707
        %v1564 = vunpack.c.h.s8.bf16 %v708
        %v1565 = vunpack.c.l.s8.bf16 %v709
        %v1566 = vunpack.c.l.s8.bf16 %v710
        %v1567 = vunpack.c.l.s8.bf16 %v711
        %v1568 = vunpack.c.l.s8.bf16 %v712
        %v1569 = vunpack.c.h.s8.bf16 %v709
        %v1570 = vunpack.c.h.s8.bf16 %v710
        %v1571 = vunpack.c.h.s8.bf16 %v711
        %v1572 = vunpack.c.h.s8.bf16 %v712
        %v1573 = vunpack.c.l.s8.bf16 %v713
        %v1574 = vunpack.c.l.s8.bf16 %v714
        %v1575 = vunpack.c.l.s8.bf16 %v715
        %v1576 = vunpack.c.l.s8.bf16 %v716
        %v1577 = vunpack.c.h.s8.bf16 %v713
        %v1578 = vunpack.c.h.s8.bf16 %v714
        %v1579 = vunpack.c.h.s8.bf16 %v715
        %v1580 = vunpack.c.h.s8.bf16 %v716
        %v1581 = vunpack.c.l.s8.bf16 %v717
        %v1582 = vunpack.c.l.s8.bf16 %v718
        %v1583 = vunpack.c.l.s8.bf16 %v719
        %v1584 = vunpack.c.l.s8.bf16 %v720
        %v1585 = vunpack.c.h.s8.bf16 %v717
        %v1586 = vunpack.c.h.s8.bf16 %v718
        %v1587 = vunpack.c.h.s8.bf16 %v719
        %v1588 = vunpack.c.h.s8.bf16 %v720
        %v1589 = vunpack.c.l.s8.bf16 %v721
        %v1590 = vunpack.c.l.s8.bf16 %v722
        %v1591 = vunpack.c.l.s8.bf16 %v723
        %v1592 = vunpack.c.l.s8.bf16 %v724
        %v1593 = vunpack.c.h.s8.bf16 %v721
        %v1594 = vunpack.c.h.s8.bf16 %v722
        %v1595 = vunpack.c.h.s8.bf16 %v723
        %v1596 = vunpack.c.h.s8.bf16 %v724
        %v1597 = vunpack.c.l.s8.bf16 %v725
        %v1598 = vunpack.c.l.s8.bf16 %v726
        %v1599 = vunpack.c.l.s8.bf16 %v727
        %v1600 = vunpack.c.l.s8.bf16 %v728
        %v1601 = vunpack.c.h.s8.bf16 %v725
        %v1602 = vunpack.c.h.s8.bf16 %v726
        %v1603 = vunpack.c.h.s8.bf16 %v727
        %v1604 = vunpack.c.h.s8.bf16 %v728
        %v1605 = vunpack.c.l.s8.bf16 %v729
        %v1606 = vunpack.c.l.s8.bf16 %v730
        %v1607 = vunpack.c.l.s8.bf16 %v731
        %v1608 = vunpack.c.l.s8.bf16 %v732
        %v1609 = vunpack.c.h.s8.bf16 %v729
        %v1610 = vunpack.c.h.s8.bf16 %v730
        %v1611 = vunpack.c.h.s8.bf16 %v731
        %v1612 = vunpack.c.h.s8.bf16 %v732
        %v1613 = vunpack.c.l.s8.bf16 %v733
        %v1614 = vunpack.c.l.s8.bf16 %v734
        %v1615 = vunpack.c.l.s8.bf16 %v735
        %v1616 = vunpack.c.l.s8.bf16 %v736
        %v1617 = vunpack.c.h.s8.bf16 %v733
        %v1618 = vunpack.c.h.s8.bf16 %v734
        %v1619 = vunpack.c.h.s8.bf16 %v735
        %v1620 = vunpack.c.h.s8.bf16 %v736
        %v1621 = vunpack.c.l.s8.bf16 %v737
        %v1622 = vunpack.c.l.s8.bf16 %v738
        %v1623 = vunpack.c.l.s8.bf16 %v739
        %v1624 = vunpack.c.l.s8.bf16 %v740
        %v1625 = vunpack.c.h.s8.bf16 %v737
        %v1626 = vunpack.c.h.s8.bf16 %v738
        %v1627 = vunpack.c.h.s8.bf16 %v739
        %v1628 = vunpack.c.h.s8.bf16 %v740
        %v1629 = vunpack.c.l.s8.bf16 %v741
        %v1630 = vunpack.c.l.s8.bf16 %v742
        %v1631 = vunpack.c.l.s8.bf16 %v743
        %v1632 = vunpack.c.l.s8.bf16 %v744
        %v1633 = vunpack.c.h.s8.bf16 %v741
        %v1634 = vunpack.c.h.s8.bf16 %v742
        %v1635 = vunpack.c.h.s8.bf16 %v743
        %v1636 = vunpack.c.h.s8.bf16 %v744
        %v1637 = vunpack.c.l.s8.bf16 %v745
        %v1638 = vunpack.c.l.s8.bf16 %v746
        %v1639 = vunpack.c.l.s8.bf16 %v747
        %v1640 = vunpack.c.l.s8.bf16 %v748
        %v1641 = vunpack.c.h.s8.bf16 %v745
        %v1642 = vunpack.c.h.s8.bf16 %v746
        %v1643 = vunpack.c.h.s8.bf16 %v747
        %v1644 = vunpack.c.h.s8.bf16 %v748
        %v1645 = vunpack.c.l.s8.bf16 %v749
        %v1646 = vunpack.c.l.s8.bf16 %v750
        %v1647 = vunpack.c.l.s8.bf16 %v751
        %v1648 = vunpack.c.l.s8.bf16 %v752
        %v1649 = vunpack.c.h.s8.bf16 %v749
        %v1650 = vunpack.c.h.s8.bf16 %v750
        %v1651 = vunpack.c.h.s8.bf16 %v751
        %v1652 = vunpack.c.h.s8.bf16 %v752
        %v1653 = vunpack.c.l.s8.bf16 %v753
        %v1654 = vunpack.c.l.s8.bf16 %v754
        %v1655 = vunpack.c.l.s8.bf16 %v755
        %v1656 = vunpack.c.l.s8.bf16 %v756
        %v1657 = vunpack.c.h.s8.bf16 %v753
        %v1658 = vunpack.c.h.s8.bf16 %v754
        %v1659 = vunpack.c.h.s8.bf16 %v755
        %v1660 = vunpack.c.h.s8.bf16 %v756
        %v1661 = vunpack.c.l.s8.bf16 %v757
        %v1662 = vunpack.c.l.s8.bf16 %v758
        %v1663 = vunpack.c.l.s8.bf16 %v759
        %v1664 = vunpack.c.l.s8.bf16 %v760
        %v1665 = vunpack.c.h.s8.bf16 %v757
        %v1666 = vunpack.c.h.s8.bf16 %v758
        %v1667 = vunpack.c.h.s8.bf16 %v759
        %v1668 = vunpack.c.h.s8.bf16 %v760
        %v1669 = vunpack.c.l.s8.bf16 %v761
        %v1670 = vunpack.c.l.s8.bf16 %v762
        %v1671 = vunpack.c.l.s8.bf16 %v763
        %v1672 = vunpack.c.l.s8.bf16 %v764
        %v1673 = vunpack.c.h.s8.bf16 %v761
        %v1674 = vunpack.c.h.s8.bf16 %v762
        %v1675 = vunpack.c.h.s8.bf16 %v763
        %v1676 = vunpack.c.h.s8.bf16 %v764
        %v1677 = vunpack.c.l.s8.bf16 %v765
        %v1678 = vunpack.c.l.s8.bf16 %v766
        %v1679 = vunpack.c.l.s8.bf16 %v767
        %v1680 = vunpack.c.l.s8.bf16 %v768
        %v1681 = vunpack.c.h.s8.bf16 %v765
        %v1682 = vunpack.c.h.s8.bf16 %v766
        %v1683 = vunpack.c.h.s8.bf16 %v767
        %v1684 = vunpack.c.h.s8.bf16 %v768
        %v1685 = vunpack.c.l.s8.bf16 %v769
        %v1686 = vunpack.c.l.s8.bf16 %v770
        %v1687 = vunpack.c.l.s8.bf16 %v771
        %v1688 = vunpack.c.l.s8.bf16 %v772
        %v1689 = vunpack.c.h.s8.bf16 %v769
        %v1690 = vunpack.c.h.s8.bf16 %v770
        %v1691 = vunpack.c.h.s8.bf16 %v771
        %v1692 = vunpack.c.h.s8.bf16 %v772
        %v1693 = vunpack.c.l.s8.bf16 %v773
        %v1694 = vunpack.c.l.s8.bf16 %v774
        %v1695 = vunpack.c.l.s8.bf16 %v775
        %v1696 = vunpack.c.l.s8.bf16 %v776
        %v1697 = vunpack.c.h.s8.bf16 %v773
        %v1698 = vunpack.c.h.s8.bf16 %v774
        %v1699 = vunpack.c.h.s8.bf16 %v775
        %v1700 = vunpack.c.h.s8.bf16 %v776
        %v1701 = vunpack.c.l.s8.bf16 %v777
        %v1702 = vunpack.c.l.s8.bf16 %v778
        %v1703 = vunpack.c.l.s8.bf16 %v779
        %v1704 = vunpack.c.l.s8.bf16 %v780
        %v1705 = vunpack.c.h.s8.bf16 %v777
        %v1706 = vunpack.c.h.s8.bf16 %v778
        %v1707 = vunpack.c.h.s8.bf16 %v779
        %v1708 = vunpack.c.h.s8.bf16 %v780
        %v1709 = vunpack.c.l.s8.bf16 %v781
        %v1710 = vunpack.c.l.s8.bf16 %v782
        %v1711 = vunpack.c.l.s8.bf16 %v783
        %v1712 = vunpack.c.l.s8.bf16 %v784
        %v1713 = vunpack.c.h.s8.bf16 %v781
        %v1714 = vunpack.c.h.s8.bf16 %v782
        %v1715 = vunpack.c.h.s8.bf16 %v783
        %v1716 = vunpack.c.h.s8.bf16 %v784
        %v1717 = vunpack.c.l.s8.bf16 %v785
        %v1718 = vunpack.c.l.s8.bf16 %v786
        %v1719 = vunpack.c.l.s8.bf16 %v787
        %v1720 = vunpack.c.l.s8.bf16 %v788
        %v1721 = vunpack.c.h.s8.bf16 %v785
        %v1722 = vunpack.c.h.s8.bf16 %v786
        %v1723 = vunpack.c.h.s8.bf16 %v787
        %v1724 = vunpack.c.h.s8.bf16 %v788
        %v1725 = vunpack.c.l.s8.bf16 %v789
        %v1726 = vunpack.c.l.s8.bf16 %v790
        %v1727 = vunpack.c.l.s8.bf16 %v791
        %v1728 = vunpack.c.l.s8.bf16 %v792
        %v1729 = vunpack.c.h.s8.bf16 %v789
        %v1730 = vunpack.c.h.s8.bf16 %v790
        %v1731 = vunpack.c.h.s8.bf16 %v791
        %v1732 = vunpack.c.h.s8.bf16 %v792
        %v1733 = vunpack.c.l.s8.bf16 %v793
        %v1734 = vunpack.c.l.s8.bf16 %v794
        %v1735 = vunpack.c.l.s8.bf16 %v795
        %v1736 = vunpack.c.l.s8.bf16 %v796
        %v1737 = vunpack.c.h.s8.bf16 %v793
        %v1738 = vunpack.c.h.s8.bf16 %v794
        %v1739 = vunpack.c.h.s8.bf16 %v795
        %v1740 = vunpack.c.h.s8.bf16 %v796
        %v1741 = vunpack.c.l.s8.bf16 %v797
        %v1742 = vunpack.c.l.s8.bf16 %v798
        %v1743 = vunpack.c.l.s8.bf16 %v799
        %v1744 = vunpack.c.l.s8.bf16 %v800
        %v1745 = vunpack.c.h.s8.bf16 %v797
        %v1746 = vunpack.c.h.s8.bf16 %v798
        %v1747 = vunpack.c.h.s8.bf16 %v799
        %v1748 = vunpack.c.h.s8.bf16 %v800
        %v1749 = vunpack.c.l.s8.bf16 %v801
        %v1750 = vunpack.c.l.s8.bf16 %v802
        %v1751 = vunpack.c.l.s8.bf16 %v803
        %v1752 = vunpack.c.l.s8.bf16 %v804
        %v1753 = vunpack.c.h.s8.bf16 %v801
        %v1754 = vunpack.c.h.s8.bf16 %v802
        %v1755 = vunpack.c.h.s8.bf16 %v803
        %v1756 = vunpack.c.h.s8.bf16 %v804
        %v1757 = vunpack.c.l.s8.bf16 %v805
        %v1758 = vunpack.c.l.s8.bf16 %v806
        %v1759 = vunpack.c.l.s8.bf16 %v807
        %v1760 = vunpack.c.l.s8.bf16 %v808
        %v1761 = vunpack.c.h.s8.bf16 %v805
        %v1762 = vunpack.c.h.s8.bf16 %v806
        %v1763 = vunpack.c.h.s8.bf16 %v807
        %v1764 = vunpack.c.h.s8.bf16 %v808
        %v1765 = vunpack.c.l.s8.bf16 %v809
        %v1766 = vunpack.c.l.s8.bf16 %v810
        %v1767 = vunpack.c.l.s8.bf16 %v811
        %v1768 = vunpack.c.l.s8.bf16 %v812
        %v1769 = vunpack.c.h.s8.bf16 %v809
        %v1770 = vunpack.c.h.s8.bf16 %v810
        %v1771 = vunpack.c.h.s8.bf16 %v811
        %v1772 = vunpack.c.h.s8.bf16 %v812
        %v1773 = vunpack.c.l.s8.bf16 %v813
        %v1774 = vunpack.c.l.s8.bf16 %v814
        %v1775 = vunpack.c.l.s8.bf16 %v815
        %v1776 = vunpack.c.l.s8.bf16 %v816
        %v1777 = vunpack.c.h.s8.bf16 %v813
        %v1778 = vunpack.c.h.s8.bf16 %v814
        %v1779 = vunpack.c.h.s8.bf16 %v815
        %v1780 = vunpack.c.h.s8.bf16 %v816
        %v1781 = vunpack.c.l.s8.bf16 %v817
        %v1782 = vunpack.c.l.s8.bf16 %v818
        %v1783 = vunpack.c.l.s8.bf16 %v819
        %v1784 = vunpack.c.l.s8.bf16 %v820
        %v1785 = vunpack.c.h.s8.bf16 %v817
        %v1786 = vunpack.c.h.s8.bf16 %v818
        %v1787 = vunpack.c.h.s8.bf16 %v819
        %v1788 = vunpack.c.h.s8.bf16 %v820
        %v1789 = vunpack.c.l.s8.bf16 %v821
        %v1790 = vunpack.c.l.s8.bf16 %v822
        %v1791 = vunpack.c.l.s8.bf16 %v823
        %v1792 = vunpack.c.l.s8.bf16 %v824
        %v1793 = vunpack.c.h.s8.bf16 %v821
        %v1794 = vunpack.c.h.s8.bf16 %v822
        %v1795 = vunpack.c.h.s8.bf16 %v823
        %v1796 = vunpack.c.h.s8.bf16 %v824
        %v1797 = vunpack.c.l.s8.bf16 %v825
        %v1798 = vunpack.c.l.s8.bf16 %v826
        %v1799 = vunpack.c.l.s8.bf16 %v827
        %v1800 = vunpack.c.l.s8.bf16 %v828
        %v1801 = vunpack.c.h.s8.bf16 %v825
        %v1802 = vunpack.c.h.s8.bf16 %v826
        %v1803 = vunpack.c.h.s8.bf16 %v827
        %v1804 = vunpack.c.h.s8.bf16 %v828
        %v1805 = vunpack.c.l.s8.bf16 %v829
        %v1806 = vunpack.c.l.s8.bf16 %v830
        %v1807 = vunpack.c.l.s8.bf16 %v831
        %v1808 = vunpack.c.l.s8.bf16 %v832
        %v1809 = vunpack.c.h.s8.bf16 %v829
        %v1810 = vunpack.c.h.s8.bf16 %v830
        %v1811 = vunpack.c.h.s8.bf16 %v831
        %v1812 = vunpack.c.h.s8.bf16 %v832
        %v1813 = vunpack.c.l.s8.bf16 %v833
        %v1814 = vunpack.c.l.s8.bf16 %v834
        %v1815 = vunpack.c.l.s8.bf16 %v835
        %v1816 = vunpack.c.l.s8.bf16 %v836
        %v1817 = vunpack.c.h.s8.bf16 %v833
        %v1818 = vunpack.c.h.s8.bf16 %v834
        %v1819 = vunpack.c.h.s8.bf16 %v835
        %v1820 = vunpack.c.h.s8.bf16 %v836
        %v1821 = vunpack.c.l.s8.bf16 %v837
        %v1822 = vunpack.c.l.s8.bf16 %v838
        %v1823 = vunpack.c.l.s8.bf16 %v839
        %v1824 = vunpack.c.l.s8.bf16 %v840
        %v1825 = vunpack.c.h.s8.bf16 %v837
        %v1826 = vunpack.c.h.s8.bf16 %v838
        %v1827 = vunpack.c.h.s8.bf16 %v839
        %v1828 = vunpack.c.h.s8.bf16 %v840
        %v1829 = vunpack.c.l.s8.bf16 %v841
        %v1830 = vunpack.c.l.s8.bf16 %v842
        %v1831 = vunpack.c.l.s8.bf16 %v843
        %v1832 = vunpack.c.l.s8.bf16 %v844
        %v1833 = vunpack.c.h.s8.bf16 %v841
        %v1834 = vunpack.c.h.s8.bf16 %v842
        %v1835 = vunpack.c.h.s8.bf16 %v843
        %v1836 = vunpack.c.h.s8.bf16 %v844
        %v1837 = vunpack.c.l.s8.bf16 %v845
        %v1838 = vunpack.c.l.s8.bf16 %v846
        %v1839 = vunpack.c.l.s8.bf16 %v847
        %v1840 = vunpack.c.l.s8.bf16 %v848
        %v1841 = vunpack.c.h.s8.bf16 %v845
        %v1842 = vunpack.c.h.s8.bf16 %v846
        %v1843 = vunpack.c.h.s8.bf16 %v847
        %v1844 = vunpack.c.h.s8.bf16 %v848
        %v1845 = vunpack.c.l.s8.bf16 %v849
        %v1846 = vunpack.c.l.s8.bf16 %v850
        %v1847 = vunpack.c.l.s8.bf16 %v851
        %v1848 = vunpack.c.l.s8.bf16 %v852
        %v1849 = vunpack.c.h.s8.bf16 %v849
        %v1850 = vunpack.c.h.s8.bf16 %v850
        %v1851 = vunpack.c.h.s8.bf16 %v851
        %v1852 = vunpack.c.h.s8.bf16 %v852
        %v1853 = vunpack.c.l.s8.bf16 %v853
        %v1854 = vunpack.c.l.s8.bf16 %v854
        %v1855 = vunpack.c.l.s8.bf16 %v855
        %v1856 = vunpack.c.l.s8.bf16 %v856
        %v1857 = vunpack.c.h.s8.bf16 %v853
        %v1858 = vunpack.c.h.s8.bf16 %v854
        %v1859 = vunpack.c.h.s8.bf16 %v855
        %v1860 = vunpack.c.h.s8.bf16 %v856
        %v1861 = vunpack.c.l.s8.bf16 %v857
        %v1862 = vunpack.c.l.s8.bf16 %v858
        %v1863 = vunpack.c.l.s8.bf16 %v859
        %v1864 = vunpack.c.l.s8.bf16 %v860
        %v1865 = vunpack.c.h.s8.bf16 %v857
        %v1866 = vunpack.c.h.s8.bf16 %v858
        %v1867 = vunpack.c.h.s8.bf16 %v859
        %v1868 = vunpack.c.h.s8.bf16 %v860
        %v1869 = vunpack.c.l.s8.bf16 %v861
        %v1870 = vunpack.c.l.s8.bf16 %v862
        %v1871 = vunpack.c.l.s8.bf16 %v863
        %v1872 = vunpack.c.l.s8.bf16 %v864
        %v1873 = vunpack.c.h.s8.bf16 %v861
        %v1874 = vunpack.c.h.s8.bf16 %v862
        %v1875 = vunpack.c.h.s8.bf16 %v863
        %v1876 = vunpack.c.h.s8.bf16 %v864
        %v1877 = vunpack.c.l.s8.bf16 %v865
        %v1878 = vunpack.c.l.s8.bf16 %v866
        %v1879 = vunpack.c.l.s8.bf16 %v867
        %v1880 = vunpack.c.l.s8.bf16 %v868
        %v1881 = vunpack.c.h.s8.bf16 %v865
        %v1882 = vunpack.c.h.s8.bf16 %v866
        %v1883 = vunpack.c.h.s8.bf16 %v867
        %v1884 = vunpack.c.h.s8.bf16 %v868
        %v1885 = vunpack.c.l.s8.bf16 %v869
        %v1886 = vunpack.c.l.s8.bf16 %v870
        %v1887 = vunpack.c.l.s8.bf16 %v871
        %v1888 = vunpack.c.l.s8.bf16 %v872
        %v1889 = vunpack.c.h.s8.bf16 %v869
        %v1890 = vunpack.c.h.s8.bf16 %v870
        %v1891 = vunpack.c.h.s8.bf16 %v871
        %v1892 = vunpack.c.h.s8.bf16 %v872
        %v1893 = vunpack.c.l.s8.bf16 %v873
        %v1894 = vunpack.c.l.s8.bf16 %v874
        %v1895 = vunpack.c.l.s8.bf16 %v875
        %v1896 = vunpack.c.l.s8.bf16 %v876
        %v1897 = vunpack.c.h.s8.bf16 %v873
        %v1898 = vunpack.c.h.s8.bf16 %v874
        %v1899 = vunpack.c.h.s8.bf16 %v875
        %v1900 = vunpack.c.h.s8.bf16 %v876
        %v1905 = vcombine.high %v361, %v361
        %v1907 = vunpack.c.l.s4 1966171168
        %v1908 = vunpack.c.0.s8 %v1907
        %v1909 = vlaneseq
        %v1910 = vshrl.u32 %v1909, 7
        %v1911 = vsub.s32 %v1908, %v1910
        %v1912 = vrot.slane %v361, %v1911
        %v1914 = vunpack.c.l.s4 1966171168
        %v1915 = vunpack.c.0.s8 %v1914
        %v1916 = vlaneseq
        %v1917 = vshrl.u32 %v1916, 7
        %v1918 = vsub.s32 %v1915, %v1917
        %v1919 = vrot.slane %v1905, %v1918
        %v1920 = vcombine.high %v1912, %v1912
        %v1921 = vcombine.high %v1919, %v1919
        %v1923 = vunpack.c.l.s4 1966171168
        %v1924 = vunpack.c.0.s8 %v1923
        %v1925 = vlaneseq
        %v1926 = vshrl.u32 %v1925, 7
        %v1927 = vsub.s32 %v1924, %v1926
        %v1928 = vrot.slane %v1912, %v1927
        %v1930 = vunpack.c.l.s4 1966171168
        %v1931 = vunpack.c.0.s8 %v1930
        %v1932 = vlaneseq
        %v1933 = vshrl.u32 %v1932, 7
        %v1934 = vsub.s32 %v1931, %v1933
        %v1935 = vrot.slane %v1919, %v1934
        %v1937 = vunpack.c.l.s4 1966171168
        %v1938 = vunpack.c.0.s8 %v1937
        %v1939 = vlaneseq
        %v1940 = vshrl.u32 %v1939, 7
        %v1941 = vsub.s32 %v1938, %v1940
        %v1942 = vrot.slane %v1920, %v1941
        %v1944 = vunpack.c.l.s4 1966171168
        %v1945 = vunpack.c.0.s8 %v1944
        %v1946 = vlaneseq
        %v1947 = vshrl.u32 %v1946, 7
        %v1948 = vsub.s32 %v1945, %v1947
        %v1949 = vrot.slane %v1921, %v1948
        %v1950 = vcombine.high %v1928, %v1928
        %v1951 = vcombine.high %v1935, %v1935
        %v1952 = vcombine.high %v1942, %v1942
        %v1953 = vcombine.high %v1949, %v1949
        %v1954 = vcombine.high %v362, %v362
        %v1956 = vunpack.c.l.s4 1966171168
        %v1957 = vunpack.c.0.s8 %v1956
        %v1958 = vlaneseq
        %v1959 = vshrl.u32 %v1958, 7
        %v1960 = vsub.s32 %v1957, %v1959
        %v1961 = vrot.slane %v362, %v1960
        %v1963 = vunpack.c.l.s4 1966171168
        %v1964 = vunpack.c.0.s8 %v1963
        %v1965 = vlaneseq
        %v1966 = vshrl.u32 %v1965, 7
        %v1967 = vsub.s32 %v1964, %v1966
        %v1968 = vrot.slane %v1954, %v1967
        %v1969 = vcombine.high %v1961, %v1961
        %v1970 = vcombine.high %v1968, %v1968
        %v1972 = vunpack.c.l.s4 1966171168
        %v1973 = vunpack.c.0.s8 %v1972
        %v1974 = vlaneseq
        %v1975 = vshrl.u32 %v1974, 7
        %v1976 = vsub.s32 %v1973, %v1975
        %v1977 = vrot.slane %v1961, %v1976
        %v1979 = vunpack.c.l.s4 1966171168
        %v1980 = vunpack.c.0.s8 %v1979
        %v1981 = vlaneseq
        %v1982 = vshrl.u32 %v1981, 7
        %v1983 = vsub.s32 %v1980, %v1982
        %v1984 = vrot.slane %v1968, %v1983
        %v1986 = vunpack.c.l.s4 1966171168
        %v1987 = vunpack.c.0.s8 %v1986
        %v1988 = vlaneseq
        %v1989 = vshrl.u32 %v1988, 7
        %v1990 = vsub.s32 %v1987, %v1989
        %v1991 = vrot.slane %v1969, %v1990
        %v1993 = vunpack.c.l.s4 1966171168
        %v1994 = vunpack.c.0.s8 %v1993
        %v1995 = vlaneseq
        %v1996 = vshrl.u32 %v1995, 7
        %v1997 = vsub.s32 %v1994, %v1996
        %v1998 = vrot.slane %v1970, %v1997
        %v1999 = vcombine.high %v1977, %v1977
        %v2000 = vcombine.high %v1984, %v1984
        %v2001 = vcombine.high %v1991, %v1991
        %v2002 = vcombine.high %v1998, %v1998
        %v2003 = vcombine.high %v363, %v363
        %v2005 = vunpack.c.l.s4 1966171168
        %v2006 = vunpack.c.0.s8 %v2005
        %v2007 = vlaneseq
        %v2008 = vshrl.u32 %v2007, 7
        %v2009 = vsub.s32 %v2006, %v2008
        %v2010 = vrot.slane %v363, %v2009
        %v2012 = vunpack.c.l.s4 1966171168
        %v2013 = vunpack.c.0.s8 %v2012
        %v2014 = vlaneseq
        %v2015 = vshrl.u32 %v2014, 7
        %v2016 = vsub.s32 %v2013, %v2015
        %v2017 = vrot.slane %v2003, %v2016
        %v2018 = vcombine.high %v2010, %v2010
        %v2019 = vcombine.high %v2017, %v2017
        %v2021 = vunpack.c.l.s4 1966171168
        %v2022 = vunpack.c.0.s8 %v2021
        %v2023 = vlaneseq
        %v2024 = vshrl.u32 %v2023, 7
        %v2025 = vsub.s32 %v2022, %v2024
        %v2026 = vrot.slane %v2010, %v2025
        %v2028 = vunpack.c.l.s4 1966171168
        %v2029 = vunpack.c.0.s8 %v2028
        %v2030 = vlaneseq
        %v2031 = vshrl.u32 %v2030, 7
        %v2032 = vsub.s32 %v2029, %v2031
        %v2033 = vrot.slane %v2017, %v2032
        %v2035 = vunpack.c.l.s4 1966171168
        %v2036 = vunpack.c.0.s8 %v2035
        %v2037 = vlaneseq
        %v2038 = vshrl.u32 %v2037, 7
        %v2039 = vsub.s32 %v2036, %v2038
        %v2040 = vrot.slane %v2018, %v2039
        %v2042 = vunpack.c.l.s4 1966171168
        %v2043 = vunpack.c.0.s8 %v2042
        %v2044 = vlaneseq
        %v2045 = vshrl.u32 %v2044, 7
        %v2046 = vsub.s32 %v2043, %v2045
        %v2047 = vrot.slane %v2019, %v2046
        %v2048 = vcombine.high %v2026, %v2026
        %v2049 = vcombine.high %v2033, %v2033
        %v2050 = vcombine.high %v2040, %v2040
        %v2051 = vcombine.high %v2047, %v2047
        %v2052 = vcombine.high %v364, %v364
        %v2054 = vunpack.c.l.s4 1966171168
        %v2055 = vunpack.c.0.s8 %v2054
        %v2056 = vlaneseq
        %v2057 = vshrl.u32 %v2056, 7
        %v2058 = vsub.s32 %v2055, %v2057
        %v2059 = vrot.slane %v364, %v2058
        %v2061 = vunpack.c.l.s4 1966171168
        %v2062 = vunpack.c.0.s8 %v2061
        %v2063 = vlaneseq
        %v2064 = vshrl.u32 %v2063, 7
        %v2065 = vsub.s32 %v2062, %v2064
        %v2066 = vrot.slane %v2052, %v2065
        %v2067 = vcombine.high %v2059, %v2059
        %v2068 = vcombine.high %v2066, %v2066
        %v2070 = vunpack.c.l.s4 1966171168
        %v2071 = vunpack.c.0.s8 %v2070
        %v2072 = vlaneseq
        %v2073 = vshrl.u32 %v2072, 7
        %v2074 = vsub.s32 %v2071, %v2073
        %v2075 = vrot.slane %v2059, %v2074
        %v2077 = vunpack.c.l.s4 1966171168
        %v2078 = vunpack.c.0.s8 %v2077
        %v2079 = vlaneseq
        %v2080 = vshrl.u32 %v2079, 7
        %v2081 = vsub.s32 %v2078, %v2080
        %v2082 = vrot.slane %v2066, %v2081
        %v2084 = vunpack.c.l.s4 1966171168
        %v2085 = vunpack.c.0.s8 %v2084
        %v2086 = vlaneseq
        %v2087 = vshrl.u32 %v2086, 7
        %v2088 = vsub.s32 %v2085, %v2087
        %v2089 = vrot.slane %v2067, %v2088
        %v2091 = vunpack.c.l.s4 1966171168
        %v2092 = vunpack.c.0.s8 %v2091
        %v2093 = vlaneseq
        %v2094 = vshrl.u32 %v2093, 7
        %v2095 = vsub.s32 %v2092, %v2094
        %v2096 = vrot.slane %v2068, %v2095
        %v2097 = vcombine.high %v2075, %v2075
        %v2098 = vcombine.high %v2082, %v2082
        %v2099 = vcombine.high %v2089, %v2089
        %v2100 = vcombine.high %v2096, %v2096
        %2133 = vmatprep.subr.bf16.mxu0 %v906
        %2134 = vmatpush1.bf16.msra.mxu0 %v905
        %2135 = vmatprep.subr.bf16.mxu0 %v902
        %2136 = vmatpush1.bf16.msra.mxu0 %v901
        %2137 = vmatprep.subr.bf16.mxu0 %v898
        %2138 = vmatpush1.bf16.msra.mxu0 %v897
        %2139 = vmatprep.subr.bf16.mxu0 %v894
        %2140 = vmatpush1.bf16.msra.mxu0 %v893
        %2141 = vmatprep.subr.bf16.mxu0 %v890
        %2142 = vmatpush1.bf16.msra.mxu0 %v889
        %2143 = vmatprep.subr.bf16.mxu0 %v886
        %2144 = vmatpush1.bf16.msra.mxu0 %v885
        %2145 = vmatprep.subr.bf16.mxu0 %v882
        %2146 = vmatpush1.bf16.msra.mxu0 %v881
        %2147 = vmatprep.subr.bf16.mxu0 %v878
        %2148 = vmatpush1.bf16.msra.mxu0 %v877
        %2149 = vmatprep.subr.bf16.mxu0 %v938
        %2150 = vmatpush2.bf16.msra.mxu0 %v937
        %2151 = vmatprep.subr.bf16.mxu0 %v934
        %2152 = vmatpush2.bf16.msra.mxu0 %v933
        %2153 = vmatprep.subr.bf16.mxu0 %v930
        %2154 = vmatpush2.bf16.msra.mxu0 %v929
        %2155 = vmatprep.subr.bf16.mxu0 %v926
        %2156 = vmatpush2.bf16.msra.mxu0 %v925
        %2157 = vmatprep.subr.bf16.mxu0 %v922
        %2158 = vmatpush2.bf16.msra.mxu0 %v921
        %2159 = vmatprep.subr.bf16.mxu0 %v918
        %2160 = vmatpush2.bf16.msra.mxu0 %v917
        %2161 = vmatprep.subr.bf16.mxu0 %v914
        %2162 = vmatpush2.bf16.msra.mxu0 %v913
        %2163 = vmatprep.subr.bf16.mxu0 %v910
        %2164 = vmatpush2.bf16.msra.mxu0 %v909
        %2165 = vmatprep.mubr.bf16.mxu0 %v1942
        %2166 = vmatmul.mubr.bf16.gmra.mxu0 %v1928
        %v2167 = vpop.f32.mrf.mxu0
        %v2168 = vadd.f32 0.0, %v2167
        %v2169 = vpop.f32.mrf.mxu0
        %v2170 = vadd.f32 0.0, %v2169
        %v2171 = vpop.f32.mrf.mxu0
        %v2172 = vpop.f32.mrf.mxu0
        %2173 = vdwg.mxu0
        %2174 = vmatprep.subr.bf16.mxu0 %v970
        %2175 = vmatpush1.bf16.msra.mxu0 %v969
        %2176 = vmatprep.subr.bf16.mxu0 %v966
        %2177 = vmatpush1.bf16.msra.mxu0 %v965
        %2178 = vmatprep.subr.bf16.mxu0 %v962
        %2179 = vmatpush1.bf16.msra.mxu0 %v961
        %2180 = vmatprep.subr.bf16.mxu0 %v958
        %2181 = vmatpush1.bf16.msra.mxu0 %v957
        %2182 = vmatprep.subr.bf16.mxu0 %v954
        %2183 = vmatpush1.bf16.msra.mxu0 %v953
        %2184 = vmatprep.subr.bf16.mxu0 %v950
        %2185 = vmatpush1.bf16.msra.mxu0 %v949
        %2186 = vmatprep.subr.bf16.mxu0 %v946
        %2187 = vmatpush1.bf16.msra.mxu0 %v945
        %2188 = vmatprep.subr.bf16.mxu0 %v942
        %2189 = vmatpush1.bf16.msra.mxu0 %v941
        %2190 = vmatprep.subr.bf16.mxu0 %v1002
        %2191 = vmatpush2.bf16.msra.mxu0 %v1001
        %2192 = vmatprep.subr.bf16.mxu0 %v998
        %2193 = vmatpush2.bf16.msra.mxu0 %v997
        %2194 = vmatprep.subr.bf16.mxu0 %v994
        %2195 = vmatpush2.bf16.msra.mxu0 %v993
        %2196 = vmatprep.subr.bf16.mxu0 %v990
        %2197 = vmatpush2.bf16.msra.mxu0 %v989
        %2198 = vmatprep.subr.bf16.mxu0 %v986
        %2199 = vmatpush2.bf16.msra.mxu0 %v985
        %2200 = vmatprep.subr.bf16.mxu0 %v982
        %2201 = vmatpush2.bf16.msra.mxu0 %v981
        %2202 = vmatprep.subr.bf16.mxu0 %v978
        %2203 = vmatpush2.bf16.msra.mxu0 %v977
        %2204 = vmatprep.subr.bf16.mxu0 %v974
        %2205 = vmatpush2.bf16.msra.mxu0 %v973
        %2206 = vmatprep.mubr.bf16.mxu0 %v1952
        %2207 = vmatmul.mubr.bf16.gmra.mxu0 %v1950
        %v2208 = vpop.f32.mrf.mxu0
        %v2209 = vadd.f32 %v2168, %v2208
        %v2210 = vpop.f32.mrf.mxu0
        %v2211 = vadd.f32 %v2170, %v2210
        %v2212 = vpop.f32.mrf.mxu0
        %v2213 = vpop.f32.mrf.mxu0
        %2214 = vdwg.mxu0
        %2215 = vmatprep.subr.bf16.mxu0 %v1034
        %2216 = vmatpush1.bf16.msra.mxu0 %v1033
        %2217 = vmatprep.subr.bf16.mxu0 %v1030
        %2218 = vmatpush1.bf16.msra.mxu0 %v1029
        %2219 = vmatprep.subr.bf16.mxu0 %v1026
        %2220 = vmatpush1.bf16.msra.mxu0 %v1025
        %2221 = vmatprep.subr.bf16.mxu0 %v1022
        %2222 = vmatpush1.bf16.msra.mxu0 %v1021
        %2223 = vmatprep.subr.bf16.mxu0 %v1018
        %2224 = vmatpush1.bf16.msra.mxu0 %v1017
        %2225 = vmatprep.subr.bf16.mxu0 %v1014
        %2226 = vmatpush1.bf16.msra.mxu0 %v1013
        %2227 = vmatprep.subr.bf16.mxu0 %v1010
        %2228 = vmatpush1.bf16.msra.mxu0 %v1009
        %2229 = vmatprep.subr.bf16.mxu0 %v1006
        %2230 = vmatpush1.bf16.msra.mxu0 %v1005
        %2231 = vmatprep.subr.bf16.mxu0 %v1066
        %2232 = vmatpush2.bf16.msra.mxu0 %v1065
        %2233 = vmatprep.subr.bf16.mxu0 %v1062
        %2234 = vmatpush2.bf16.msra.mxu0 %v1061
        %2235 = vmatprep.subr.bf16.mxu0 %v1058
        %2236 = vmatpush2.bf16.msra.mxu0 %v1057
        %2237 = vmatprep.subr.bf16.mxu0 %v1054
        %2238 = vmatpush2.bf16.msra.mxu0 %v1053
        %2239 = vmatprep.subr.bf16.mxu0 %v1050
        %2240 = vmatpush2.bf16.msra.mxu0 %v1049
        %2241 = vmatprep.subr.bf16.mxu0 %v1046
        %2242 = vmatpush2.bf16.msra.mxu0 %v1045
        %2243 = vmatprep.subr.bf16.mxu0 %v1042
        %2244 = vmatpush2.bf16.msra.mxu0 %v1041
        %2245 = vmatprep.subr.bf16.mxu0 %v1038
        %2246 = vmatpush2.bf16.msra.mxu0 %v1037
        %2247 = vmatprep.mubr.bf16.mxu0 %v1949
        %2248 = vmatmul.mubr.bf16.gmra.mxu0 %v1935
        %v2249 = vpop.f32.mrf.mxu0
        %v2250 = vadd.f32 %v2209, %v2249
        %v2251 = vpop.f32.mrf.mxu0
        %v2252 = vadd.f32 %v2211, %v2251
        %v2253 = vpop.f32.mrf.mxu0
        %v2254 = vpop.f32.mrf.mxu0
        %2255 = vdwg.mxu0
        %2256 = vmatprep.subr.bf16.mxu0 %v1098
        %2257 = vmatpush1.bf16.msra.mxu0 %v1097
        %2258 = vmatprep.subr.bf16.mxu0 %v1094
        %2259 = vmatpush1.bf16.msra.mxu0 %v1093
        %2260 = vmatprep.subr.bf16.mxu0 %v1090
        %2261 = vmatpush1.bf16.msra.mxu0 %v1089
        %2262 = vmatprep.subr.bf16.mxu0 %v1086
        %2263 = vmatpush1.bf16.msra.mxu0 %v1085
        %2264 = vmatprep.subr.bf16.mxu0 %v1082
        %2265 = vmatpush1.bf16.msra.mxu0 %v1081
        %2266 = vmatprep.subr.bf16.mxu0 %v1078
        %2267 = vmatpush1.bf16.msra.mxu0 %v1077
        %2268 = vmatprep.subr.bf16.mxu0 %v1074
        %2269 = vmatpush1.bf16.msra.mxu0 %v1073
        %2270 = vmatprep.subr.bf16.mxu0 %v1070
        %2271 = vmatpush1.bf16.msra.mxu0 %v1069
        %2272 = vmatprep.subr.bf16.mxu0 %v1130
        %2273 = vmatpush2.bf16.msra.mxu0 %v1129
        %2274 = vmatprep.subr.bf16.mxu0 %v1126
        %2275 = vmatpush2.bf16.msra.mxu0 %v1125
        %2276 = vmatprep.subr.bf16.mxu0 %v1122
        %2277 = vmatpush2.bf16.msra.mxu0 %v1121
        %2278 = vmatprep.subr.bf16.mxu0 %v1118
        %2279 = vmatpush2.bf16.msra.mxu0 %v1117
        %2280 = vmatprep.subr.bf16.mxu0 %v1114
        %2281 = vmatpush2.bf16.msra.mxu0 %v1113
        %2282 = vmatprep.subr.bf16.mxu0 %v1110
        %2283 = vmatpush2.bf16.msra.mxu0 %v1109
        %2284 = vmatprep.subr.bf16.mxu0 %v1106
        %2285 = vmatpush2.bf16.msra.mxu0 %v1105
        %2286 = vmatprep.subr.bf16.mxu0 %v1102
        %2287 = vmatpush2.bf16.msra.mxu0 %v1101
        %2288 = vmatprep.mubr.bf16.mxu0 %v1953
        %2289 = vmatmul.mubr.bf16.gmra.mxu0 %v1951
        %v2290 = vpop.f32.mrf.mxu0
        %v2291 = vadd.f32 %v2250, %v2290
        %v2292 = vpop.f32.mrf.mxu0
        %v2293 = vadd.f32 %v2252, %v2292
        %v2294 = vpop.f32.mrf.mxu0
        %v2295 = vpop.f32.mrf.mxu0
        %2296 = vdwg.mxu0
        %2297 = vmatprep.subr.bf16.mxu0 %v1162
        %2298 = vmatpush1.bf16.msra.mxu0 %v1161
        %2299 = vmatprep.subr.bf16.mxu0 %v1158
        %2300 = vmatpush1.bf16.msra.mxu0 %v1157
        %2301 = vmatprep.subr.bf16.mxu0 %v1154
        %2302 = vmatpush1.bf16.msra.mxu0 %v1153
        %2303 = vmatprep.subr.bf16.mxu0 %v1150
        %2304 = vmatpush1.bf16.msra.mxu0 %v1149
        %2305 = vmatprep.subr.bf16.mxu0 %v1146
        %2306 = vmatpush1.bf16.msra.mxu0 %v1145
        %2307 = vmatprep.subr.bf16.mxu0 %v1142
        %2308 = vmatpush1.bf16.msra.mxu0 %v1141
        %2309 = vmatprep.subr.bf16.mxu0 %v1138
        %2310 = vmatpush1.bf16.msra.mxu0 %v1137
        %2311 = vmatprep.subr.bf16.mxu0 %v1134
        %2312 = vmatpush1.bf16.msra.mxu0 %v1133
        %2313 = vmatprep.subr.bf16.mxu0 %v1194
        %2314 = vmatpush2.bf16.msra.mxu0 %v1193
        %2315 = vmatprep.subr.bf16.mxu0 %v1190
        %2316 = vmatpush2.bf16.msra.mxu0 %v1189
        %2317 = vmatprep.subr.bf16.mxu0 %v1186
        %2318 = vmatpush2.bf16.msra.mxu0 %v1185
        %2319 = vmatprep.subr.bf16.mxu0 %v1182
        %2320 = vmatpush2.bf16.msra.mxu0 %v1181
        %2321 = vmatprep.subr.bf16.mxu0 %v1178
        %2322 = vmatpush2.bf16.msra.mxu0 %v1177
        %2323 = vmatprep.subr.bf16.mxu0 %v1174
        %2324 = vmatpush2.bf16.msra.mxu0 %v1173
        %2325 = vmatprep.subr.bf16.mxu0 %v1170
        %2326 = vmatpush2.bf16.msra.mxu0 %v1169
        %2327 = vmatprep.subr.bf16.mxu0 %v1166
        %2328 = vmatpush2.bf16.msra.mxu0 %v1165
        %2329 = vmatprep.mubr.bf16.mxu0 %v1991
        %2330 = vmatmul.mubr.bf16.gmra.mxu0 %v1977
        %v2331 = vpop.f32.mrf.mxu0
        %v2332 = vadd.f32 %v2291, %v2331
        %v2333 = vpop.f32.mrf.mxu0
        %v2334 = vadd.f32 %v2293, %v2333
        %v2335 = vpop.f32.mrf.mxu0
        %v2336 = vpop.f32.mrf.mxu0
        %2337 = vdwg.mxu0
        %2338 = vmatprep.subr.bf16.mxu0 %v1226
        %2339 = vmatpush1.bf16.msra.mxu0 %v1225
        %2340 = vmatprep.subr.bf16.mxu0 %v1222
        %2341 = vmatpush1.bf16.msra.mxu0 %v1221
        %2342 = vmatprep.subr.bf16.mxu0 %v1218
        %2343 = vmatpush1.bf16.msra.mxu0 %v1217
        %2344 = vmatprep.subr.bf16.mxu0 %v1214
        %2345 = vmatpush1.bf16.msra.mxu0 %v1213
        %2346 = vmatprep.subr.bf16.mxu0 %v1210
        %2347 = vmatpush1.bf16.msra.mxu0 %v1209
        %2348 = vmatprep.subr.bf16.mxu0 %v1206
        %2349 = vmatpush1.bf16.msra.mxu0 %v1205
        %2350 = vmatprep.subr.bf16.mxu0 %v1202
        %2351 = vmatpush1.bf16.msra.mxu0 %v1201
        %2352 = vmatprep.subr.bf16.mxu0 %v1198
        %2353 = vmatpush1.bf16.msra.mxu0 %v1197
        %2354 = vmatprep.subr.bf16.mxu0 %v1258
        %2355 = vmatpush2.bf16.msra.mxu0 %v1257
        %2356 = vmatprep.subr.bf16.mxu0 %v1254
        %2357 = vmatpush2.bf16.msra.mxu0 %v1253
        %2358 = vmatprep.subr.bf16.mxu0 %v1250
        %2359 = vmatpush2.bf16.msra.mxu0 %v1249
        %2360 = vmatprep.subr.bf16.mxu0 %v1246
        %2361 = vmatpush2.bf16.msra.mxu0 %v1245
        %2362 = vmatprep.subr.bf16.mxu0 %v1242
        %2363 = vmatpush2.bf16.msra.mxu0 %v1241
        %2364 = vmatprep.subr.bf16.mxu0 %v1238
        %2365 = vmatpush2.bf16.msra.mxu0 %v1237
        %2366 = vmatprep.subr.bf16.mxu0 %v1234
        %2367 = vmatpush2.bf16.msra.mxu0 %v1233
        %2368 = vmatprep.subr.bf16.mxu0 %v1230
        %2369 = vmatpush2.bf16.msra.mxu0 %v1229
        %2370 = vmatprep.mubr.bf16.mxu0 %v2001
        %2371 = vmatmul.mubr.bf16.gmra.mxu0 %v1999
        %v2372 = vpop.f32.mrf.mxu0
        %v2373 = vadd.f32 %v2332, %v2372
        %v2374 = vpop.f32.mrf.mxu0
        %v2375 = vadd.f32 %v2334, %v2374
        %v2376 = vpop.f32.mrf.mxu0
        %v2377 = vpop.f32.mrf.mxu0
        %2378 = vdwg.mxu0
        %2379 = vmatprep.subr.bf16.mxu0 %v1290
        %2380 = vmatpush1.bf16.msra.mxu0 %v1289
        %2381 = vmatprep.subr.bf16.mxu0 %v1286
        %2382 = vmatpush1.bf16.msra.mxu0 %v1285
        %2383 = vmatprep.subr.bf16.mxu0 %v1282
        %2384 = vmatpush1.bf16.msra.mxu0 %v1281
        %2385 = vmatprep.subr.bf16.mxu0 %v1278
        %2386 = vmatpush1.bf16.msra.mxu0 %v1277
        %2387 = vmatprep.subr.bf16.mxu0 %v1274
        %2388 = vmatpush1.bf16.msra.mxu0 %v1273
        %2389 = vmatprep.subr.bf16.mxu0 %v1270
        %2390 = vmatpush1.bf16.msra.mxu0 %v1269
        %2391 = vmatprep.subr.bf16.mxu0 %v1266
        %2392 = vmatpush1.bf16.msra.mxu0 %v1265
        %2393 = vmatprep.subr.bf16.mxu0 %v1262
        %2394 = vmatpush1.bf16.msra.mxu0 %v1261
        %2395 = vmatprep.subr.bf16.mxu0 %v1322
        %2396 = vmatpush2.bf16.msra.mxu0 %v1321
        %2397 = vmatprep.subr.bf16.mxu0 %v1318
        %2398 = vmatpush2.bf16.msra.mxu0 %v1317
        %2399 = vmatprep.subr.bf16.mxu0 %v1314
        %2400 = vmatpush2.bf16.msra.mxu0 %v1313
        %2401 = vmatprep.subr.bf16.mxu0 %v1310
        %2402 = vmatpush2.bf16.msra.mxu0 %v1309
        %2403 = vmatprep.subr.bf16.mxu0 %v1306
        %2404 = vmatpush2.bf16.msra.mxu0 %v1305
        %2405 = vmatprep.subr.bf16.mxu0 %v1302
        %2406 = vmatpush2.bf16.msra.mxu0 %v1301
        %2407 = vmatprep.subr.bf16.mxu0 %v1298
        %2408 = vmatpush2.bf16.msra.mxu0 %v1297
        %2409 = vmatprep.subr.bf16.mxu0 %v1294
        %2410 = vmatpush2.bf16.msra.mxu0 %v1293
        %2411 = vmatprep.mubr.bf16.mxu0 %v1998
        %2412 = vmatmul.mubr.bf16.gmra.mxu0 %v1984
        %v2413 = vpop.f32.mrf.mxu0
        %v2414 = vadd.f32 %v2373, %v2413
        %v2415 = vpop.f32.mrf.mxu0
        %v2416 = vadd.f32 %v2375, %v2415
        %v2417 = vpop.f32.mrf.mxu0
        %v2418 = vpop.f32.mrf.mxu0
        %2419 = vdwg.mxu0
        %2420 = vmatprep.subr.bf16.mxu0 %v1354
        %2421 = vmatpush1.bf16.msra.mxu0 %v1353
        %2422 = vmatprep.subr.bf16.mxu0 %v1350
        %2423 = vmatpush1.bf16.msra.mxu0 %v1349
        %2424 = vmatprep.subr.bf16.mxu0 %v1346
        %2425 = vmatpush1.bf16.msra.mxu0 %v1345
        %2426 = vmatprep.subr.bf16.mxu0 %v1342
        %2427 = vmatpush1.bf16.msra.mxu0 %v1341
        %2428 = vmatprep.subr.bf16.mxu0 %v1338
        %2429 = vmatpush1.bf16.msra.mxu0 %v1337
        %2430 = vmatprep.subr.bf16.mxu0 %v1334
        %2431 = vmatpush1.bf16.msra.mxu0 %v1333
        %2432 = vmatprep.subr.bf16.mxu0 %v1330
        %2433 = vmatpush1.bf16.msra.mxu0 %v1329
        %2434 = vmatprep.subr.bf16.mxu0 %v1326
        %2435 = vmatpush1.bf16.msra.mxu0 %v1325
        %2436 = vmatprep.subr.bf16.mxu0 %v1386
        %2437 = vmatpush2.bf16.msra.mxu0 %v1385
        %2438 = vmatprep.subr.bf16.mxu0 %v1382
        %2439 = vmatpush2.bf16.msra.mxu0 %v1381
        %2440 = vmatprep.subr.bf16.mxu0 %v1378
        %2441 = vmatpush2.bf16.msra.mxu0 %v1377
        %2442 = vmatprep.subr.bf16.mxu0 %v1374
        %2443 = vmatpush2.bf16.msra.mxu0 %v1373
        %2444 = vmatprep.subr.bf16.mxu0 %v1370
        %2445 = vmatpush2.bf16.msra.mxu0 %v1369
        %2446 = vmatprep.subr.bf16.mxu0 %v1366
        %2447 = vmatpush2.bf16.msra.mxu0 %v1365
        %2448 = vmatprep.subr.bf16.mxu0 %v1362
        %2449 = vmatpush2.bf16.msra.mxu0 %v1361
        %2450 = vmatprep.subr.bf16.mxu0 %v1358
        %2451 = vmatpush2.bf16.msra.mxu0 %v1357
        %2452 = vmatprep.mubr.bf16.mxu0 %v2002
        %2453 = vmatmul.mubr.bf16.gmra.mxu0 %v2000
        %v2454 = vpop.f32.mrf.mxu0
        %v2455 = vadd.f32 %v2414, %v2454
        %v2456 = vpop.f32.mrf.mxu0
        %v2457 = vadd.f32 %v2416, %v2456
        %v2458 = vpop.f32.mrf.mxu0
        %v2459 = vpop.f32.mrf.mxu0
        %2460 = vdwg.mxu0
        %2461 = vmatprep.subr.bf16.mxu0 %v1418
        %2462 = vmatpush1.bf16.msra.mxu0 %v1417
        %2463 = vmatprep.subr.bf16.mxu0 %v1414
        %2464 = vmatpush1.bf16.msra.mxu0 %v1413
        %2465 = vmatprep.subr.bf16.mxu0 %v1410
        %2466 = vmatpush1.bf16.msra.mxu0 %v1409
        %2467 = vmatprep.subr.bf16.mxu0 %v1406
        %2468 = vmatpush1.bf16.msra.mxu0 %v1405
        %2469 = vmatprep.subr.bf16.mxu0 %v1402
        %2470 = vmatpush1.bf16.msra.mxu0 %v1401
        %2471 = vmatprep.subr.bf16.mxu0 %v1398
        %2472 = vmatpush1.bf16.msra.mxu0 %v1397
        %2473 = vmatprep.subr.bf16.mxu0 %v1394
        %2474 = vmatpush1.bf16.msra.mxu0 %v1393
        %2475 = vmatprep.subr.bf16.mxu0 %v1390
        %2476 = vmatpush1.bf16.msra.mxu0 %v1389
        %2477 = vmatprep.subr.bf16.mxu0 %v1450
        %2478 = vmatpush2.bf16.msra.mxu0 %v1449
        %2479 = vmatprep.subr.bf16.mxu0 %v1446
        %2480 = vmatpush2.bf16.msra.mxu0 %v1445
        %2481 = vmatprep.subr.bf16.mxu0 %v1442
        %2482 = vmatpush2.bf16.msra.mxu0 %v1441
        %2483 = vmatprep.subr.bf16.mxu0 %v1438
        %2484 = vmatpush2.bf16.msra.mxu0 %v1437
        %2485 = vmatprep.subr.bf16.mxu0 %v1434
        %2486 = vmatpush2.bf16.msra.mxu0 %v1433
        %2487 = vmatprep.subr.bf16.mxu0 %v1430
        %2488 = vmatpush2.bf16.msra.mxu0 %v1429
        %2489 = vmatprep.subr.bf16.mxu0 %v1426
        %2490 = vmatpush2.bf16.msra.mxu0 %v1425
        %2491 = vmatprep.subr.bf16.mxu0 %v1422
        %2492 = vmatpush2.bf16.msra.mxu0 %v1421
        %2493 = vmatprep.mubr.bf16.mxu0 %v2040
        %2494 = vmatmul.mubr.bf16.gmra.mxu0 %v2026
        %v2495 = vpop.f32.mrf.mxu0
        %v2496 = vadd.f32 %v2455, %v2495
        %v2497 = vpop.f32.mrf.mxu0
        %v2498 = vadd.f32 %v2457, %v2497
        %v2499 = vpop.f32.mrf.mxu0
        %v2500 = vpop.f32.mrf.mxu0
        %2501 = vdwg.mxu0
        %2502 = vmatprep.subr.bf16.mxu0 %v1482
        %2503 = vmatpush1.bf16.msra.mxu0 %v1481
        %2504 = vmatprep.subr.bf16.mxu0 %v1478
        %2505 = vmatpush1.bf16.msra.mxu0 %v1477
        %2506 = vmatprep.subr.bf16.mxu0 %v1474
        %2507 = vmatpush1.bf16.msra.mxu0 %v1473
        %2508 = vmatprep.subr.bf16.mxu0 %v1470
        %2509 = vmatpush1.bf16.msra.mxu0 %v1469
        %2510 = vmatprep.subr.bf16.mxu0 %v1466
        %2511 = vmatpush1.bf16.msra.mxu0 %v1465
        %2512 = vmatprep.subr.bf16.mxu0 %v1462
        %2513 = vmatpush1.bf16.msra.mxu0 %v1461
        %2514 = vmatprep.subr.bf16.mxu0 %v1458
        %2515 = vmatpush1.bf16.msra.mxu0 %v1457
        %2516 = vmatprep.subr.bf16.mxu0 %v1454
        %2517 = vmatpush1.bf16.msra.mxu0 %v1453
        %2518 = vmatprep.subr.bf16.mxu0 %v1514
        %2519 = vmatpush2.bf16.msra.mxu0 %v1513
        %2520 = vmatprep.subr.bf16.mxu0 %v1510
        %2521 = vmatpush2.bf16.msra.mxu0 %v1509
        %2522 = vmatprep.subr.bf16.mxu0 %v1506
        %2523 = vmatpush2.bf16.msra.mxu0 %v1505
        %2524 = vmatprep.subr.bf16.mxu0 %v1502
        %2525 = vmatpush2.bf16.msra.mxu0 %v1501
        %2526 = vmatprep.subr.bf16.mxu0 %v1498
        %2527 = vmatpush2.bf16.msra.mxu0 %v1497
        %2528 = vmatprep.subr.bf16.mxu0 %v1494
        %2529 = vmatpush2.bf16.msra.mxu0 %v1493
        %2530 = vmatprep.subr.bf16.mxu0 %v1490
        %2531 = vmatpush2.bf16.msra.mxu0 %v1489
        %2532 = vmatprep.subr.bf16.mxu0 %v1486
        %2533 = vmatpush2.bf16.msra.mxu0 %v1485
        %2534 = vmatprep.mubr.bf16.mxu0 %v2050
        %2535 = vmatmul.mubr.bf16.gmra.mxu0 %v2048
        %v2536 = vpop.f32.mrf.mxu0
        %v2537 = vadd.f32 %v2496, %v2536
        %v2538 = vpop.f32.mrf.mxu0
        %v2539 = vadd.f32 %v2498, %v2538
        %v2540 = vpop.f32.mrf.mxu0
        %v2541 = vpop.f32.mrf.mxu0
        %2542 = vdwg.mxu0
        %2543 = vmatprep.subr.bf16.mxu0 %v1546
        %2544 = vmatpush1.bf16.msra.mxu0 %v1545
        %2545 = vmatprep.subr.bf16.mxu0 %v1542
        %2546 = vmatpush1.bf16.msra.mxu0 %v1541
        %2547 = vmatprep.subr.bf16.mxu0 %v1538
        %2548 = vmatpush1.bf16.msra.mxu0 %v1537
        %2549 = vmatprep.subr.bf16.mxu0 %v1534
        %2550 = vmatpush1.bf16.msra.mxu0 %v1533
        %2551 = vmatprep.subr.bf16.mxu0 %v1530
        %2552 = vmatpush1.bf16.msra.mxu0 %v1529
        %2553 = vmatprep.subr.bf16.mxu0 %v1526
        %2554 = vmatpush1.bf16.msra.mxu0 %v1525
        %2555 = vmatprep.subr.bf16.mxu0 %v1522
        %2556 = vmatpush1.bf16.msra.mxu0 %v1521
        %2557 = vmatprep.subr.bf16.mxu0 %v1518
        %2558 = vmatpush1.bf16.msra.mxu0 %v1517
        %2559 = vmatprep.subr.bf16.mxu0 %v1578
        %2560 = vmatpush2.bf16.msra.mxu0 %v1577
        %2561 = vmatprep.subr.bf16.mxu0 %v1574
        %2562 = vmatpush2.bf16.msra.mxu0 %v1573
        %2563 = vmatprep.subr.bf16.mxu0 %v1570
        %2564 = vmatpush2.bf16.msra.mxu0 %v1569
        %2565 = vmatprep.subr.bf16.mxu0 %v1566
        %2566 = vmatpush2.bf16.msra.mxu0 %v1565
        %2567 = vmatprep.subr.bf16.mxu0 %v1562
        %2568 = vmatpush2.bf16.msra.mxu0 %v1561
        %2569 = vmatprep.subr.bf16.mxu0 %v1558
        %2570 = vmatpush2.bf16.msra.mxu0 %v1557
        %2571 = vmatprep.subr.bf16.mxu0 %v1554
        %2572 = vmatpush2.bf16.msra.mxu0 %v1553
        %2573 = vmatprep.subr.bf16.mxu0 %v1550
        %2574 = vmatpush2.bf16.msra.mxu0 %v1549
        %2575 = vmatprep.mubr.bf16.mxu0 %v2047
        %2576 = vmatmul.mubr.bf16.gmra.mxu0 %v2033
        %v2577 = vpop.f32.mrf.mxu0
        %v2578 = vadd.f32 %v2537, %v2577
        %v2579 = vpop.f32.mrf.mxu0
        %v2580 = vadd.f32 %v2539, %v2579
        %v2581 = vpop.f32.mrf.mxu0
        %v2582 = vpop.f32.mrf.mxu0
        %2583 = vdwg.mxu0
        %2584 = vmatprep.subr.bf16.mxu0 %v1610
        %2585 = vmatpush1.bf16.msra.mxu0 %v1609
        %2586 = vmatprep.subr.bf16.mxu0 %v1606
        %2587 = vmatpush1.bf16.msra.mxu0 %v1605
        %2588 = vmatprep.subr.bf16.mxu0 %v1602
        %2589 = vmatpush1.bf16.msra.mxu0 %v1601
        %2590 = vmatprep.subr.bf16.mxu0 %v1598
        %2591 = vmatpush1.bf16.msra.mxu0 %v1597
        %2592 = vmatprep.subr.bf16.mxu0 %v1594
        %2593 = vmatpush1.bf16.msra.mxu0 %v1593
        %2594 = vmatprep.subr.bf16.mxu0 %v1590
        %2595 = vmatpush1.bf16.msra.mxu0 %v1589
        %2596 = vmatprep.subr.bf16.mxu0 %v1586
        %2597 = vmatpush1.bf16.msra.mxu0 %v1585
        %2598 = vmatprep.subr.bf16.mxu0 %v1582
        %2599 = vmatpush1.bf16.msra.mxu0 %v1581
        %2600 = vmatprep.subr.bf16.mxu0 %v1642
        %2601 = vmatpush2.bf16.msra.mxu0 %v1641
        %2602 = vmatprep.subr.bf16.mxu0 %v1638
        %2603 = vmatpush2.bf16.msra.mxu0 %v1637
        %2604 = vmatprep.subr.bf16.mxu0 %v1634
        %2605 = vmatpush2.bf16.msra.mxu0 %v1633
        %2606 = vmatprep.subr.bf16.mxu0 %v1630
        %2607 = vmatpush2.bf16.msra.mxu0 %v1629
        %2608 = vmatprep.subr.bf16.mxu0 %v1626
        %2609 = vmatpush2.bf16.msra.mxu0 %v1625
        %2610 = vmatprep.subr.bf16.mxu0 %v1622
        %2611 = vmatpush2.bf16.msra.mxu0 %v1621
        %2612 = vmatprep.subr.bf16.mxu0 %v1618
        %2613 = vmatpush2.bf16.msra.mxu0 %v1617
        %2614 = vmatprep.subr.bf16.mxu0 %v1614
        %2615 = vmatpush2.bf16.msra.mxu0 %v1613
        %2616 = vmatprep.mubr.bf16.mxu0 %v2051
        %2617 = vmatmul.mubr.bf16.gmra.mxu0 %v2049
        %v2618 = vpop.f32.mrf.mxu0
        %v2619 = vadd.f32 %v2578, %v2618
        %v2620 = vpop.f32.mrf.mxu0
        %v2621 = vadd.f32 %v2580, %v2620
        %v2622 = vpop.f32.mrf.mxu0
        %v2623 = vpop.f32.mrf.mxu0
        %2624 = vdwg.mxu0
        %2625 = vmatprep.subr.bf16.mxu0 %v1674
        %2626 = vmatpush1.bf16.msra.mxu0 %v1673
        %2627 = vmatprep.subr.bf16.mxu0 %v1670
        %2628 = vmatpush1.bf16.msra.mxu0 %v1669
        %2629 = vmatprep.subr.bf16.mxu0 %v1666
        %2630 = vmatpush1.bf16.msra.mxu0 %v1665
        %2631 = vmatprep.subr.bf16.mxu0 %v1662
        %2632 = vmatpush1.bf16.msra.mxu0 %v1661
        %2633 = vmatprep.subr.bf16.mxu0 %v1658
        %2634 = vmatpush1.bf16.msra.mxu0 %v1657
        %2635 = vmatprep.subr.bf16.mxu0 %v1654
        %2636 = vmatpush1.bf16.msra.mxu0 %v1653
        %2637 = vmatprep.subr.bf16.mxu0 %v1650
        %2638 = vmatpush1.bf16.msra.mxu0 %v1649
        %2639 = vmatprep.subr.bf16.mxu0 %v1646
        %2640 = vmatpush1.bf16.msra.mxu0 %v1645
        %2641 = vmatprep.subr.bf16.mxu0 %v1706
        %2642 = vmatpush2.bf16.msra.mxu0 %v1705
        %2643 = vmatprep.subr.bf16.mxu0 %v1702
        %2644 = vmatpush2.bf16.msra.mxu0 %v1701
        %2645 = vmatprep.subr.bf16.mxu0 %v1698
        %2646 = vmatpush2.bf16.msra.mxu0 %v1697
        %2647 = vmatprep.subr.bf16.mxu0 %v1694
        %2648 = vmatpush2.bf16.msra.mxu0 %v1693
        %2649 = vmatprep.subr.bf16.mxu0 %v1690
        %2650 = vmatpush2.bf16.msra.mxu0 %v1689
        %2651 = vmatprep.subr.bf16.mxu0 %v1686
        %2652 = vmatpush2.bf16.msra.mxu0 %v1685
        %2653 = vmatprep.subr.bf16.mxu0 %v1682
        %2654 = vmatpush2.bf16.msra.mxu0 %v1681
        %2655 = vmatprep.subr.bf16.mxu0 %v1678
        %2656 = vmatpush2.bf16.msra.mxu0 %v1677
        %2657 = vmatprep.mubr.bf16.mxu0 %v2089
        %2658 = vmatmul.mubr.bf16.gmra.mxu0 %v2075
        %v2659 = vpop.f32.mrf.mxu0
        %v2660 = vadd.f32 %v2619, %v2659
        %v2661 = vpop.f32.mrf.mxu0
        %v2662 = vadd.f32 %v2621, %v2661
        %v2663 = vpop.f32.mrf.mxu0
        %v2664 = vpop.f32.mrf.mxu0
        %2665 = vdwg.mxu0
        %2666 = vmatprep.subr.bf16.mxu0 %v1738
        %2667 = vmatpush1.bf16.msra.mxu0 %v1737
        %2668 = vmatprep.subr.bf16.mxu0 %v1734
        %2669 = vmatpush1.bf16.msra.mxu0 %v1733
        %2670 = vmatprep.subr.bf16.mxu0 %v1730
        %2671 = vmatpush1.bf16.msra.mxu0 %v1729
        %2672 = vmatprep.subr.bf16.mxu0 %v1726
        %2673 = vmatpush1.bf16.msra.mxu0 %v1725
        %2674 = vmatprep.subr.bf16.mxu0 %v1722
        %2675 = vmatpush1.bf16.msra.mxu0 %v1721
        %2676 = vmatprep.subr.bf16.mxu0 %v1718
        %2677 = vmatpush1.bf16.msra.mxu0 %v1717
        %2678 = vmatprep.subr.bf16.mxu0 %v1714
        %2679 = vmatpush1.bf16.msra.mxu0 %v1713
        %2680 = vmatprep.subr.bf16.mxu0 %v1710
        %2681 = vmatpush1.bf16.msra.mxu0 %v1709
        %2682 = vmatprep.subr.bf16.mxu0 %v1770
        %2683 = vmatpush2.bf16.msra.mxu0 %v1769
        %2684 = vmatprep.subr.bf16.mxu0 %v1766
        %2685 = vmatpush2.bf16.msra.mxu0 %v1765
        %2686 = vmatprep.subr.bf16.mxu0 %v1762
        %2687 = vmatpush2.bf16.msra.mxu0 %v1761
        %2688 = vmatprep.subr.bf16.mxu0 %v1758
        %2689 = vmatpush2.bf16.msra.mxu0 %v1757
        %2690 = vmatprep.subr.bf16.mxu0 %v1754
        %2691 = vmatpush2.bf16.msra.mxu0 %v1753
        %2692 = vmatprep.subr.bf16.mxu0 %v1750
        %2693 = vmatpush2.bf16.msra.mxu0 %v1749
        %2694 = vmatprep.subr.bf16.mxu0 %v1746
        %2695 = vmatpush2.bf16.msra.mxu0 %v1745
        %2696 = vmatprep.subr.bf16.mxu0 %v1742
        %2697 = vmatpush2.bf16.msra.mxu0 %v1741
        %2698 = vmatprep.mubr.bf16.mxu0 %v2099
        %2699 = vmatmul.mubr.bf16.gmra.mxu0 %v2097
        %v2700 = vpop.f32.mrf.mxu0
        %v2701 = vadd.f32 %v2660, %v2700
        %v2702 = vpop.f32.mrf.mxu0
        %v2703 = vadd.f32 %v2662, %v2702
        %v2704 = vpop.f32.mrf.mxu0
        %v2705 = vpop.f32.mrf.mxu0
        %2706 = vdwg.mxu0
        %2707 = vmatprep.subr.bf16.mxu0 %v1802
        %2708 = vmatpush1.bf16.msra.mxu0 %v1801
        %2709 = vmatprep.subr.bf16.mxu0 %v1798
        %2710 = vmatpush1.bf16.msra.mxu0 %v1797
        %2711 = vmatprep.subr.bf16.mxu0 %v1794
        %2712 = vmatpush1.bf16.msra.mxu0 %v1793
        %2713 = vmatprep.subr.bf16.mxu0 %v1790
        %2714 = vmatpush1.bf16.msra.mxu0 %v1789
        %2715 = vmatprep.subr.bf16.mxu0 %v1786
        %2716 = vmatpush1.bf16.msra.mxu0 %v1785
        %2717 = vmatprep.subr.bf16.mxu0 %v1782
        %2718 = vmatpush1.bf16.msra.mxu0 %v1781
        %2719 = vmatprep.subr.bf16.mxu0 %v1778
        %2720 = vmatpush1.bf16.msra.mxu0 %v1777
        %2721 = vmatprep.subr.bf16.mxu0 %v1774
        %2722 = vmatpush1.bf16.msra.mxu0 %v1773
        %2723 = vmatprep.subr.bf16.mxu0 %v1834
        %2724 = vmatpush2.bf16.msra.mxu0 %v1833
        %2725 = vmatprep.subr.bf16.mxu0 %v1830
        %2726 = vmatpush2.bf16.msra.mxu0 %v1829
        %2727 = vmatprep.subr.bf16.mxu0 %v1826
        %2728 = vmatpush2.bf16.msra.mxu0 %v1825
        %2729 = vmatprep.subr.bf16.mxu0 %v1822
        %2730 = vmatpush2.bf16.msra.mxu0 %v1821
        %2731 = vmatprep.subr.bf16.mxu0 %v1818
        %2732 = vmatpush2.bf16.msra.mxu0 %v1817
        %2733 = vmatprep.subr.bf16.mxu0 %v1814
        %2734 = vmatpush2.bf16.msra.mxu0 %v1813
        %2735 = vmatprep.subr.bf16.mxu0 %v1810
        %2736 = vmatpush2.bf16.msra.mxu0 %v1809
        %2737 = vmatprep.subr.bf16.mxu0 %v1806
        %2738 = vmatpush2.bf16.msra.mxu0 %v1805
        %2739 = vmatprep.mubr.bf16.mxu0 %v2096
        %2740 = vmatmul.mubr.bf16.gmra.mxu0 %v2082
        %v2741 = vpop.f32.mrf.mxu0
        %v2742 = vadd.f32 %v2701, %v2741
        %v2743 = vpop.f32.mrf.mxu0
        %v2744 = vadd.f32 %v2703, %v2743
        %v2745 = vpop.f32.mrf.mxu0
        %v2746 = vpop.f32.mrf.mxu0
        %2747 = vdwg.mxu0
        %2748 = vmatprep.subr.bf16.mxu0 %v1866
        %2749 = vmatpush1.bf16.msra.mxu0 %v1865
        %2750 = vmatprep.subr.bf16.mxu0 %v1862
        %2751 = vmatpush1.bf16.msra.mxu0 %v1861
        %2752 = vmatprep.subr.bf16.mxu0 %v1858
        %2753 = vmatpush1.bf16.msra.mxu0 %v1857
        %2754 = vmatprep.subr.bf16.mxu0 %v1854
        %2755 = vmatpush1.bf16.msra.mxu0 %v1853
        %2756 = vmatprep.subr.bf16.mxu0 %v1850
        %2757 = vmatpush1.bf16.msra.mxu0 %v1849
        %2758 = vmatprep.subr.bf16.mxu0 %v1846
        %2759 = vmatpush1.bf16.msra.mxu0 %v1845
        %2760 = vmatprep.subr.bf16.mxu0 %v1842
        %2761 = vmatpush1.bf16.msra.mxu0 %v1841
        %2762 = vmatprep.subr.bf16.mxu0 %v1838
        %2763 = vmatpush1.bf16.msra.mxu0 %v1837
        %2764 = vmatprep.subr.bf16.mxu0 %v1898
        %2765 = vmatpush2.bf16.msra.mxu0 %v1897
        %2766 = vmatprep.subr.bf16.mxu0 %v1894
        %2767 = vmatpush2.bf16.msra.mxu0 %v1893
        %2768 = vmatprep.subr.bf16.mxu0 %v1890
        %2769 = vmatpush2.bf16.msra.mxu0 %v1889
        %2770 = vmatprep.subr.bf16.mxu0 %v1886
        %2771 = vmatpush2.bf16.msra.mxu0 %v1885
        %2772 = vmatprep.subr.bf16.mxu0 %v1882
        %2773 = vmatpush2.bf16.msra.mxu0 %v1881
        %2774 = vmatprep.subr.bf16.mxu0 %v1878
        %2775 = vmatpush2.bf16.msra.mxu0 %v1877
        %2776 = vmatprep.subr.bf16.mxu0 %v1874
        %2777 = vmatpush2.bf16.msra.mxu0 %v1873
        %2778 = vmatprep.subr.bf16.mxu0 %v1870
        %2779 = vmatpush2.bf16.msra.mxu0 %v1869
        %2780 = vmatprep.mubr.bf16.mxu0 %v2100
        %2781 = vmatmul.mubr.bf16.gmra.mxu0 %v2098
        %v2782 = vpop.f32.mrf.mxu0
        %v2783 = vadd.f32 %v2742, %v2782
        %v2784 = vpop.f32.mrf.mxu0
        %v2785 = vadd.f32 %v2744, %v2784
        %v2786 = vpop.f32.mrf.mxu0
        %v2787 = vpop.f32.mrf.mxu0
        %2788 = vdwg.mxu0
        %2789 = vmatprep.subr.bf16.mxu0 %v908
        %2790 = vmatpush1.bf16.msra.mxu0 %v907
        %2791 = vmatprep.subr.bf16.mxu0 %v904
        %2792 = vmatpush1.bf16.msra.mxu0 %v903
        %2793 = vmatprep.subr.bf16.mxu0 %v900
        %2794 = vmatpush1.bf16.msra.mxu0 %v899
        %2795 = vmatprep.subr.bf16.mxu0 %v896
        %2796 = vmatpush1.bf16.msra.mxu0 %v895
        %2797 = vmatprep.subr.bf16.mxu0 %v892
        %2798 = vmatpush1.bf16.msra.mxu0 %v891
        %2799 = vmatprep.subr.bf16.mxu0 %v888
        %2800 = vmatpush1.bf16.msra.mxu0 %v887
        %2801 = vmatprep.subr.bf16.mxu0 %v884
        %2802 = vmatpush1.bf16.msra.mxu0 %v883
        %2803 = vmatprep.subr.bf16.mxu0 %v880
        %2804 = vmatpush1.bf16.msra.mxu0 %v879
        %2805 = vmatprep.subr.bf16.mxu0 %v940
        %2806 = vmatpush2.bf16.msra.mxu0 %v939
        %2807 = vmatprep.subr.bf16.mxu0 %v936
        %2808 = vmatpush2.bf16.msra.mxu0 %v935
        %2809 = vmatprep.subr.bf16.mxu0 %v932
        %2810 = vmatpush2.bf16.msra.mxu0 %v931
        %2811 = vmatprep.subr.bf16.mxu0 %v928
        %2812 = vmatpush2.bf16.msra.mxu0 %v927
        %2813 = vmatprep.subr.bf16.mxu0 %v924
        %2814 = vmatpush2.bf16.msra.mxu0 %v923
        %2815 = vmatprep.subr.bf16.mxu0 %v920
        %2816 = vmatpush2.bf16.msra.mxu0 %v919
        %2817 = vmatprep.subr.bf16.mxu0 %v916
        %2818 = vmatpush2.bf16.msra.mxu0 %v915
        %2819 = vmatprep.subr.bf16.mxu0 %v912
        %2820 = vmatpush2.bf16.msra.mxu0 %v911
        %2821 = vmatprep.mubr.bf16.mxu0 %v1942
        %2822 = vmatmul.mubr.bf16.gmra.mxu0 %v1928
        %v2823 = vpop.f32.mrf.mxu0
        %v2824 = vadd.f32 0.0, %v2823
        %v2825 = vpop.f32.mrf.mxu0
        %v2826 = vadd.f32 0.0, %v2825
        %v2827 = vpop.f32.mrf.mxu0
        %v2828 = vpop.f32.mrf.mxu0
        %2829 = vdwg.mxu0
        %2830 = vmatprep.subr.bf16.mxu0 %v972
        %2831 = vmatpush1.bf16.msra.mxu0 %v971
        %2832 = vmatprep.subr.bf16.mxu0 %v968
        %2833 = vmatpush1.bf16.msra.mxu0 %v967
        %2834 = vmatprep.subr.bf16.mxu0 %v964
        %2835 = vmatpush1.bf16.msra.mxu0 %v963
        %2836 = vmatprep.subr.bf16.mxu0 %v960
        %2837 = vmatpush1.bf16.msra.mxu0 %v959
        %2838 = vmatprep.subr.bf16.mxu0 %v956
        %2839 = vmatpush1.bf16.msra.mxu0 %v955
        %2840 = vmatprep.subr.bf16.mxu0 %v952
        %2841 = vmatpush1.bf16.msra.mxu0 %v951
        %2842 = vmatprep.subr.bf16.mxu0 %v948
        %2843 = vmatpush1.bf16.msra.mxu0 %v947
        %2844 = vmatprep.subr.bf16.mxu0 %v944
        %2845 = vmatpush1.bf16.msra.mxu0 %v943
        %2846 = vmatprep.subr.bf16.mxu0 %v1004
        %2847 = vmatpush2.bf16.msra.mxu0 %v1003
        %2848 = vmatprep.subr.bf16.mxu0 %v1000
        %2849 = vmatpush2.bf16.msra.mxu0 %v999
        %2850 = vmatprep.subr.bf16.mxu0 %v996
        %2851 = vmatpush2.bf16.msra.mxu0 %v995
        %2852 = vmatprep.subr.bf16.mxu0 %v992
        %2853 = vmatpush2.bf16.msra.mxu0 %v991
        %2854 = vmatprep.subr.bf16.mxu0 %v988
        %2855 = vmatpush2.bf16.msra.mxu0 %v987
        %2856 = vmatprep.subr.bf16.mxu0 %v984
        %2857 = vmatpush2.bf16.msra.mxu0 %v983
        %2858 = vmatprep.subr.bf16.mxu0 %v980
        %2859 = vmatpush2.bf16.msra.mxu0 %v979
        %2860 = vmatprep.subr.bf16.mxu0 %v976
        %2861 = vmatpush2.bf16.msra.mxu0 %v975
        %2862 = vmatprep.mubr.bf16.mxu0 %v1952
        %2863 = vmatmul.mubr.bf16.gmra.mxu0 %v1950
        %v2864 = vpop.f32.mrf.mxu0
        %v2865 = vadd.f32 %v2824, %v2864
        %v2866 = vpop.f32.mrf.mxu0
        %v2867 = vadd.f32 %v2826, %v2866
        %v2868 = vpop.f32.mrf.mxu0
        %v2869 = vpop.f32.mrf.mxu0
        %2870 = vdwg.mxu0
        %2871 = vmatprep.subr.bf16.mxu0 %v1036
        %2872 = vmatpush1.bf16.msra.mxu0 %v1035
        %2873 = vmatprep.subr.bf16.mxu0 %v1032
        %2874 = vmatpush1.bf16.msra.mxu0 %v1031
        %2875 = vmatprep.subr.bf16.mxu0 %v1028
        %2876 = vmatpush1.bf16.msra.mxu0 %v1027
        %2877 = vmatprep.subr.bf16.mxu0 %v1024
        %2878 = vmatpush1.bf16.msra.mxu0 %v1023
        %2879 = vmatprep.subr.bf16.mxu0 %v1020
        %2880 = vmatpush1.bf16.msra.mxu0 %v1019
        %2881 = vmatprep.subr.bf16.mxu0 %v1016
        %2882 = vmatpush1.bf16.msra.mxu0 %v1015
        %2883 = vmatprep.subr.bf16.mxu0 %v1012
        %2884 = vmatpush1.bf16.msra.mxu0 %v1011
        %2885 = vmatprep.subr.bf16.mxu0 %v1008
        %2886 = vmatpush1.bf16.msra.mxu0 %v1007
        %2887 = vmatprep.subr.bf16.mxu0 %v1068
        %2888 = vmatpush2.bf16.msra.mxu0 %v1067
        %2889 = vmatprep.subr.bf16.mxu0 %v1064
        %2890 = vmatpush2.bf16.msra.mxu0 %v1063
        %2891 = vmatprep.subr.bf16.mxu0 %v1060
        %2892 = vmatpush2.bf16.msra.mxu0 %v1059
        %2893 = vmatprep.subr.bf16.mxu0 %v1056
        %2894 = vmatpush2.bf16.msra.mxu0 %v1055
        %2895 = vmatprep.subr.bf16.mxu0 %v1052
        %2896 = vmatpush2.bf16.msra.mxu0 %v1051
        %2897 = vmatprep.subr.bf16.mxu0 %v1048
        %2898 = vmatpush2.bf16.msra.mxu0 %v1047
        %2899 = vmatprep.subr.bf16.mxu0 %v1044
        %2900 = vmatpush2.bf16.msra.mxu0 %v1043
        %2901 = vmatprep.subr.bf16.mxu0 %v1040
        %2902 = vmatpush2.bf16.msra.mxu0 %v1039
        %2903 = vmatprep.mubr.bf16.mxu0 %v1949
        %2904 = vmatmul.mubr.bf16.gmra.mxu0 %v1935
        %v2905 = vpop.f32.mrf.mxu0
        %v2906 = vadd.f32 %v2865, %v2905
        %v2907 = vpop.f32.mrf.mxu0
        %v2908 = vadd.f32 %v2867, %v2907
        %v2909 = vpop.f32.mrf.mxu0
        %v2910 = vpop.f32.mrf.mxu0
        %2911 = vdwg.mxu0
        %2912 = vmatprep.subr.bf16.mxu0 %v1100
        %2913 = vmatpush1.bf16.msra.mxu0 %v1099
        %2914 = vmatprep.subr.bf16.mxu0 %v1096
        %2915 = vmatpush1.bf16.msra.mxu0 %v1095
        %2916 = vmatprep.subr.bf16.mxu0 %v1092
        %2917 = vmatpush1.bf16.msra.mxu0 %v1091
        %2918 = vmatprep.subr.bf16.mxu0 %v1088
        %2919 = vmatpush1.bf16.msra.mxu0 %v1087
        %2920 = vmatprep.subr.bf16.mxu0 %v1084
        %2921 = vmatpush1.bf16.msra.mxu0 %v1083
        %2922 = vmatprep.subr.bf16.mxu0 %v1080
        %2923 = vmatpush1.bf16.msra.mxu0 %v1079
        %2924 = vmatprep.subr.bf16.mxu0 %v1076
        %2925 = vmatpush1.bf16.msra.mxu0 %v1075
        %2926 = vmatprep.subr.bf16.mxu0 %v1072
        %2927 = vmatpush1.bf16.msra.mxu0 %v1071
        %2928 = vmatprep.subr.bf16.mxu0 %v1132
        %2929 = vmatpush2.bf16.msra.mxu0 %v1131
        %2930 = vmatprep.subr.bf16.mxu0 %v1128
        %2931 = vmatpush2.bf16.msra.mxu0 %v1127
        %2932 = vmatprep.subr.bf16.mxu0 %v1124
        %2933 = vmatpush2.bf16.msra.mxu0 %v1123
        %2934 = vmatprep.subr.bf16.mxu0 %v1120
        %2935 = vmatpush2.bf16.msra.mxu0 %v1119
        %2936 = vmatprep.subr.bf16.mxu0 %v1116
        %2937 = vmatpush2.bf16.msra.mxu0 %v1115
        %2938 = vmatprep.subr.bf16.mxu0 %v1112
        %2939 = vmatpush2.bf16.msra.mxu0 %v1111
        %2940 = vmatprep.subr.bf16.mxu0 %v1108
        %2941 = vmatpush2.bf16.msra.mxu0 %v1107
        %2942 = vmatprep.subr.bf16.mxu0 %v1104
        %2943 = vmatpush2.bf16.msra.mxu0 %v1103
        %2944 = vmatprep.mubr.bf16.mxu0 %v1953
        %2945 = vmatmul.mubr.bf16.gmra.mxu0 %v1951
        %v2946 = vpop.f32.mrf.mxu0
        %v2947 = vadd.f32 %v2906, %v2946
        %v2948 = vpop.f32.mrf.mxu0
        %v2949 = vadd.f32 %v2908, %v2948
        %v2950 = vpop.f32.mrf.mxu0
        %v2951 = vpop.f32.mrf.mxu0
        %2952 = vdwg.mxu0
        %2953 = vmatprep.subr.bf16.mxu0 %v1164
        %2954 = vmatpush1.bf16.msra.mxu0 %v1163
        %2955 = vmatprep.subr.bf16.mxu0 %v1160
        %2956 = vmatpush1.bf16.msra.mxu0 %v1159
        %2957 = vmatprep.subr.bf16.mxu0 %v1156
        %2958 = vmatpush1.bf16.msra.mxu0 %v1155
        %2959 = vmatprep.subr.bf16.mxu0 %v1152
        %2960 = vmatpush1.bf16.msra.mxu0 %v1151
        %2961 = vmatprep.subr.bf16.mxu0 %v1148
        %2962 = vmatpush1.bf16.msra.mxu0 %v1147
        %2963 = vmatprep.subr.bf16.mxu0 %v1144
        %2964 = vmatpush1.bf16.msra.mxu0 %v1143
        %2965 = vmatprep.subr.bf16.mxu0 %v1140
        %2966 = vmatpush1.bf16.msra.mxu0 %v1139
        %2967 = vmatprep.subr.bf16.mxu0 %v1136
        %2968 = vmatpush1.bf16.msra.mxu0 %v1135
        %2969 = vmatprep.subr.bf16.mxu0 %v1196
        %2970 = vmatpush2.bf16.msra.mxu0 %v1195
        %2971 = vmatprep.subr.bf16.mxu0 %v1192
        %2972 = vmatpush2.bf16.msra.mxu0 %v1191
        %2973 = vmatprep.subr.bf16.mxu0 %v1188
        %2974 = vmatpush2.bf16.msra.mxu0 %v1187
        %2975 = vmatprep.subr.bf16.mxu0 %v1184
        %2976 = vmatpush2.bf16.msra.mxu0 %v1183
        %2977 = vmatprep.subr.bf16.mxu0 %v1180
        %2978 = vmatpush2.bf16.msra.mxu0 %v1179
        %2979 = vmatprep.subr.bf16.mxu0 %v1176
        %2980 = vmatpush2.bf16.msra.mxu0 %v1175
        %2981 = vmatprep.subr.bf16.mxu0 %v1172
        %2982 = vmatpush2.bf16.msra.mxu0 %v1171
        %2983 = vmatprep.subr.bf16.mxu0 %v1168
        %2984 = vmatpush2.bf16.msra.mxu0 %v1167
        %2985 = vmatprep.mubr.bf16.mxu0 %v1991
        %2986 = vmatmul.mubr.bf16.gmra.mxu0 %v1977
        %v2987 = vpop.f32.mrf.mxu0
        %v2988 = vadd.f32 %v2947, %v2987
        %v2989 = vpop.f32.mrf.mxu0
        %v2990 = vadd.f32 %v2949, %v2989
        %v2991 = vpop.f32.mrf.mxu0
        %v2992 = vpop.f32.mrf.mxu0
        %2993 = vdwg.mxu0
        %2994 = vmatprep.subr.bf16.mxu0 %v1228
        %2995 = vmatpush1.bf16.msra.mxu0 %v1227
        %2996 = vmatprep.subr.bf16.mxu0 %v1224
        %2997 = vmatpush1.bf16.msra.mxu0 %v1223
        %2998 = vmatprep.subr.bf16.mxu0 %v1220
        %2999 = vmatpush1.bf16.msra.mxu0 %v1219
        %3000 = vmatprep.subr.bf16.mxu0 %v1216
        %3001 = vmatpush1.bf16.msra.mxu0 %v1215
        %3002 = vmatprep.subr.bf16.mxu0 %v1212
        %3003 = vmatpush1.bf16.msra.mxu0 %v1211
        %3004 = vmatprep.subr.bf16.mxu0 %v1208
        %3005 = vmatpush1.bf16.msra.mxu0 %v1207
        %3006 = vmatprep.subr.bf16.mxu0 %v1204
        %3007 = vmatpush1.bf16.msra.mxu0 %v1203
        %3008 = vmatprep.subr.bf16.mxu0 %v1200
        %3009 = vmatpush1.bf16.msra.mxu0 %v1199
        %3010 = vmatprep.subr.bf16.mxu0 %v1260
        %3011 = vmatpush2.bf16.msra.mxu0 %v1259
        %3012 = vmatprep.subr.bf16.mxu0 %v1256
        %3013 = vmatpush2.bf16.msra.mxu0 %v1255
        %3014 = vmatprep.subr.bf16.mxu0 %v1252
        %3015 = vmatpush2.bf16.msra.mxu0 %v1251
        %3016 = vmatprep.subr.bf16.mxu0 %v1248
        %3017 = vmatpush2.bf16.msra.mxu0 %v1247
        %3018 = vmatprep.subr.bf16.mxu0 %v1244
        %3019 = vmatpush2.bf16.msra.mxu0 %v1243
        %3020 = vmatprep.subr.bf16.mxu0 %v1240
        %3021 = vmatpush2.bf16.msra.mxu0 %v1239
        %3022 = vmatprep.subr.bf16.mxu0 %v1236
        %3023 = vmatpush2.bf16.msra.mxu0 %v1235
        %3024 = vmatprep.subr.bf16.mxu0 %v1232
        %3025 = vmatpush2.bf16.msra.mxu0 %v1231
        %3026 = vmatprep.mubr.bf16.mxu0 %v2001
        %3027 = vmatmul.mubr.bf16.gmra.mxu0 %v1999
        %v3028 = vpop.f32.mrf.mxu0
        %v3029 = vadd.f32 %v2988, %v3028
        %v3030 = vpop.f32.mrf.mxu0
        %v3031 = vadd.f32 %v2990, %v3030
        %v3032 = vpop.f32.mrf.mxu0
        %v3033 = vpop.f32.mrf.mxu0
        %3034 = vdwg.mxu0
        %3035 = vmatprep.subr.bf16.mxu0 %v1292
        %3036 = vmatpush1.bf16.msra.mxu0 %v1291
        %3037 = vmatprep.subr.bf16.mxu0 %v1288
        %3038 = vmatpush1.bf16.msra.mxu0 %v1287
        %3039 = vmatprep.subr.bf16.mxu0 %v1284
        %3040 = vmatpush1.bf16.msra.mxu0 %v1283
        %3041 = vmatprep.subr.bf16.mxu0 %v1280
        %3042 = vmatpush1.bf16.msra.mxu0 %v1279
        %3043 = vmatprep.subr.bf16.mxu0 %v1276
        %3044 = vmatpush1.bf16.msra.mxu0 %v1275
        %3045 = vmatprep.subr.bf16.mxu0 %v1272
        %3046 = vmatpush1.bf16.msra.mxu0 %v1271
        %3047 = vmatprep.subr.bf16.mxu0 %v1268
        %3048 = vmatpush1.bf16.msra.mxu0 %v1267
        %3049 = vmatprep.subr.bf16.mxu0 %v1264
        %3050 = vmatpush1.bf16.msra.mxu0 %v1263
        %3051 = vmatprep.subr.bf16.mxu0 %v1324
        %3052 = vmatpush2.bf16.msra.mxu0 %v1323
        %3053 = vmatprep.subr.bf16.mxu0 %v1320
        %3054 = vmatpush2.bf16.msra.mxu0 %v1319
        %3055 = vmatprep.subr.bf16.mxu0 %v1316
        %3056 = vmatpush2.bf16.msra.mxu0 %v1315
        %3057 = vmatprep.subr.bf16.mxu0 %v1312
        %3058 = vmatpush2.bf16.msra.mxu0 %v1311
        %3059 = vmatprep.subr.bf16.mxu0 %v1308
        %3060 = vmatpush2.bf16.msra.mxu0 %v1307
        %3061 = vmatprep.subr.bf16.mxu0 %v1304
        %3062 = vmatpush2.bf16.msra.mxu0 %v1303
        %3063 = vmatprep.subr.bf16.mxu0 %v1300
        %3064 = vmatpush2.bf16.msra.mxu0 %v1299
        %3065 = vmatprep.subr.bf16.mxu0 %v1296
        %3066 = vmatpush2.bf16.msra.mxu0 %v1295
        %3067 = vmatprep.mubr.bf16.mxu0 %v1998
        %3068 = vmatmul.mubr.bf16.gmra.mxu0 %v1984
        %v3069 = vpop.f32.mrf.mxu0
        %v3070 = vadd.f32 %v3029, %v3069
        %v3071 = vpop.f32.mrf.mxu0
        %v3072 = vadd.f32 %v3031, %v3071
        %v3073 = vpop.f32.mrf.mxu0
        %v3074 = vpop.f32.mrf.mxu0
        %3075 = vdwg.mxu0
        %3076 = vmatprep.subr.bf16.mxu0 %v1356
        %3077 = vmatpush1.bf16.msra.mxu0 %v1355
        %3078 = vmatprep.subr.bf16.mxu0 %v1352
        %3079 = vmatpush1.bf16.msra.mxu0 %v1351
        %3080 = vmatprep.subr.bf16.mxu0 %v1348
        %3081 = vmatpush1.bf16.msra.mxu0 %v1347
        %3082 = vmatprep.subr.bf16.mxu0 %v1344
        %3083 = vmatpush1.bf16.msra.mxu0 %v1343
        %3084 = vmatprep.subr.bf16.mxu0 %v1340
        %3085 = vmatpush1.bf16.msra.mxu0 %v1339
        %3086 = vmatprep.subr.bf16.mxu0 %v1336
        %3087 = vmatpush1.bf16.msra.mxu0 %v1335
        %3088 = vmatprep.subr.bf16.mxu0 %v1332
        %3089 = vmatpush1.bf16.msra.mxu0 %v1331
        %3090 = vmatprep.subr.bf16.mxu0 %v1328
        %3091 = vmatpush1.bf16.msra.mxu0 %v1327
        %3092 = vmatprep.subr.bf16.mxu0 %v1388
        %3093 = vmatpush2.bf16.msra.mxu0 %v1387
        %3094 = vmatprep.subr.bf16.mxu0 %v1384
        %3095 = vmatpush2.bf16.msra.mxu0 %v1383
        %3096 = vmatprep.subr.bf16.mxu0 %v1380
        %3097 = vmatpush2.bf16.msra.mxu0 %v1379
        %3098 = vmatprep.subr.bf16.mxu0 %v1376
        %3099 = vmatpush2.bf16.msra.mxu0 %v1375
        %3100 = vmatprep.subr.bf16.mxu0 %v1372
        %3101 = vmatpush2.bf16.msra.mxu0 %v1371
        %3102 = vmatprep.subr.bf16.mxu0 %v1368
        %3103 = vmatpush2.bf16.msra.mxu0 %v1367
        %3104 = vmatprep.subr.bf16.mxu0 %v1364
        %3105 = vmatpush2.bf16.msra.mxu0 %v1363
        %3106 = vmatprep.subr.bf16.mxu0 %v1360
        %3107 = vmatpush2.bf16.msra.mxu0 %v1359
        %3108 = vmatprep.mubr.bf16.mxu0 %v2002
        %3109 = vmatmul.mubr.bf16.gmra.mxu0 %v2000
        %v3110 = vpop.f32.mrf.mxu0
        %v3111 = vadd.f32 %v3070, %v3110
        %v3112 = vpop.f32.mrf.mxu0
        %v3113 = vadd.f32 %v3072, %v3112
        %v3114 = vpop.f32.mrf.mxu0
        %v3115 = vpop.f32.mrf.mxu0
        %3116 = vdwg.mxu0
        %3117 = vmatprep.subr.bf16.mxu0 %v1420
        %3118 = vmatpush1.bf16.msra.mxu0 %v1419
        %3119 = vmatprep.subr.bf16.mxu0 %v1416
        %3120 = vmatpush1.bf16.msra.mxu0 %v1415
        %3121 = vmatprep.subr.bf16.mxu0 %v1412
        %3122 = vmatpush1.bf16.msra.mxu0 %v1411
        %3123 = vmatprep.subr.bf16.mxu0 %v1408
        %3124 = vmatpush1.bf16.msra.mxu0 %v1407
        %3125 = vmatprep.subr.bf16.mxu0 %v1404
        %3126 = vmatpush1.bf16.msra.mxu0 %v1403
        %3127 = vmatprep.subr.bf16.mxu0 %v1400
        %3128 = vmatpush1.bf16.msra.mxu0 %v1399
        %3129 = vmatprep.subr.bf16.mxu0 %v1396
        %3130 = vmatpush1.bf16.msra.mxu0 %v1395
        %3131 = vmatprep.subr.bf16.mxu0 %v1392
        %3132 = vmatpush1.bf16.msra.mxu0 %v1391
        %3133 = vmatprep.subr.bf16.mxu0 %v1452
        %3134 = vmatpush2.bf16.msra.mxu0 %v1451
        %3135 = vmatprep.subr.bf16.mxu0 %v1448
        %3136 = vmatpush2.bf16.msra.mxu0 %v1447
        %3137 = vmatprep.subr.bf16.mxu0 %v1444
        %3138 = vmatpush2.bf16.msra.mxu0 %v1443
        %3139 = vmatprep.subr.bf16.mxu0 %v1440
        %3140 = vmatpush2.bf16.msra.mxu0 %v1439
        %3141 = vmatprep.subr.bf16.mxu0 %v1436
        %3142 = vmatpush2.bf16.msra.mxu0 %v1435
        %3143 = vmatprep.subr.bf16.mxu0 %v1432
        %3144 = vmatpush2.bf16.msra.mxu0 %v1431
        %3145 = vmatprep.subr.bf16.mxu0 %v1428
        %3146 = vmatpush2.bf16.msra.mxu0 %v1427
        %3147 = vmatprep.subr.bf16.mxu0 %v1424
        %3148 = vmatpush2.bf16.msra.mxu0 %v1423
        %3149 = vmatprep.mubr.bf16.mxu0 %v2040
        %3150 = vmatmul.mubr.bf16.gmra.mxu0 %v2026
        %v3151 = vpop.f32.mrf.mxu0
        %v3152 = vadd.f32 %v3111, %v3151
        %v3153 = vpop.f32.mrf.mxu0
        %v3154 = vadd.f32 %v3113, %v3153
        %v3155 = vpop.f32.mrf.mxu0
        %v3156 = vpop.f32.mrf.mxu0
        %3157 = vdwg.mxu0
        %3158 = vmatprep.subr.bf16.mxu0 %v1484
        %3159 = vmatpush1.bf16.msra.mxu0 %v1483
        %3160 = vmatprep.subr.bf16.mxu0 %v1480
        %3161 = vmatpush1.bf16.msra.mxu0 %v1479
        %3162 = vmatprep.subr.bf16.mxu0 %v1476
        %3163 = vmatpush1.bf16.msra.mxu0 %v1475
        %3164 = vmatprep.subr.bf16.mxu0 %v1472
        %3165 = vmatpush1.bf16.msra.mxu0 %v1471
        %3166 = vmatprep.subr.bf16.mxu0 %v1468
        %3167 = vmatpush1.bf16.msra.mxu0 %v1467
        %3168 = vmatprep.subr.bf16.mxu0 %v1464
        %3169 = vmatpush1.bf16.msra.mxu0 %v1463
        %3170 = vmatprep.subr.bf16.mxu0 %v1460
        %3171 = vmatpush1.bf16.msra.mxu0 %v1459
        %3172 = vmatprep.subr.bf16.mxu0 %v1456
        %3173 = vmatpush1.bf16.msra.mxu0 %v1455
        %3174 = vmatprep.subr.bf16.mxu0 %v1516
        %3175 = vmatpush2.bf16.msra.mxu0 %v1515
        %3176 = vmatprep.subr.bf16.mxu0 %v1512
        %3177 = vmatpush2.bf16.msra.mxu0 %v1511
        %3178 = vmatprep.subr.bf16.mxu0 %v1508
        %3179 = vmatpush2.bf16.msra.mxu0 %v1507
        %3180 = vmatprep.subr.bf16.mxu0 %v1504
        %3181 = vmatpush2.bf16.msra.mxu0 %v1503
        %3182 = vmatprep.subr.bf16.mxu0 %v1500
        %3183 = vmatpush2.bf16.msra.mxu0 %v1499
        %3184 = vmatprep.subr.bf16.mxu0 %v1496
        %3185 = vmatpush2.bf16.msra.mxu0 %v1495
        %3186 = vmatprep.subr.bf16.mxu0 %v1492
        %3187 = vmatpush2.bf16.msra.mxu0 %v1491
        %3188 = vmatprep.subr.bf16.mxu0 %v1488
        %3189 = vmatpush2.bf16.msra.mxu0 %v1487
        %3190 = vmatprep.mubr.bf16.mxu0 %v2050
        %3191 = vmatmul.mubr.bf16.gmra.mxu0 %v2048
        %v3192 = vpop.f32.mrf.mxu0
        %v3193 = vadd.f32 %v3152, %v3192
        %v3194 = vpop.f32.mrf.mxu0
        %v3195 = vadd.f32 %v3154, %v3194
        %v3196 = vpop.f32.mrf.mxu0
        %v3197 = vpop.f32.mrf.mxu0
        %3198 = vdwg.mxu0
        %3199 = vmatprep.subr.bf16.mxu0 %v1548
        %3200 = vmatpush1.bf16.msra.mxu0 %v1547
        %3201 = vmatprep.subr.bf16.mxu0 %v1544
        %3202 = vmatpush1.bf16.msra.mxu0 %v1543
        %3203 = vmatprep.subr.bf16.mxu0 %v1540
        %3204 = vmatpush1.bf16.msra.mxu0 %v1539
        %3205 = vmatprep.subr.bf16.mxu0 %v1536
        %3206 = vmatpush1.bf16.msra.mxu0 %v1535
        %3207 = vmatprep.subr.bf16.mxu0 %v1532
        %3208 = vmatpush1.bf16.msra.mxu0 %v1531
        %3209 = vmatprep.subr.bf16.mxu0 %v1528
        %3210 = vmatpush1.bf16.msra.mxu0 %v1527
        %3211 = vmatprep.subr.bf16.mxu0 %v1524
        %3212 = vmatpush1.bf16.msra.mxu0 %v1523
        %3213 = vmatprep.subr.bf16.mxu0 %v1520
        %3214 = vmatpush1.bf16.msra.mxu0 %v1519
        %3215 = vmatprep.subr.bf16.mxu0 %v1580
        %3216 = vmatpush2.bf16.msra.mxu0 %v1579
        %3217 = vmatprep.subr.bf16.mxu0 %v1576
        %3218 = vmatpush2.bf16.msra.mxu0 %v1575
        %3219 = vmatprep.subr.bf16.mxu0 %v1572
        %3220 = vmatpush2.bf16.msra.mxu0 %v1571
        %3221 = vmatprep.subr.bf16.mxu0 %v1568
        %3222 = vmatpush2.bf16.msra.mxu0 %v1567
        %3223 = vmatprep.subr.bf16.mxu0 %v1564
        %3224 = vmatpush2.bf16.msra.mxu0 %v1563
        %3225 = vmatprep.subr.bf16.mxu0 %v1560
        %3226 = vmatpush2.bf16.msra.mxu0 %v1559
        %3227 = vmatprep.subr.bf16.mxu0 %v1556
        %3228 = vmatpush2.bf16.msra.mxu0 %v1555
        %3229 = vmatprep.subr.bf16.mxu0 %v1552
        %3230 = vmatpush2.bf16.msra.mxu0 %v1551
        %3231 = vmatprep.mubr.bf16.mxu0 %v2047
        %3232 = vmatmul.mubr.bf16.gmra.mxu0 %v2033
        %v3233 = vpop.f32.mrf.mxu0
        %v3234 = vadd.f32 %v3193, %v3233
        %v3235 = vpop.f32.mrf.mxu0
        %v3236 = vadd.f32 %v3195, %v3235
        %v3237 = vpop.f32.mrf.mxu0
        %v3238 = vpop.f32.mrf.mxu0
        %3239 = vdwg.mxu0
        %3240 = vmatprep.subr.bf16.mxu0 %v1612
        %3241 = vmatpush1.bf16.msra.mxu0 %v1611
        %3242 = vmatprep.subr.bf16.mxu0 %v1608
        %3243 = vmatpush1.bf16.msra.mxu0 %v1607
        %3244 = vmatprep.subr.bf16.mxu0 %v1604
        %3245 = vmatpush1.bf16.msra.mxu0 %v1603
        %3246 = vmatprep.subr.bf16.mxu0 %v1600
        %3247 = vmatpush1.bf16.msra.mxu0 %v1599
        %3248 = vmatprep.subr.bf16.mxu0 %v1596
        %3249 = vmatpush1.bf16.msra.mxu0 %v1595
        %3250 = vmatprep.subr.bf16.mxu0 %v1592
        %3251 = vmatpush1.bf16.msra.mxu0 %v1591
        %3252 = vmatprep.subr.bf16.mxu0 %v1588
        %3253 = vmatpush1.bf16.msra.mxu0 %v1587
        %3254 = vmatprep.subr.bf16.mxu0 %v1584
        %3255 = vmatpush1.bf16.msra.mxu0 %v1583
        %3256 = vmatprep.subr.bf16.mxu0 %v1644
        %3257 = vmatpush2.bf16.msra.mxu0 %v1643
        %3258 = vmatprep.subr.bf16.mxu0 %v1640
        %3259 = vmatpush2.bf16.msra.mxu0 %v1639
        %3260 = vmatprep.subr.bf16.mxu0 %v1636
        %3261 = vmatpush2.bf16.msra.mxu0 %v1635
        %3262 = vmatprep.subr.bf16.mxu0 %v1632
        %3263 = vmatpush2.bf16.msra.mxu0 %v1631
        %3264 = vmatprep.subr.bf16.mxu0 %v1628
        %3265 = vmatpush2.bf16.msra.mxu0 %v1627
        %3266 = vmatprep.subr.bf16.mxu0 %v1624
        %3267 = vmatpush2.bf16.msra.mxu0 %v1623
        %3268 = vmatprep.subr.bf16.mxu0 %v1620
        %3269 = vmatpush2.bf16.msra.mxu0 %v1619
        %3270 = vmatprep.subr.bf16.mxu0 %v1616
        %3271 = vmatpush2.bf16.msra.mxu0 %v1615
        %3272 = vmatprep.mubr.bf16.mxu0 %v2051
        %3273 = vmatmul.mubr.bf16.gmra.mxu0 %v2049
        %v3274 = vpop.f32.mrf.mxu0
        %v3275 = vadd.f32 %v3234, %v3274
        %v3276 = vpop.f32.mrf.mxu0
        %v3277 = vadd.f32 %v3236, %v3276
        %v3278 = vpop.f32.mrf.mxu0
        %v3279 = vpop.f32.mrf.mxu0
        %3280 = vdwg.mxu0
        %3281 = vmatprep.subr.bf16.mxu0 %v1676
        %3282 = vmatpush1.bf16.msra.mxu0 %v1675
        %3283 = vmatprep.subr.bf16.mxu0 %v1672
        %3284 = vmatpush1.bf16.msra.mxu0 %v1671
        %3285 = vmatprep.subr.bf16.mxu0 %v1668
        %3286 = vmatpush1.bf16.msra.mxu0 %v1667
        %3287 = vmatprep.subr.bf16.mxu0 %v1664
        %3288 = vmatpush1.bf16.msra.mxu0 %v1663
        %3289 = vmatprep.subr.bf16.mxu0 %v1660
        %3290 = vmatpush1.bf16.msra.mxu0 %v1659
        %3291 = vmatprep.subr.bf16.mxu0 %v1656
        %3292 = vmatpush1.bf16.msra.mxu0 %v1655
        %3293 = vmatprep.subr.bf16.mxu0 %v1652
        %3294 = vmatpush1.bf16.msra.mxu0 %v1651
        %3295 = vmatprep.subr.bf16.mxu0 %v1648
        %3296 = vmatpush1.bf16.msra.mxu0 %v1647
        %3297 = vmatprep.subr.bf16.mxu0 %v1708
        %3298 = vmatpush2.bf16.msra.mxu0 %v1707
        %3299 = vmatprep.subr.bf16.mxu0 %v1704
        %3300 = vmatpush2.bf16.msra.mxu0 %v1703
        %3301 = vmatprep.subr.bf16.mxu0 %v1700
        %3302 = vmatpush2.bf16.msra.mxu0 %v1699
        %3303 = vmatprep.subr.bf16.mxu0 %v1696
        %3304 = vmatpush2.bf16.msra.mxu0 %v1695
        %3305 = vmatprep.subr.bf16.mxu0 %v1692
        %3306 = vmatpush2.bf16.msra.mxu0 %v1691
        %3307 = vmatprep.subr.bf16.mxu0 %v1688
        %3308 = vmatpush2.bf16.msra.mxu0 %v1687
        %3309 = vmatprep.subr.bf16.mxu0 %v1684
        %3310 = vmatpush2.bf16.msra.mxu0 %v1683
        %3311 = vmatprep.subr.bf16.mxu0 %v1680
        %3312 = vmatpush2.bf16.msra.mxu0 %v1679
        %3313 = vmatprep.mubr.bf16.mxu0 %v2089
        %3314 = vmatmul.mubr.bf16.gmra.mxu0 %v2075
        %v3315 = vpop.f32.mrf.mxu0
        %v3316 = vadd.f32 %v3275, %v3315
        %v3317 = vpop.f32.mrf.mxu0
        %v3318 = vadd.f32 %v3277, %v3317
        %v3319 = vpop.f32.mrf.mxu0
        %v3320 = vpop.f32.mrf.mxu0
        %3321 = vdwg.mxu0
        %3322 = vmatprep.subr.bf16.mxu0 %v1740
        %3323 = vmatpush1.bf16.msra.mxu0 %v1739
        %3324 = vmatprep.subr.bf16.mxu0 %v1736
        %3325 = vmatpush1.bf16.msra.mxu0 %v1735
        %3326 = vmatprep.subr.bf16.mxu0 %v1732
        %3327 = vmatpush1.bf16.msra.mxu0 %v1731
        %3328 = vmatprep.subr.bf16.mxu0 %v1728
        %3329 = vmatpush1.bf16.msra.mxu0 %v1727
        %3330 = vmatprep.subr.bf16.mxu0 %v1724
        %3331 = vmatpush1.bf16.msra.mxu0 %v1723
        %3332 = vmatprep.subr.bf16.mxu0 %v1720
        %3333 = vmatpush1.bf16.msra.mxu0 %v1719
        %3334 = vmatprep.subr.bf16.mxu0 %v1716
        %3335 = vmatpush1.bf16.msra.mxu0 %v1715
        %3336 = vmatprep.subr.bf16.mxu0 %v1712
        %3337 = vmatpush1.bf16.msra.mxu0 %v1711
        %3338 = vmatprep.subr.bf16.mxu0 %v1772
        %3339 = vmatpush2.bf16.msra.mxu0 %v1771
        %3340 = vmatprep.subr.bf16.mxu0 %v1768
        %3341 = vmatpush2.bf16.msra.mxu0 %v1767
        %3342 = vmatprep.subr.bf16.mxu0 %v1764
        %3343 = vmatpush2.bf16.msra.mxu0 %v1763
        %3344 = vmatprep.subr.bf16.mxu0 %v1760
        %3345 = vmatpush2.bf16.msra.mxu0 %v1759
        %3346 = vmatprep.subr.bf16.mxu0 %v1756
        %3347 = vmatpush2.bf16.msra.mxu0 %v1755
        %3348 = vmatprep.subr.bf16.mxu0 %v1752
        %3349 = vmatpush2.bf16.msra.mxu0 %v1751
        %3350 = vmatprep.subr.bf16.mxu0 %v1748
        %3351 = vmatpush2.bf16.msra.mxu0 %v1747
        %3352 = vmatprep.subr.bf16.mxu0 %v1744
        %3353 = vmatpush2.bf16.msra.mxu0 %v1743
        %3354 = vmatprep.mubr.bf16.mxu0 %v2099
        %3355 = vmatmul.mubr.bf16.gmra.mxu0 %v2097
        %v3356 = vpop.f32.mrf.mxu0
        %v3357 = vadd.f32 %v3316, %v3356
        %v3358 = vpop.f32.mrf.mxu0
        %v3359 = vadd.f32 %v3318, %v3358
        %v3360 = vpop.f32.mrf.mxu0
        %v3361 = vpop.f32.mrf.mxu0
        %3362 = vdwg.mxu0
        %3363 = vmatprep.subr.bf16.mxu0 %v1804
        %3364 = vmatpush1.bf16.msra.mxu0 %v1803
        %3365 = vmatprep.subr.bf16.mxu0 %v1800
        %3366 = vmatpush1.bf16.msra.mxu0 %v1799
        %3367 = vmatprep.subr.bf16.mxu0 %v1796
        %3368 = vmatpush1.bf16.msra.mxu0 %v1795
        %3369 = vmatprep.subr.bf16.mxu0 %v1792
        %3370 = vmatpush1.bf16.msra.mxu0 %v1791
        %3371 = vmatprep.subr.bf16.mxu0 %v1788
        %3372 = vmatpush1.bf16.msra.mxu0 %v1787
        %3373 = vmatprep.subr.bf16.mxu0 %v1784
        %3374 = vmatpush1.bf16.msra.mxu0 %v1783
        %3375 = vmatprep.subr.bf16.mxu0 %v1780
        %3376 = vmatpush1.bf16.msra.mxu0 %v1779
        %3377 = vmatprep.subr.bf16.mxu0 %v1776
        %3378 = vmatpush1.bf16.msra.mxu0 %v1775
        %3379 = vmatprep.subr.bf16.mxu0 %v1836
        %3380 = vmatpush2.bf16.msra.mxu0 %v1835
        %3381 = vmatprep.subr.bf16.mxu0 %v1832
        %3382 = vmatpush2.bf16.msra.mxu0 %v1831
        %3383 = vmatprep.subr.bf16.mxu0 %v1828
        %3384 = vmatpush2.bf16.msra.mxu0 %v1827
        %3385 = vmatprep.subr.bf16.mxu0 %v1824
        %3386 = vmatpush2.bf16.msra.mxu0 %v1823
        %3387 = vmatprep.subr.bf16.mxu0 %v1820
        %3388 = vmatpush2.bf16.msra.mxu0 %v1819
        %3389 = vmatprep.subr.bf16.mxu0 %v1816
        %3390 = vmatpush2.bf16.msra.mxu0 %v1815
        %3391 = vmatprep.subr.bf16.mxu0 %v1812
        %3392 = vmatpush2.bf16.msra.mxu0 %v1811
        %3393 = vmatprep.subr.bf16.mxu0 %v1808
        %3394 = vmatpush2.bf16.msra.mxu0 %v1807
        %3395 = vmatprep.mubr.bf16.mxu0 %v2096
        %3396 = vmatmul.mubr.bf16.gmra.mxu0 %v2082
        %v3397 = vpop.f32.mrf.mxu0
        %v3398 = vadd.f32 %v3357, %v3397
        %v3399 = vpop.f32.mrf.mxu0
        %v3400 = vadd.f32 %v3359, %v3399
        %v3401 = vpop.f32.mrf.mxu0
        %v3402 = vpop.f32.mrf.mxu0
        %3403 = vdwg.mxu0
        %3404 = vmatprep.subr.bf16.mxu0 %v1868
        %3405 = vmatpush1.bf16.msra.mxu0 %v1867
        %3406 = vmatprep.subr.bf16.mxu0 %v1864
        %3407 = vmatpush1.bf16.msra.mxu0 %v1863
        %3408 = vmatprep.subr.bf16.mxu0 %v1860
        %3409 = vmatpush1.bf16.msra.mxu0 %v1859
        %3410 = vmatprep.subr.bf16.mxu0 %v1856
        %3411 = vmatpush1.bf16.msra.mxu0 %v1855
        %3412 = vmatprep.subr.bf16.mxu0 %v1852
        %3413 = vmatpush1.bf16.msra.mxu0 %v1851
        %3414 = vmatprep.subr.bf16.mxu0 %v1848
        %3415 = vmatpush1.bf16.msra.mxu0 %v1847
        %3416 = vmatprep.subr.bf16.mxu0 %v1844
        %3417 = vmatpush1.bf16.msra.mxu0 %v1843
        %3418 = vmatprep.subr.bf16.mxu0 %v1840
        %3419 = vmatpush1.bf16.msra.mxu0 %v1839
        %3420 = vmatprep.subr.bf16.mxu0 %v1900
        %3421 = vmatpush2.bf16.msra.mxu0 %v1899
        %3422 = vmatprep.subr.bf16.mxu0 %v1896
        %3423 = vmatpush2.bf16.msra.mxu0 %v1895
        %3424 = vmatprep.subr.bf16.mxu0 %v1892
        %3425 = vmatpush2.bf16.msra.mxu0 %v1891
        %3426 = vmatprep.subr.bf16.mxu0 %v1888
        %3427 = vmatpush2.bf16.msra.mxu0 %v1887
        %3428 = vmatprep.subr.bf16.mxu0 %v1884
        %3429 = vmatpush2.bf16.msra.mxu0 %v1883
        %3430 = vmatprep.subr.bf16.mxu0 %v1880
        %3431 = vmatpush2.bf16.msra.mxu0 %v1879
        %3432 = vmatprep.subr.bf16.mxu0 %v1876
        %3433 = vmatpush2.bf16.msra.mxu0 %v1875
        %3434 = vmatprep.subr.bf16.mxu0 %v1872
        %3435 = vmatpush2.bf16.msra.mxu0 %v1871
        %3436 = vmatprep.mubr.bf16.mxu0 %v2100
        %3437 = vmatmul.mubr.bf16.gmra.mxu0 %v2098
        %v3438 = vpop.f32.mrf.mxu0
        %v3439 = vadd.f32 %v3398, %v3438
        %v3440 = vpop.f32.mrf.mxu0
        %v3441 = vadd.f32 %v3400, %v3440
        %v3442 = vpop.f32.mrf.mxu0
        %v3443 = vpop.f32.mrf.mxu0
        %3444 = vdwg.mxu0
        %v3445 = vld [vmem:[%s293] sm:$0xf]
        %v3447 = vlaneseq
        %v3448 = vshrl.u32 %v3447, 7
        %v3449 = vsub.s32 0, %v3448
        %v3450 = vrot.slane %v3445, %v3449
        %v3451 = vlaneseq
        %v3452 = vshrl.u32 %v3451, 7
        %v3453 = vsub.s32 1, %v3452
        %v3454 = vrot.slane %v3445, %v3453
        %v3455 = vlaneseq
        %v3456 = vshrl.u32 %v3455, 7
        %v3457 = vsub.s32 2, %v3456
        %v3458 = vrot.slane %v3445, %v3457
        %v3459 = vlaneseq
        %v3460 = vshrl.u32 %v3459, 7
        %v3461 = vsub.s32 3, %v3460
        %v3462 = vrot.slane %v3445, %v3461
        %v3467 = vmul.f32 %v2783, %v3450
        %v3468 = vmul.f32 %v2785, %v3454
        %v3469 = vmul.f32 %v3439, %v3458
        %v3470 = vmul.f32 %v3441, %v3462
        %v3471 = vld [vmem:[%s302] sm:$0xf]
        %v3473 = vlaneseq
        %v3474 = vshrl.u32 %v3473, 7
        %v3475 = vsub.s32 0, %v3474
        %v3476 = vrot.slane %v3471, %v3475
        %v3477 = vlaneseq
        %v3478 = vshrl.u32 %v3477, 7
        %v3479 = vsub.s32 1, %v3478
        %v3480 = vrot.slane %v3471, %v3479
        %v3481 = vlaneseq
        %v3482 = vshrl.u32 %v3481, 7
        %v3483 = vsub.s32 2, %v3482
        %v3484 = vrot.slane %v3471, %v3483
        %v3485 = vlaneseq
        %v3486 = vshrl.u32 %v3485, 7
        %v3487 = vsub.s32 3, %v3486
        %v3488 = vrot.slane %v3471, %v3487
        %v3493 = vadd.f32 %v3467, %v3476
        %v3494 = vadd.f32 %v3468, %v3480
        %v3495 = vadd.f32 %v3469, %v3484
        %v3496 = vadd.f32 %v3470, %v3488
        %v3497 = vmax.f32 %v3493, 0.0
        %v3498 = vmax.f32 %v3494, 0.0
        %v3499 = vmax.f32 %v3495, 0.0
        %v3500 = vmax.f32 %v3496, 0.0
        %v3501 = vpack.c.bf16 %v3497, %v3497
        %v3502 = vpack.c.bf16 %v3498, %v3498
        %v3503 = vpack.c.bf16 %v3499, %v3499
        %v3504 = vpack.c.bf16 %v3500, %v3500
        %v3505 = vld [vmem:[%s311] sm:$0xf]
        %v3506 = vld [vmem:[%s311 + $0x4] sm:$0xf]
        %v3507 = vld [vmem:[%s311 + $0x8] sm:$0xf]
        %v3508 = vld [vmem:[%s311 + $0xc] sm:$0xf]
        %v3509 = vld [vmem:[%s311 + $0x10] sm:$0xf]
        %v3510 = vld [vmem:[%s311 + $0x14] sm:$0xf]
        %v3511 = vld [vmem:[%s311 + $0x18] sm:$0xf]
        %v3512 = vld [vmem:[%s311 + $0x1c] sm:$0xf]
        %v3513 = vld [vmem:[%s311 + $0x20] sm:$0xf]
        %v3514 = vld [vmem:[%s311 + $0x24] sm:$0xf]
        %v3515 = vld [vmem:[%s311 + $0x28] sm:$0xf]
        %v3516 = vld [vmem:[%s311 + $0x2c] sm:$0xf]
        %v3517 = vld [vmem:[%s311 + $0x30] sm:$0xf]
        %v3518 = vld [vmem:[%s311 + $0x34] sm:$0xf]
        %v3519 = vld [vmem:[%s311 + $0x38] sm:$0xf]
        %v3520 = vld [vmem:[%s311 + $0x3c] sm:$0xf]
        %v3521 = vld [vmem:[%s311 + $0x40] sm:$0xf]
        %v3522 = vld [vmem:[%s311 + $0x44] sm:$0xf]
        %v3523 = vld [vmem:[%s311 + $0x48] sm:$0xf]
        %v3524 = vld [vmem:[%s311 + $0x4c] sm:$0xf]
        %v3525 = vld [vmem:[%s311 + $0x50] sm:$0xf]
        %v3526 = vld [vmem:[%s311 + $0x54] sm:$0xf]
        %v3527 = vld [vmem:[%s311 + $0x58] sm:$0xf]
        %v3528 = vld [vmem:[%s311 + $0x5c] sm:$0xf]
        %v3529 = vld [vmem:[%s311 + $0x60] sm:$0xf]
        %v3530 = vld [vmem:[%s311 + $0x64] sm:$0xf]
        %v3531 = vld [vmem:[%s311 + $0x68] sm:$0xf]
        %v3532 = vld [vmem:[%s311 + $0x6c] sm:$0xf]
        %v3533 = vld [vmem:[%s311 + $0x70] sm:$0xf]
        %v3534 = vld [vmem:[%s311 + $0x74] sm:$0xf]
        %v3535 = vld [vmem:[%s311 + $0x78] sm:$0xf]
        %v3536 = vld [vmem:[%s311 + $0x7c] sm:$0xf]
        %v3537 = vld [vmem:[%s311 + $0x80] sm:$0xf]
        %v3538 = vld [vmem:[%s311 + $0x84] sm:$0xf]
        %v3539 = vld [vmem:[%s311 + $0x88] sm:$0xf]
        %v3540 = vld [vmem:[%s311 + $0x8c] sm:$0xf]
        %v3541 = vld [vmem:[%s311 + $0x90] sm:$0xf]
        %v3542 = vld [vmem:[%s311 + $0x94] sm:$0xf]
        %v3543 = vld [vmem:[%s311 + $0x98] sm:$0xf]
        %v3544 = vld [vmem:[%s311 + $0x9c] sm:$0xf]
        %v3545 = vld [vmem:[%s311 + $0xa0] sm:$0xf]
        %v3546 = vld [vmem:[%s311 + $0xa4] sm:$0xf]
        %v3547 = vld [vmem:[%s311 + $0xa8] sm:$0xf]
        %v3548 = vld [vmem:[%s311 + $0xac] sm:$0xf]
        %v3549 = vld [vmem:[%s311 + $0xb0] sm:$0xf]
        %v3550 = vld [vmem:[%s311 + $0xb4] sm:$0xf]
        %v3551 = vld [vmem:[%s311 + $0xb8] sm:$0xf]
        %v3552 = vld [vmem:[%s311 + $0xbc] sm:$0xf]
        %v3553 = vld [vmem:[%s311 + $0xc0] sm:$0xf]
        %v3554 = vld [vmem:[%s311 + $0xc4] sm:$0xf]
        %v3555 = vld [vmem:[%s311 + $0xc8] sm:$0xf]
        %v3556 = vld [vmem:[%s311 + $0xcc] sm:$0xf]
        %v3557 = vld [vmem:[%s311 + $0xd0] sm:$0xf]
        %v3558 = vld [vmem:[%s311 + $0xd4] sm:$0xf]
        %v3559 = vld [vmem:[%s311 + $0xd8] sm:$0xf]
        %v3560 = vld [vmem:[%s311 + $0xdc] sm:$0xf]
        %v3561 = vld [vmem:[%s311 + $0xe0] sm:$0xf]
        %v3562 = vld [vmem:[%s311 + $0xe4] sm:$0xf]
        %v3563 = vld [vmem:[%s311 + $0xe8] sm:$0xf]
        %v3564 = vld [vmem:[%s311 + $0xec] sm:$0xf]
        %v3565 = vld [vmem:[%s311 + $0xf0] sm:$0xf]
        %v3566 = vld [vmem:[%s311 + $0xf4] sm:$0xf]
        %v3567 = vld [vmem:[%s311 + $0xf8] sm:$0xf]
        %v3568 = vld [vmem:[%s311 + $0xfc] sm:$0xf]
        %v3633 = vunpack.c.l.b16 %v3505
        %v3634 = vunpack.c.l.b16 %v3506
        %v3635 = vunpack.c.l.b16 %v3507
        %v3636 = vunpack.c.l.b16 %v3508
        %v3637 = vunpack.c.l.b16 %v3509
        %v3638 = vunpack.c.l.b16 %v3510
        %v3639 = vunpack.c.l.b16 %v3511
        %v3640 = vunpack.c.l.b16 %v3512
        %v3641 = vunpack.c.l.b16 %v3513
        %v3642 = vunpack.c.l.b16 %v3514
        %v3643 = vunpack.c.l.b16 %v3515
        %v3644 = vunpack.c.l.b16 %v3516
        %v3645 = vunpack.c.l.b16 %v3517
        %v3646 = vunpack.c.l.b16 %v3518
        %v3647 = vunpack.c.l.b16 %v3519
        %v3648 = vunpack.c.l.b16 %v3520
        %v3649 = vunpack.c.l.b16 %v3521
        %v3650 = vunpack.c.l.b16 %v3522
        %v3651 = vunpack.c.l.b16 %v3523
        %v3652 = vunpack.c.l.b16 %v3524
        %v3653 = vunpack.c.l.b16 %v3525
        %v3654 = vunpack.c.l.b16 %v3526
        %v3655 = vunpack.c.l.b16 %v3527
        %v3656 = vunpack.c.l.b16 %v3528
        %v3657 = vunpack.c.l.b16 %v3529
        %v3658 = vunpack.c.l.b16 %v3530
        %v3659 = vunpack.c.l.b16 %v3531
        %v3660 = vunpack.c.l.b16 %v3532
        %v3661 = vunpack.c.l.b16 %v3533
        %v3662 = vunpack.c.l.b16 %v3534
        %v3663 = vunpack.c.l.b16 %v3535
        %v3664 = vunpack.c.l.b16 %v3536
        %v3665 = vunpack.c.l.b16 %v3537
        %v3666 = vunpack.c.l.b16 %v3538
        %v3667 = vunpack.c.l.b16 %v3539
        %v3668 = vunpack.c.l.b16 %v3540
        %v3669 = vunpack.c.l.b16 %v3541
        %v3670 = vunpack.c.l.b16 %v3542
        %v3671 = vunpack.c.l.b16 %v3543
        %v3672 = vunpack.c.l.b16 %v3544
        %v3673 = vunpack.c.l.b16 %v3545
        %v3674 = vunpack.c.l.b16 %v3546
        %v3675 = vunpack.c.l.b16 %v3547
        %v3676 = vunpack.c.l.b16 %v3548
        %v3677 = vunpack.c.l.b16 %v3549
        %v3678 = vunpack.c.l.b16 %v3550
        %v3679 = vunpack.c.l.b16 %v3551
        %v3680 = vunpack.c.l.b16 %v3552
        %v3681 = vunpack.c.l.b16 %v3553
        %v3682 = vunpack.c.l.b16 %v3554
        %v3683 = vunpack.c.l.b16 %v3555
        %v3684 = vunpack.c.l.b16 %v3556
        %v3685 = vunpack.c.l.b16 %v3557
        %v3686 = vunpack.c.l.b16 %v3558
        %v3687 = vunpack.c.l.b16 %v3559
        %v3688 = vunpack.c.l.b16 %v3560
        %v3689 = vunpack.c.l.b16 %v3561
        %v3690 = vunpack.c.l.b16 %v3562
        %v3691 = vunpack.c.l.b16 %v3563
        %v3692 = vunpack.c.l.b16 %v3564
        %v3693 = vunpack.c.l.b16 %v3565
        %v3694 = vunpack.c.l.b16 %v3566
        %v3695 = vunpack.c.l.b16 %v3567
        %v3696 = vunpack.c.l.b16 %v3568
        %v3697 = vpack.c.b16 %v3634, %v3633
        %v3698 = vpack.c.b16 %v3636, %v3635
        %v3699 = vpack.c.b16 %v3638, %v3637
        %v3700 = vpack.c.b16 %v3640, %v3639
        %v3701 = vpack.c.b16 %v3642, %v3641
        %v3702 = vpack.c.b16 %v3644, %v3643
        %v3703 = vpack.c.b16 %v3646, %v3645
        %v3704 = vpack.c.b16 %v3648, %v3647
        %v3705 = vpack.c.b16 %v3650, %v3649
        %v3706 = vpack.c.b16 %v3652, %v3651
        %v3707 = vpack.c.b16 %v3654, %v3653
        %v3708 = vpack.c.b16 %v3656, %v3655
        %v3709 = vpack.c.b16 %v3658, %v3657
        %v3710 = vpack.c.b16 %v3660, %v3659
        %v3711 = vpack.c.b16 %v3662, %v3661
        %v3712 = vpack.c.b16 %v3664, %v3663
        %v3713 = vpack.c.b16 %v3666, %v3665
        %v3714 = vpack.c.b16 %v3668, %v3667
        %v3715 = vpack.c.b16 %v3670, %v3669
        %v3716 = vpack.c.b16 %v3672, %v3671
        %v3717 = vpack.c.b16 %v3674, %v3673
        %v3718 = vpack.c.b16 %v3676, %v3675
        %v3719 = vpack.c.b16 %v3678, %v3677
        %v3720 = vpack.c.b16 %v3680, %v3679
        %v3721 = vpack.c.b16 %v3682, %v3681
        %v3722 = vpack.c.b16 %v3684, %v3683
        %v3723 = vpack.c.b16 %v3686, %v3685
        %v3724 = vpack.c.b16 %v3688, %v3687
        %v3725 = vpack.c.b16 %v3690, %v3689
        %v3726 = vpack.c.b16 %v3692, %v3691
        %v3727 = vpack.c.b16 %v3694, %v3693
        %v3728 = vpack.c.b16 %v3696, %v3695
        %3761 = vmatprep.subr.bf16.mxu0 0
        %3762 = vmatpush1.bf16.msra.mxu0 %v3704
        %3763 = vmatprep.subr.bf16.mxu0 0
        %3764 = vmatpush1.bf16.msra.mxu0 %v3703
        %3765 = vmatprep.subr.bf16.mxu0 0
        %3766 = vmatpush1.bf16.msra.mxu0 %v3702
        %3767 = vmatprep.subr.bf16.mxu0 0
        %3768 = vmatpush1.bf16.msra.mxu0 %v3701
        %3769 = vmatprep.subr.bf16.mxu0 0
        %3770 = vmatpush1.bf16.msra.mxu0 %v3700
        %3771 = vmatprep.subr.bf16.mxu0 0
        %3772 = vmatpush1.bf16.msra.mxu0 %v3699
        %3773 = vmatprep.subr.bf16.mxu0 0
        %3774 = vmatpush1.bf16.msra.mxu0 %v3698
        %3775 = vmatprep.subr.bf16.mxu0 0
        %3776 = vmatpush1.bf16.msra.mxu0 %v3697
        %3777 = vmatprep.subr.bf16.mxu0 0
        %3778 = vmatpush2.bf16.msra.mxu0 %v3712
        %3779 = vmatprep.subr.bf16.mxu0 0
        %3780 = vmatpush2.bf16.msra.mxu0 %v3711
        %3781 = vmatprep.subr.bf16.mxu0 0
        %3782 = vmatpush2.bf16.msra.mxu0 %v3710
        %3783 = vmatprep.subr.bf16.mxu0 0
        %3784 = vmatpush2.bf16.msra.mxu0 %v3709
        %3785 = vmatprep.subr.bf16.mxu0 0
        %3786 = vmatpush2.bf16.msra.mxu0 %v3708
        %3787 = vmatprep.subr.bf16.mxu0 0
        %3788 = vmatpush2.bf16.msra.mxu0 %v3707
        %3789 = vmatprep.subr.bf16.mxu0 0
        %3790 = vmatpush2.bf16.msra.mxu0 %v3706
        %3791 = vmatprep.subr.bf16.mxu0 0
        %3792 = vmatpush2.bf16.msra.mxu0 %v3705
        %3793 = vmatprep.mubr.bf16.mxu0 %v3502
        %3794 = vmatmul.mubr.bf16.gmra.mxu0 %v3501
        %v3795 = vpop.f32.mrf.mxu0
        %v3796 = vadd.f32 0.0, %v3795
        %v3797 = vpop.f32.mrf.mxu0
        %v3798 = vpop.f32.mrf.mxu0
        %v3799 = vpop.f32.mrf.mxu0
        %3800 = vdwg.mxu0
        %3801 = vmatprep.subr.bf16.mxu0 0
        %3802 = vmatpush1.bf16.msra.mxu0 %v3720
        %3803 = vmatprep.subr.bf16.mxu0 0
        %3804 = vmatpush1.bf16.msra.mxu0 %v3719
        %3805 = vmatprep.subr.bf16.mxu0 0
        %3806 = vmatpush1.bf16.msra.mxu0 %v3718
        %3807 = vmatprep.subr.bf16.mxu0 0
        %3808 = vmatpush1.bf16.msra.mxu0 %v3717
        %3809 = vmatprep.subr.bf16.mxu0 0
        %3810 = vmatpush1.bf16.msra.mxu0 %v3716
        %3811 = vmatprep.subr.bf16.mxu0 0
        %3812 = vmatpush1.bf16.msra.mxu0 %v3715
        %3813 = vmatprep.subr.bf16.mxu0 0
        %3814 = vmatpush1.bf16.msra.mxu0 %v3714
        %3815 = vmatprep.subr.bf16.mxu0 0
        %3816 = vmatpush1.bf16.msra.mxu0 %v3713
        %3817 = vmatprep.subr.bf16.mxu0 0
        %3818 = vmatpush2.bf16.msra.mxu0 %v3728
        %3819 = vmatprep.subr.bf16.mxu0 0
        %3820 = vmatpush2.bf16.msra.mxu0 %v3727
        %3821 = vmatprep.subr.bf16.mxu0 0
        %3822 = vmatpush2.bf16.msra.mxu0 %v3726
        %3823 = vmatprep.subr.bf16.mxu0 0
        %3824 = vmatpush2.bf16.msra.mxu0 %v3725
        %3825 = vmatprep.subr.bf16.mxu0 0
        %3826 = vmatpush2.bf16.msra.mxu0 %v3724
        %3827 = vmatprep.subr.bf16.mxu0 0
        %3828 = vmatpush2.bf16.msra.mxu0 %v3723
        %3829 = vmatprep.subr.bf16.mxu0 0
        %3830 = vmatpush2.bf16.msra.mxu0 %v3722
        %3831 = vmatprep.subr.bf16.mxu0 0
        %3832 = vmatpush2.bf16.msra.mxu0 %v3721
        %3833 = vmatprep.mubr.bf16.mxu0 %v3504
        %3834 = vmatmul.mubr.bf16.gmra.mxu0 %v3503
        %v3835 = vpop.f32.mrf.mxu0
        %v3836 = vadd.f32 %v3796, %v3835
        %v3837 = vpop.f32.mrf.mxu0
        %v3838 = vpop.f32.mrf.mxu0
        %v3839 = vpop.f32.mrf.mxu0
        %3840 = vdwg.mxu0
        %3841 = vst [vmem:[%s359] sm:$0x3] %v3836
        %p3842 = scmp.lt.s32.totalorder %s25, 1
        %s3843 = scalar_select %p3842, %s25, 1
        %s3844 = smul.addr %s3843, 2
        %s3845 = scalar_lea.vmem %s5, %s3844
        // Predicated region
        $region57: #{mapping_model_gmm_pallas.1} parent=39 // pred_check
          %p3846 = pneg %p168
        $region58: #{mapping_model_gmm_pallas.1} parent=39 // pred_check_branch
          %3848 = sbr.rel (%p3846) target = $region60
        $region59: #{mapping_model_gmm_pallas.1} parent=39 // pred_region
          _
        $region60: #{mapping_model_gmm_pallas.1} parent=39 // pred_fallthru
          _
      $region40: #{mapping_model_gmm_pallas.1} parent=5 // pred_fallthru
        _
      %p3849 = scmp.le.s32.totalorder 2, %s20
      // Predicated region
      $region61: #{mapping_model_gmm_pallas.1} parent=5 // pred_check
        %p3850 = pneg %p3849
      $region62: #{mapping_model_gmm_pallas.1} parent=5 // pred_check_branch
        %3852 = sbr.rel (%p3850) target = $region64
      $region63: #{mapping_model_gmm_pallas.1} parent=5 // pred_region
        %s3853 = ssub.s32 %s20, 2
        // Predicated region
        $region65: #{mapping_model_gmm_pallas.1} parent=63 // pred_check
          %p3854 = pneg %p174
        $region66: #{mapping_model_gmm_pallas.1} parent=63 // pred_check_branch
          %3856 = sbr.rel (%p3854) target = $region68
        $region67: #{mapping_model_gmm_pallas.1} parent=63 // pred_region
          %p3857 = scmp.lt.s32.totalorder %s26, 1
          %s3858 = scalar_select %p3857, %s26, 1
          %s3859 = smul.addr %s3858, 2
          %s3860 = scalar_lea.vmem %s5, %s3859
        $region68: #{mapping_model_gmm_pallas.1} parent=63 // pred_fallthru
          _
      $region64: #{mapping_model_gmm_pallas.1} parent=5 // pred_fallthru
        _
    $region6: #{mapping_model_gmm_pallas.1} parent=1 // loop_footer
      %s24 = sadd.s32 1, %s20
    $region7: #{mapping_model_gmm_pallas.1} parent=1 // loop_footer_branch
      %19 = sbr.rel target = $region3
    $region8: #{mapping_model_gmm_pallas.1} parent=1 // loop_exit
      _
    %3861 = vsyncpa [#allocation3], 1
    %s3862 = scalar_lea.sflag [#allocation3], 1
    %3863 = vsyncpa %s3862, 1
    %3864 = vsyncpa [#allocation5], 1
    %s3865 = scalar_lea.sflag [#allocation5], 1
    %3866 = vsyncpa %s3865, 1
    %3867 = vsyncpa [#allocation8], 1
    %s3868 = scalar_lea.sflag [#allocation8], 1
    %3869 = vsyncpa %s3868, 1

</llo_original>
